<compile_context>
chip_gen: v5e
topology: v5e:2x2
jax: 0.10.0
libtpu: 0.0.40
codegen_flags: <defaults>
</compile_context>

<pallas_src>
import functools

import jax
import jax.numpy as jnp
from jax import lax
from jax.experimental import pallas as pl
from jax.experimental.pallas import tpu as pltpu

COMPUTE_DTYPE = jnp.bfloat16        # operand dtype; all accumulation stays in f32

# Tile targets. For linear(): batch-sized M keeps the x tile and f32 accumulator tiny,
# so nearly all VMEM goes to the (tk, tn) weight stream -> large K/N tiles.
_TM, _TN, _TK = 256, 512, 4096
_CONV_TC = 256                      # Cout tile target for the conv kernels


@functools.lru_cache(maxsize=None)
def _vmem_limit_bytes():
    """~3/4 of this chip's physical VMEM (~96 MiB on v5e/v6e, ~48 MiB on v7x)."""
    try:
        cap = int(pltpu.get_tpu_info().vmem_capacity_bytes)
    except Exception:
        cap = 64 * 1024 * 1024      # conservative fallback = v7x physical VMEM
    return int(min((cap * 3) // 4, 112 * 1024 * 1024))


def _tile(dim, target, align=128):
    """Largest multiple of `align` that divides `dim` and is <= target; else full dim."""
    if dim % align != 0:
        return dim
    t = min(target, dim)
    t -= t % align
    while t > 0 and dim % t != 0:
        t -= align
    return t if t > 0 else dim


# --------------------- Conv2d 3x3 (pad=1) + ReLU (+ fused 2x2 maxpool) ---------------------

def conv3x3_kernel(x_ref, w_ref, b_ref, o_ref, xpad_ref, *, pool):
    # x_ref:    (H, W, Cin) bf16 -- one image
    # w_ref:    (9*Cin, Ct) bf16 -- (dy, dx, cin)-flattened 3x3 taps (repacked offline)
    # b_ref:    (1, Ct) f32
    # o_ref:    (Ho, Wo, Ct)
    # xpad_ref: (H+2, W+2, Cin) -- zero-halo'd input, fully rebuilt every grid step
    H, W, cin = x_ref.shape
    tc = o_ref.shape[-1]

    # Rebuild the halo every step: zero only the four 1-pixel border strips (cheap),
    # then overwrite the interior.  No state is carried across grid steps, so this is
    # safe under any grid sharding/order (fixes the v7x megacore hazard).
    zrow = jnp.zeros((1, W + 2, cin), xpad_ref.dtype)
    zcol = jnp.zeros((H + 2, 1, cin), xpad_ref.dtype)
    xpad_ref[0:1, :, :] = zrow
    xpad_ref[H + 1:H + 2, :, :] = zrow
    xpad_ref[:, 0:1, :] = zcol
    xpad_ref[:, W + 1:W + 2, :] = zcol
    xpad_ref[1:H + 1, 1:W + 1, :] = x_ref[...]

    # im2col: fold all 9 taps into the contraction dim (K = 9*Cin) so one deep MXU
    # matmul replaces 9 shallow ones.  Each padded row band is loaded once per dy and
    # reused for its three dx taps.  The result stays in f32 vregs -- no accumulator
    # scratch, no extra VMEM read-modify-write passes.
    taps = []
    for dy in range(3):
        rows = xpad_ref[dy:dy + H, :, :]          # (H, W+2, Cin)
        for dx in range(3):
            taps.append(rows[:, dx:dx + W, :])    # (H, W, Cin)
    x_col = jnp.concatenate(taps, axis=-1).reshape(H * W, 9 * cin)
    y = jnp.dot(x_col, w_ref[...], preferred_element_type=jnp.float32)

    y = jnp.maximum(y + b_ref[...], 0.0)          # bias + ReLU in f32
    if pool:                                      # fused 2x2 max-pool epilogue
        y = y.reshape(H // 2, 2, W // 2, 2, tc).max(axis=3).max(axis=1)
    else:
        y = y.reshape(H, W, tc)
    o_ref[...] = y.astype(o_ref.dtype)


def conv3x3_relu(x_nhwc, w_flat, b, *, pool):
    # x_nhwc: (N,H,W,Cin) bf16, w_flat: (9*Cin, Cout) bf16, b: (1, Cout) f32
    N, H, W, Cin = x_nhwc.shape
    Cout = w_flat.shape[-1]
    assert w_flat.shape[0] == 9 * Cin
    if pool:
        assert H % 2 == 0 and W % 2 == 0
    Ho, Wo = (H // 2, W // 2) if pool else (H, W)
    tc = _tile(Cout, _CONV_TC)

    # Grid order (Cout tile, image): the weight block index only depends on the outer
    # axis, so it stays resident while images stream (no per-image weight re-fetch).
    # Both axes are safely 'parallel' because the kernel carries no state across steps.
    # TODO(synk): at real 224^2 dims add row-band spatial tiling (band + 1-row halo via
    # manual async_copy) so padded input + im2col fit v7x's 64 MiB VMEM; and pack two
    # spatial columns into the lane dim for the 64-channel layers (lane-dense stores).
    return pl.pallas_call(
        functools.partial(conv3x3_kernel, pool=pool),
        out_shape=jax.ShapeDtypeStruct((N, Ho, Wo, Cout), x_nhwc.dtype),
        grid_spec=pltpu.PrefetchScalarGridSpec(
            num_scalar_prefetch=0,
            grid=(Cout // tc, N),
            in_specs=[
                pl.BlockSpec((None, H, W, Cin), lambda co, n: (n, 0, 0, 0)),
                pl.BlockSpec((9 * Cin, tc), lambda co, n: (0, co)),
                pl.BlockSpec((1, tc), lambda co, n: (0, co)),
            ],
            out_specs=pl.BlockSpec((None, Ho, Wo, tc), lambda co, n: (n, 0, 0, co)),
            scratch_shapes=[
                pltpu.VMEM((H + 2, W + 2, Cin), x_nhwc.dtype),   # halo'd input (VMEM only)
            ],
        ),
        compiler_params=pltpu.CompilerParams(
            dimension_semantics=("parallel", "parallel"),
            vmem_limit_bytes=_vmem_limit_bytes(),
        ),
    )(x_nhwc, w_flat, b)


# -------------------- MaxPool2d(2, 2) (standalone, single-input kernel) --------------------
# Only used when a pool is not immediately preceded by a conv (otherwise it is fused above).

def maxpool2_kernel(x_ref, o_ref):
    H, W, C = x_ref.shape
    y = x_ref[...].reshape(H // 2, 2, W // 2, 2, C)
    o_ref[...] = y.max(axis=3).max(axis=1).astype(o_ref.dtype)


def maxpool2x2(x_nhwc):
    N, H, W, C = x_nhwc.shape
    return pl.pallas_call(
        maxpool2_kernel,
        out_shape=jax.ShapeDtypeStruct((N, H // 2, W // 2, C), x_nhwc.dtype),
        grid_spec=pltpu.PrefetchScalarGridSpec(
            num_scalar_prefetch=0,
            grid=(N,),
            in_specs=[pl.BlockSpec((None, H, W, C), lambda n: (n, 0, 0, 0))],
            out_specs=pl.BlockSpec((None, H // 2, W // 2, C), lambda n: (n, 0, 0, 0)),
        ),
        compiler_params=pltpu.CompilerParams(
            dimension_semantics=("parallel",),
            vmem_limit_bytes=_vmem_limit_bytes(),
        ),
    )(x_nhwc)


# ------------------------------- Linear (+ ReLU), tiled -------------------------------------

def linear_kernel(x_ref, w_ref, b_ref, o_ref, acc_ref, *, apply_relu):
    k = pl.program_id(2)

    @pl.when(k == 0)
    def _():
        acc_ref[...] = jnp.zeros_like(acc_ref)

    acc_ref[...] += jnp.dot(x_ref[...], w_ref[...], preferred_element_type=jnp.float32)

    @pl.when(k == pl.num_programs(2) - 1)
    def _():
        y = acc_ref[...] + b_ref[...]
        if apply_relu:
            y = jnp.maximum(y, 0.0)
        o_ref[...] = y.astype(o_ref.dtype)


def _linear_tiles(M, K, Fout, in_bytes, out_bytes):
    """Pick (tm, tn, tk): big K/N tiles for the weight stream, checked against VMEM."""
    # M is batch-sized; a non-8-multiple batch (demo M=2) just uses the full (tiny) dim
    # -- masked sublane accesses there are accepted (FC layers are weight-stream bound).
    tm = _tile(M, _TM, align=8)
    tn = _tile(Fout, _TN)           # >=256 where possible: matches 2x256x256 MXU width
    tk = _tile(K, _TK)
    budget = int(_vmem_limit_bytes() * 0.6)

    def footprint(t):
        return (2 * tm * t * in_bytes        # x blocks (double-buffered)
                + 2 * t * tn * in_bytes      # weight blocks (double-buffered)
                + tm * tn * 4                # f32 accumulator scratch
                + 2 * tm * tn * out_bytes    # output blocks (double-buffered)
                + 2 * tn * 4)                # bias blocks

    while footprint(tk) > budget and tk > 128 and tk % 128 == 0:
        cand = tk - 128
        while cand >= 128 and K % cand != 0:
            cand -= 128
        if cand < 128:
            break
        tk = cand
    if footprint(tk) > budget:
        # Fail loudly instead of silently exploding the per-step block (VMEM OOM) when
        # a dimension is not 128-divisible.
        raise ValueError(
            f"linear tile (tm={tm}, tn={tn}, tk={tk}) needs {footprint(tk)} bytes of "
            f"VMEM (budget {budget}); pad Fin/Fout to multiples of 128 or lower tiles.")
    return tm, tn, tk


def linear(x, w_t, b, *, apply_relu=False, out_dtype=None):
    # x: (M, Fin) bf16, w_t: (Fin, Fout) bf16 (pre-transposed at init), b: (1, Fout) f32
    M, K = x.shape
    Kw, Fout = w_t.shape
    assert K == Kw
    out_dtype = x.dtype if out_dtype is None else out_dtype
    tm, tn, tk = _linear_tiles(M, K, Fout, x.dtype.itemsize, jnp.dtype(out_dtype).itemsize)

    return pl.pallas_call(
        functools.partial(linear_kernel, apply_relu=apply_relu),
        out_shape=jax.ShapeDtypeStruct((M, Fout), out_dtype),
        grid_spec=pltpu.PrefetchScalarGridSpec(
            num_scalar_prefetch=0,
            grid=(M // tm, Fout // tn, K // tk),          # K innermost (reduction)
            in_specs=[
                pl.BlockSpec((tm, tk), lambda i, j, k: (i, k)),
                pl.BlockSpec((tk, tn), lambda i, j, k: (k, j)),   # weight stream (2 bufs)
                pl.BlockSpec((1, tn), lambda i, j, k: (0, j)),
            ],
            out_specs=pl.BlockSpec((tm, tn), lambda i, j, k: (i, j)),
            scratch_shapes=[pltpu.VMEM((tm, tn), jnp.float32)],
        ),
        compiler_params=pltpu.CompilerParams(
            dimension_semantics=("parallel", "parallel", "arbitrary"),
            vmem_limit_bytes=_vmem_limit_bytes(),
        ),
    )(x, w_t, b)


# ----------------------------------- parameters ---------------------------------------------

def init_torch_params(key, cfg, in_ch, flat_dim, hidden, num_classes):
    """Parameters in PyTorch layouts (conv OIHW, linear (out,in)), mirroring VGG init."""
    params = {"convs": [], "classifier": []}
    c = in_ch
    for v in cfg:
        if v == "M":
            continue
        key, kw, kb = jax.random.split(key, 3)
        fan_out = v * 9                                    # kaiming_normal_, fan_out, relu
        w = jax.random.normal(kw, (v, c, 3, 3), jnp.float32) * (2.0 / fan_out) ** 0.5
        # torch init sets conv/linear biases to 0; small random biases exercise the bias path.
        b = jax.random.normal(kb, (v,), jnp.float32) * 0.1
        params["convs"].append((w, b))
        c = v
    dims = [flat_dim, hidden, hidden, num_classes]
    for i in range(3):
        key, kw, kb = jax.random.split(key, 3)
        w = jax.random.normal(kw, (dims[i + 1], dims[i]), jnp.float32) * 0.01   # N(0, 0.01)
        b = jax.random.normal(kb, (dims[i + 1],), jnp.float32) * 0.01
        params["classifier"].append((w, b))
    return params


def prepare_kernel_params(tparams, feature_shape, compute_dtype=COMPUTE_DTYPE):
    """One-time repack for the kernels: conv OIHW -> (9*Cin, Cout) bf16 (im2col taps),
    linear (out,in) -> (in,out) bf16 with w1's input dim permuted from torch NCHW-flatten
    order to NHWC order (no post-features transpose and no per-call w.T at forward time)."""
    Hf, Wf, Cf = feature_shape
    kp = {"convs": [], "classifier": []}
    for w, b in tparams["convs"]:
        cout, cin = w.shape[0], w.shape[1]
        w_flat = (jnp.transpose(w, (2, 3, 1, 0))           # (3,3,Cin,Cout) = (dy,dx,cin,co)
                  .reshape(9 * cin, cout).astype(compute_dtype))
        kp["convs"].append((w_flat, b.reshape(1, cout).astype(jnp.float32)))
    for li, (w, b) in enumerate(tparams["classifier"]):
        fout = w.shape[0]
        if li == 0:  # fold the NCHW->NHWC flatten permutation into w1 (done once, offline)
            w = w.reshape(fout, Cf, Hf, Wf).transpose(0, 2, 3, 1).reshape(fout, Hf * Wf * Cf)
        kp["classifier"].append((jnp.asarray(w).T.astype(compute_dtype),   # (Fin, Fout)
                                 b.reshape(1, fout).astype(jnp.float32)))
    return kp


# ------------------------------------ VGG forward -------------------------------------------

def vgg_forward(kparams, cfg, x_nchw):
    x = jnp.transpose(x_nchw, (0, 2, 3, 1)).astype(COMPUTE_DTYPE)  # one NCHW->NHWC at input
    ci, i = 0, 0
    while i < len(cfg):
        if cfg[i] == "M":
            x = maxpool2x2(x)                      # pool not preceded by a conv (rare)
            i += 1
            continue
        w, b = kparams["convs"][ci]
        ci += 1
        fuse_pool = i + 1 < len(cfg) and cfg[i + 1] == "M"
        x = conv3x3_relu(x, w, b, pool=fuse_pool)  # 2x2 maxpool fused into the conv epilogue
        i += 2 if fuse_pool else 1

    x = x.reshape(x.shape[0], -1)                  # NHWC flatten; w1 permuted at init to match
    (w1, b1), (w2, b2), (w3, b3) = kparams["classifier"]
    x = linear(x, w1, b1, apply_relu=True)
    # TODO(synk): nn.Dropout modeled as inference-mode identity (module's predict() runs eval()).
    x = linear(x, w2, b2, apply_relu=True)
    return linear(x, w3, b3, apply_relu=False, out_dtype=jnp.float32)


# -------------------------------- pure-JAX reference ----------------------------------------
# Matches the kernels' dtype strategy (bf16 operands, f32 accumulation/epilogue) so the
# comparison only sees accumulation-order noise.

def vgg_reference(tparams, cfg, x_nchw):
    x = jnp.transpose(x_nchw, (0, 2, 3, 1)).astype(COMPUTE_DTYPE)
    ci = 0
    for v in cfg:
        if v == "M":
            N, H, W, C = x.shape
            x = x.reshape(N, H // 2, 2, W // 2, 2, C).max(axis=(2, 4))
        else:
            w, b = tparams["convs"][ci]
            ci += 1
            w_hwio = jnp.transpose(w, (2, 3, 1, 0)).astype(COMPUTE_DTYPE)
            y = lax.conv_general_dilated(
                x, w_hwio, (1, 1), "SAME",
                dimension_numbers=("NHWC", "HWIO", "NHWC"),
                preferred_element_type=jnp.float32)
            x = jnp.maximum(y + b.astype(jnp.float32), 0.0).astype(COMPUTE_DTYPE)
    h = jnp.transpose(x, (0, 3, 1, 2)).reshape(x.shape[0], -1)     # torch.flatten(x, 1) order
    for li, (w, b) in enumerate(tparams["classifier"]):
        y = jnp.dot(h, w.astype(COMPUTE_DTYPE).T,
                    preferred_element_type=jnp.float32) + b.astype(jnp.float32)
        h = jnp.maximum(y, 0.0).astype(COMPUTE_DTYPE) if li < 2 else y
    return h


if __name__ == "__main__":
    key = jax.random.PRNGKey(0)
    N, Cin, H, W = 2, 4, 16, 16
    cfg = [8, "M", 16, "M"]                       # small VGG-style feature block
    hidden, num_classes = 256, 2
    Hf, Wf, Cf = H // 4, W // 4, cfg[-2]          # feature-map dims after the two pools
    flat_dim = Cf * Hf * Wf                       # 16 * 4 * 4 = 256 (torch C*H*W flatten)

    key, kx, kp = jax.random.split(key, 3)
    x = jax.random.normal(kx, (N, Cin, H, W), jnp.float32)
    torch_params = init_torch_params(kp, cfg, Cin, flat_dim, hidden, num_classes)
    kernel_params = prepare_kernel_params(torch_params, (Hf, Wf, Cf))

    out = jax.block_until_ready(vgg_forward(kernel_params, cfg, x))
    ref = jax.block_until_ready(vgg_reference(torch_params, cfg, x))

    assert out.shape == (N, num_classes), out.shape
    err = float(jnp.max(jnp.abs(out - ref)))
    assert jnp.allclose(out, ref, atol=2e-3, rtol=2e-2), f"mismatch: max abs err {err}"
    print("KERNEL_OK")
</pallas_src>

<mosaic_0001>
module attributes {stable_mosaic.version = 11 : i64} {
  func.func @conv3x3_kernel(%arg0: i32, %arg1: i32, %arg2: memref<1x16x16x4xbf16, #tpu.memory_space<vmem>>, %arg3: memref<36x8xbf16, #tpu.memory_space<vmem>>, %arg4: memref<1x8xf32, #tpu.memory_space<vmem>>, %arg5: memref<1x8x8x8xbf16, #tpu.memory_space<vmem>>, %arg6: memref<18x18x4xbf16, #tpu.memory_space<vmem>>) attributes {dimension_semantics = [#tpu.dimension_semantics<parallel>, #tpu.dimension_semantics<parallel>], iteration_bounds = array<i64: 1, 2>, scalar_prefetch = 0 : i64, scratch_operands = 1 : i64, tpu.core_type = #tpu.core_type<tc>, window_params = [{transform_indices = @transform_0, window_bounds = array<i64: 1, 16, 16, 4>}, {transform_indices = @transform_1, window_bounds = array<i64: 36, 8>}, {transform_indices = @transform_2, window_bounds = array<i64: 1, 8>}, {transform_indices = @transform_3, window_bounds = array<i64: 1, 8, 8, 8>}]} {
    %cst = arith.constant 0.000000e+00 : bf16
    %0 = vector.broadcast %cst : bf16 to vector<1x18x4xbf16>
    %cst_0 = arith.constant 0.000000e+00 : bf16
    %1 = vector.broadcast %cst_0 : bf16 to vector<18x1x4xbf16>
    %c0 = arith.constant 0 : index
    %c0_1 = arith.constant 0 : index
    %c0_2 = arith.constant 0 : index
    %2 = vector.load %arg6[%c0, %c0_1, %c0_2] : memref<18x18x4xbf16, #tpu.memory_space<vmem>>, vector<1x18x4xbf16>
    tpu.vector_store %arg6[%c0, %c0_1, %c0_2], %0 {strides = array<i32>} : memref<18x18x4xbf16, #tpu.memory_space<vmem>>, vector<1x18x4xbf16>,
    %c17 = arith.constant 17 : index
    %c0_3 = arith.constant 0 : index
    %c0_4 = arith.constant 0 : index
    %3 = vector.load %arg6[%c17, %c0_3, %c0_4] : memref<18x18x4xbf16, #tpu.memory_space<vmem>>, vector<1x18x4xbf16>
    tpu.vector_store %arg6[%c17, %c0_3, %c0_4], %0 {strides = array<i32>} : memref<18x18x4xbf16, #tpu.memory_space<vmem>>, vector<1x18x4xbf16>,
    %c0_5 = arith.constant 0 : index
    %c0_6 = arith.constant 0 : index
    %c0_7 = arith.constant 0 : index
    %4 = vector.load %arg6[%c0_5, %c0_6, %c0_7] : memref<18x18x4xbf16, #tpu.memory_space<vmem>>, vector<18x1x4xbf16>
    tpu.vector_store %arg6[%c0_5, %c0_6, %c0_7], %1 {strides = array<i32>} : memref<18x18x4xbf16, #tpu.memory_space<vmem>>, vector<18x1x4xbf16>,
    %c0_8 = arith.constant 0 : index
    %c17_9 = arith.constant 17 : index
    %c0_10 = arith.constant 0 : index
    %5 = vector.load %arg6[%c0_8, %c17_9, %c0_10] : memref<18x18x4xbf16, #tpu.memory_space<vmem>>, vector<18x1x4xbf16>
    tpu.vector_store %arg6[%c0_8, %c17_9, %c0_10], %1 {strides = array<i32>} : memref<18x18x4xbf16, #tpu.memory_space<vmem>>, vector<18x1x4xbf16>,
    %c0_11 = arith.constant 0 : index
    %c0_12 = arith.constant 0 : index
    %c0_13 = arith.constant 0 : index
    %c0_14 = arith.constant 0 : index
    %6 = vector.load %arg2[%c0_11, %c0_12, %c0_13, %c0_14] : memref<1x16x16x4xbf16, #tpu.memory_space<vmem>>, vector<1x16x16x4xbf16>
    %7 = vector.shape_cast %6 : vector<1x16x16x4xbf16> to vector<16x16x4xbf16>
    %c1 = arith.constant 1 : index
    %c1_15 = arith.constant 1 : index
    %c0_16 = arith.constant 0 : index
    %8 = vector.load %arg6[%c1, %c1_15, %c0_16] : memref<18x18x4xbf16, #tpu.memory_space<vmem>>, vector<16x16x4xbf16>
    tpu.vector_store %arg6[%c1, %c1_15, %c0_16], %7 {strides = array<i32>} : memref<18x18x4xbf16, #tpu.memory_space<vmem>>, vector<16x16x4xbf16>,
    %c0_17 = arith.constant 0 : index
    %c0_18 = arith.constant 0 : index
    %c0_19 = arith.constant 0 : index
    %9 = vector.load %arg6[%c0_17, %c0_18, %c0_19] : memref<18x18x4xbf16, #tpu.memory_space<vmem>>, vector<16x18x4xbf16>
    %10 = vector.extract_strided_slice %9 {offsets = [0, 0, 0], sizes = [16, 16, 4], strides = [1, 1, 1]} : vector<16x18x4xbf16> to vector<16x16x4xbf16>
    %11 = vector.extract_strided_slice %9 {offsets = [0, 1, 0], sizes = [16, 16, 4], strides = [1, 1, 1]} : vector<16x18x4xbf16> to vector<16x16x4xbf16>
    %12 = vector.extract_strided_slice %9 {offsets = [0, 2, 0], sizes = [16, 16, 4], strides = [1, 1, 1]} : vector<16x18x4xbf16> to vector<16x16x4xbf16>
    %c1_20 = arith.constant 1 : index
    %c0_21 = arith.constant 0 : index
    %c0_22 = arith.constant 0 : index
    %13 = vector.load %arg6[%c1_20, %c0_21, %c0_22] : memref<18x18x4xbf16, #tpu.memory_space<vmem>>, vector<16x18x4xbf16>
    %14 = vector.extract_strided_slice %13 {offsets = [0, 0, 0], sizes = [16, 16, 4], strides = [1, 1, 1]} : vector<16x18x4xbf16> to vector<16x16x4xbf16>
    %15 = vector.extract_strided_slice %13 {offsets = [0, 1, 0], sizes = [16, 16, 4], strides = [1, 1, 1]} : vector<16x18x4xbf16> to vector<16x16x4xbf16>
    %16 = vector.extract_strided_slice %13 {offsets = [0, 2, 0], sizes = [16, 16, 4], strides = [1, 1, 1]} : vector<16x18x4xbf16> to vector<16x16x4xbf16>
    %c2 = arith.constant 2 : index
    %c0_23 = arith.constant 0 : index
    %c0_24 = arith.constant 0 : index
    %17 = vector.load %arg6[%c2, %c0_23, %c0_24] : memref<18x18x4xbf16, #tpu.memory_space<vmem>>, vector<16x18x4xbf16>
    %18 = vector.extract_strided_slice %17 {offsets = [0, 0, 0], sizes = [16, 16, 4], strides = [1, 1, 1]} : vector<16x18x4xbf16> to vector<16x16x4xbf16>
    %19 = vector.extract_strided_slice %17 {offsets = [0, 1, 0], sizes = [16, 16, 4], strides = [1, 1, 1]} : vector<16x18x4xbf16> to vector<16x16x4xbf16>
    %20 = vector.extract_strided_slice %17 {offsets = [0, 2, 0], sizes = [16, 16, 4], strides = [1, 1, 1]} : vector<16x18x4xbf16> to vector<16x16x4xbf16>
    %21 = tpu.concatenate %10, %11, %12, %14, %15, %16, %18, %19, %20 in 2 : vector<16x16x4xbf16>, vector<16x16x4xbf16>, vector<16x16x4xbf16>, vector<16x16x4xbf16>, vector<16x16x4xbf16>, vector<16x16x4xbf16>, vector<16x16x4xbf16>, vector<16x16x4xbf16>, vector<16x16x4xbf16> -> vector<16x16x36xbf16>
    %22 = vector.shape_cast %21 : vector<16x16x36xbf16> to vector<256x36xbf16>
    %c0_25 = arith.constant 0 : index
    %c0_26 = arith.constant 0 : index
    %23 = vector.load %arg3[%c0_25, %c0_26] : memref<36x8xbf16, #tpu.memory_space<vmem>>, vector<36x8xbf16>
    %cst_27 = arith.constant dense<0.000000e+00> : vector<256x8xf32>
    %24 = tpu.matmul %22, %23, %cst_27 {dimension_numbers = #tpu.dot_dimension_numbers<[1], [0], [0], [1], [0, 0, 1, 1], [], []>} : vector<256x36xbf16>, vector<36x8xbf16>, vector<256x8xf32> -> vector<256x8xf32>
    %c0_28 = arith.constant 0 : index
    %c0_29 = arith.constant 0 : index
    %25 = vector.load %arg4[%c0_28, %c0_29] : memref<1x8xf32, #tpu.memory_space<vmem>>, vector<1x8xf32>
    %26 = vector.broadcast %25 : vector<1x8xf32> to vector<256x8xf32>
    %27 = arith.addf %24, %26 : vector<256x8xf32>
    %cst_30 = arith.constant 0.000000e+00 : f32
    %28 = vector.broadcast %cst_30 : f32 to vector<256x8xf32>
    %29 = arith.maximumf %27, %28 : vector<256x8xf32>
    %30 = vector.shape_cast %29 : vector<256x8xf32> to vector<8x2x8x2x8xf32>
    %cst_31 = arith.constant dense<0xFF800000> : vector<8x2x8x8xf32>
    %31 = vector.multi_reduction <maximumf>, %30, %cst_31 [3] : vector<8x2x8x2x8xf32> to vector<8x2x8x8xf32>
    %cst_32 = arith.constant dense<0xFF800000> : vector<8x8x8xf32>
    %32 = vector.multi_reduction <maximumf>, %31, %cst_32 [1] : vector<8x2x8x8xf32> to vector<8x8x8xf32>
    %33 = arith.truncf %32 : vector<8x8x8xf32> to vector<8x8x8xbf16>
    %c0_33 = arith.constant 0 : index
    %c0_34 = arith.constant 0 : index
    %c0_35 = arith.constant 0 : index
    %c0_36 = arith.constant 0 : index
    %34 = vector.load %arg5[%c0_33, %c0_34, %c0_35, %c0_36] : memref<1x8x8x8xbf16, #tpu.memory_space<vmem>>, vector<1x8x8x8xbf16>
    %35 = vector.shape_cast %34 : vector<1x8x8x8xbf16> to vector<8x8x8xbf16>
    %36 = vector.shape_cast %33 : vector<8x8x8xbf16> to vector<1x8x8x8xbf16>
    tpu.vector_store %arg5[%c0_33, %c0_34, %c0_35, %c0_36], %36 {strides = array<i32>} : memref<1x8x8x8xbf16, #tpu.memory_space<vmem>>, vector<1x8x8x8xbf16>,
    return
  }
  func.func @transform_0(%arg0: i32, %arg1: i32) -> (i32, i32, i32, i32) {
    %c0_i32 = arith.constant 0 : i32
    %c0_i32_0 = arith.constant 0 : i32
    %c0_i32_1 = arith.constant 0 : i32
    %c0_i32_2 = arith.constant 0 : i32
    return %arg1, %c0_i32, %c0_i32_0, %c0_i32_1 : i32, i32, i32, i32
  }
  func.func @transform_1(%arg0: i32, %arg1: i32) -> (i32, i32) {
    %c0_i32 = arith.constant 0 : i32
    %c0_i32_0 = arith.constant 0 : i32
    return %c0_i32, %arg0 : i32, i32
  }
  func.func @transform_2(%arg0: i32, %arg1: i32) -> (i32, i32) {
    %c0_i32 = arith.constant 0 : i32
    %c0_i32_0 = arith.constant 0 : i32
    return %c0_i32, %arg0 : i32, i32
  }
  func.func @transform_3(%arg0: i32, %arg1: i32) -> (i32, i32, i32, i32) {
    %c0_i32 = arith.constant 0 : i32
    %c0_i32_0 = arith.constant 0 : i32
    %c0_i32_1 = arith.constant 0 : i32
    return %arg1, %c0_i32, %c0_i32_0, %arg0 : i32, i32, i32, i32
  }
}

</mosaic_0001>

<llo_original>
// kernel: tpu_custom_call.1
$region0: #{tpu_custom_call.1}
  #allocation0 [shape = 'u32[]', space=smem, size = 0x4, offset = 0x4, fixed_abs, tag = 'smem constant byte address 0x4 - core index']
  #allocation1 [shape = 'u32[72,128]{1,0:T(1,128)}', space=vmem, size = 0x9000, scoped, tag = 'internal scratch']
  #allocation2 [shape = 'bf16[18,18,4]{2,1,0:T(8,128)(2,1)}', space=vmem, size = 0x1b000, scoped, tag = 'scratch operand']
  %s0 = inlined_call_operand.vmem [shape: bf16[2,16,16,4], index: 0, kind: input, shape index: {}]
  %s1 = inlined_call_operand.vmem [shape: bf16[36,8], index: 1, kind: input, shape index: {}]
  %s2 = inlined_call_operand.vmem [shape: f32[1,8], index: 2, kind: input, shape index: {}]
  %s3 = inlined_call_operand.hbm [shape: bf16[2,8,8,8], index: 3, kind: output, shape index: {}]
  %s4 = sld [smem:[#allocation0]]
  $region45: #{tpu_custom_call.1} parent=0
    _
  %s6 = ssub.s32 1, %s4
  %s7 = scalar_select 0, %s6, %s4
  $region1: #{tpu_custom_call.1} parent=0
    #allocation3 [shape = 'u8[32768]{0}', space=vmem, size = 0x8000, scoped, tag = 'output window, operand 0']
    #allocation4 [shape = 's32[2]{0}', space=sflag, size = 0x8, scoped, tag = 'scoped memory for tpu_custom_call.1']
    %8 = vsyncpa [#allocation4], 0
    %s9 = scalar_lea.sflag [#allocation4], 1
    %10 = vsyncpa %s9, 0
    loop: start=0, step=1, limit=4
    $region2: #{tpu_custom_call.1} parent=1 // loop_pre_header
      _
    $region3: #{tpu_custom_call.1} parent=1 // loop_header
      %s12 = sphi 0, %s16
      %p13 = scmp.ge.s32.totalorder %s12, 4
      %s19 = sphi 0, %s31
      %s20 = sphi 0, %s27
      %s21 = sphi 0, %s19
      %s22 = sphi 0, %s20
      %s23 = sphi 0, %s21
      %s24 = sphi 0, %s22
      %s34 = sphi 0, %s36
      %s37 = sphi 0, %s34
      %s38 = sphi 0, %s37
      %s54 = sphi 0, %s38
      %s60 = sphi 0, %s62
      %s63 = sphi 0, %s60
      %s64 = sphi 0, %s63
      %s80 = sphi 0, %s64
      %s86 = sphi 0, %s88
      %s89 = sphi 0, %s86
      %s90 = sphi 0, %s89
      %s106 = sphi 0, %s90
      %s114 = sphi 0, %s116
      %s117 = sphi 0, %s114
      %s118 = sphi 0, %s117
      %s134 = sphi 0, %s118
    $region4: #{tpu_custom_call.1} parent=1 // loop_header_branch
      %15 = sbr.rel (%p13) target = $region8
    $region5: #{tpu_custom_call.1} parent=1 // loop_body
      %s17 = ssub.s32 %s12, 1
      %s18 = ssub.s32 %s12, 2
      %s25 = sadd.s32 1, %s20
      %p26 = scmp.ge.s32.totalorder %s25, 2
      %s27 = scalar_select %p26, 0, %s25
      %s28 = sadd.s32 1, %s19
      %s29 = scalar_select %p26, %s28, %s19
      %p30 = scmp.ge.s32.totalorder %s29, 1
      %s31 = scalar_select %p30, 0, %s29
      %s32 = ssub.s32 %s20, %s27
      %p33 = scmp.eq.s32.totalorder %s32, 0
      %s35 = sadd.s32 %s34, 1
      %s36 = scalar_select %p33, %s34, %s35
      %p39 = pneg %p33
      %p40 = scmp.eq.s32.totalorder %s12, 1
      %p41 = por %p39, %p40
      %p42 = scmp.ne.s32.totalorder %s34, %s37
      %p43 = scmp.eq.s32.totalorder %s12, 0
      %p44 = por %p42, %p43
      %p45 = scmp.ne.s32.totalorder %s34, %s37
      %p46 = scmp.eq.s32.totalorder %s17, 1
      %p47 = por %p45, %p46
      %p48 = scmp.ne.s32.totalorder %s37, %s38
      %p49 = scmp.eq.s32.totalorder %s17, 0
      %p50 = por %p48, %p49
      %p51 = scmp.ne.s32.totalorder %s37, %s38
      %p52 = scmp.eq.s32.totalorder %s18, 1
      %p53 = por %p51, %p52
      %p55 = scmp.ne.s32.totalorder %s38, %s54
      %p56 = scmp.eq.s32.totalorder %s18, 0
      %p57 = por %p55, %p56
      %s58 = ssub.s32 %s19, %s31
      %p59 = scmp.eq.s32.totalorder %s58, 0
      %s61 = sadd.s32 %s60, 1
      %s62 = scalar_select %p59, %s60, %s61
      %p65 = pneg %p59
      %p66 = scmp.eq.s32.totalorder %s12, 1
      %p67 = por %p65, %p66
      %p68 = scmp.ne.s32.totalorder %s60, %s63
      %p69 = scmp.eq.s32.totalorder %s12, 0
      %p70 = por %p68, %p69
      %p71 = scmp.ne.s32.totalorder %s60, %s63
      %p72 = scmp.eq.s32.totalorder %s17, 1
      %p73 = por %p71, %p72
      %p74 = scmp.ne.s32.totalorder %s63, %s64
      %p75 = scmp.eq.s32.totalorder %s17, 0
      %p76 = por %p74, %p75
      %p77 = scmp.ne.s32.totalorder %s63, %s64
      %p78 = scmp.eq.s32.totalorder %s18, 1
      %p79 = por %p77, %p78
      %p81 = scmp.ne.s32.totalorder %s64, %s80
      %p82 = scmp.eq.s32.totalorder %s18, 0
      %p83 = por %p81, %p82
      %s84 = ssub.s32 %s19, %s31
      %p85 = scmp.eq.s32.totalorder %s84, 0
      %s87 = sadd.s32 %s86, 1
      %s88 = scalar_select %p85, %s86, %s87
      %p91 = pneg %p85
      %p92 = scmp.eq.s32.totalorder %s12, 1
      %p93 = por %p91, %p92
      %p94 = scmp.ne.s32.totalorder %s86, %s89
      %p95 = scmp.eq.s32.totalorder %s12, 0
      %p96 = por %p94, %p95
      %p97 = scmp.ne.s32.totalorder %s86, %s89
      %p98 = scmp.eq.s32.totalorder %s17, 1
      %p99 = por %p97, %p98
      %p100 = scmp.ne.s32.totalorder %s89, %s90
      %p101 = scmp.eq.s32.totalorder %s17, 0
      %p102 = por %p100, %p101
      %p103 = scmp.ne.s32.totalorder %s89, %s90
      %p104 = scmp.eq.s32.totalorder %s18, 1
      %p105 = por %p103, %p104
      %p107 = scmp.ne.s32.totalorder %s90, %s106
      %p108 = scmp.eq.s32.totalorder %s18, 0
      %p109 = por %p107, %p108
      %s110 = ssub.s32 %s20, %s27
      %s111 = ssub.s32 %s19, %s31
      %s112 = sor.u32 %s110, %s111
      %p113 = scmp.eq.s32.totalorder %s112, 0
      %s115 = sadd.s32 %s114, 1
      %s116 = scalar_select %p113, %s114, %s115
      %p119 = pneg %p113
      %p120 = scmp.eq.s32.totalorder %s12, 1
      %p121 = por %p119, %p120
      %p122 = scmp.ne.s32.totalorder %s114, %s117
      %p123 = scmp.eq.s32.totalorder %s12, 0
      %p124 = por %p122, %p123
      %p125 = scmp.ne.s32.totalorder %s114, %s117
      %p126 = scmp.eq.s32.totalorder %s17, 1
      %p127 = por %p125, %p126
      %p128 = scmp.ne.s32.totalorder %s117, %s118
      %p129 = scmp.eq.s32.totalorder %s17, 0
      %p130 = por %p128, %p129
      %p131 = scmp.ne.s32.totalorder %s117, %s118
      %p132 = scmp.eq.s32.totalorder %s18, 1
      %p133 = por %p131, %p132
      %p135 = scmp.ne.s32.totalorder %s118, %s134
      %p136 = scmp.eq.s32.totalorder %s18, 0
      %p137 = por %p135, %p136
      %p138 = scmp.le.s32.totalorder 1, %s12
      %p139 = scmp.lt.s32.totalorder %s12, 3
      %p140 = pnand %p138, %p139
      %p141 = pneg %p140
      // Predicated region
      $region9: #{tpu_custom_call.1} parent=5 // pred_check
        _
      $region10: #{tpu_custom_call.1} parent=5 // pred_check_branch
        %143 = sbr.rel (%p140) target = $region12
      $region11: #{tpu_custom_call.1} parent=5 // pred_region
        %s144 = ssub.s32 %s12, 1
        // Predicated region
        $region13: #{tpu_custom_call.1} parent=11 // pred_check
          %p145 = pneg %p76
        $region14: #{tpu_custom_call.1} parent=11 // pred_check_branch
          %147 = sbr.rel (%p145) target = $region16
        $region15: #{tpu_custom_call.1} parent=11 // pred_region
          %p148 = scmp.lt.s32.totalorder %s21, 0
          %s149 = scalar_select %p148, %s21, 0
          %s150 = smul.addr %s149, 4
          %s151 = scalar_lea.vmem %s1, %s150
        $region16: #{tpu_custom_call.1} parent=11 // pred_fallthru
          _
        // Predicated region
        $region17: #{tpu_custom_call.1} parent=11 // pred_check
          %p152 = pneg %p102
        $region18: #{tpu_custom_call.1} parent=11 // pred_check_branch
          %154 = sbr.rel (%p152) target = $region20
        $region19: #{tpu_custom_call.1} parent=11 // pred_region
          %p155 = scmp.lt.s32.totalorder %s21, 0
          %s156 = scalar_select %p155, %s21, 0
          %s157 = scalar_lea.vmem %s2, %s156
        $region20: #{tpu_custom_call.1} parent=11 // pred_fallthru
          _
      $region12: #{tpu_custom_call.1} parent=5 // pred_fallthru
        _
      %p158 = scmp.lt.s32.totalorder %s12, 2
      // Predicated region
      $region21: #{tpu_custom_call.1} parent=5 // pred_check
        %p159 = pneg %p158
      $region22: #{tpu_custom_call.1} parent=5 // pred_check_branch
        %161 = sbr.rel (%p159) target = $region24
      $region23: #{tpu_custom_call.1} parent=5 // pred_region
        // Predicated region
        $region25: #{tpu_custom_call.1} parent=23 // pred_check
          %p162 = pneg %p44
        $region26: #{tpu_custom_call.1} parent=23 // pred_check_branch
          %164 = sbr.rel (%p162) target = $region28
        $region27: #{tpu_custom_call.1} parent=23 // pred_region
          %p165 = scmp.lt.s32.totalorder %s20, 1
          %s166 = scalar_select %p165, %s20, 1
          %s167 = smul.addr %s166, 32
          %s168 = smul.addr %s167, 4
          %s169 = scalar_lea.vmem %s0, %s168
        $region28: #{tpu_custom_call.1} parent=23 // pred_fallthru
          _
      $region24: #{tpu_custom_call.1} parent=5 // pred_fallthru
        _
      %p170 = scmp.le.s32.totalorder 1, %s12
      %p171 = scmp.lt.s32.totalorder %s12, 3
      %p172 = pnand %p170, %p171
      %p173 = pneg %p172
      // Predicated region
      $region29: #{tpu_custom_call.1} parent=5 // pred_check
        _
      $region30: #{tpu_custom_call.1} parent=5 // pred_check_branch
        %175 = sbr.rel (%p172) target = $region32
      $region31: #{tpu_custom_call.1} parent=5 // pred_region
        %s176 = ssub.s32 %s12, 1
        %p177 = scmp.lt.s32.totalorder %s22, 1
        %s178 = scalar_select %p177, %s22, 1
        %s179 = smul.addr %s178, 32
        %s180 = smul.addr %s179, 4
        %s181 = scalar_lea.vmem %s0, %s180
        %p182 = pneg %p50
        %p183 = pneg %p47
        %p184 = scmp.lt.s32.totalorder %s21, 0
        %s185 = scalar_select %p184, %s21, 0
        %s186 = smul.addr %s185, 4
        %s187 = scalar_lea.vmem %s1, %s186
        %p188 = pneg %p76
        %p189 = pneg %p73
        %p190 = scmp.lt.s32.totalorder %s21, 0
        %s191 = scalar_select %p190, %s21, 0
        %s192 = scalar_lea.vmem %s2, %s191
        %p193 = pneg %p102
        %p194 = pneg %p99
        %p195 = pneg %p130
        %p196 = pneg %p127
        %s197 = sand.u32 %s117, 1
        %s198 = scalar_lea.sflag [#allocation4], %s197
        %s199 = sand.u32 %s117, 1
        %s200 = smul.addr %s199, 32
        %s201 = scalar_lea.vmem [#allocation3], %s200
        %p202 = scmp.lt.s32.totalorder %s22, 1
        %s203 = scalar_select %p202, %s22, 1
        %s204 = smul.addr %s203, 32
        %s205 = smul.addr %s204, 4
        %s206 = scalar_lea.vmem %s0, %s205
        %p207 = scmp.lt.s32.totalorder %s21, 0
        %s208 = scalar_select %p207, %s21, 0
        %s209 = smul.addr %s208, 4
        %s210 = scalar_lea.vmem %s1, %s209
        %p211 = scmp.lt.s32.totalorder %s21, 0
        %s212 = scalar_select %p211, %s21, 0
        %s213 = scalar_lea.vmem %s2, %s212
        %vm215 = vcmask 27648
        %216 = vst.msk [vmem:[#allocation2] sm:$0xf] %vm215, 0
        %217 = vst.msk [vmem:[#allocation2 + $0x4] sm:$0xf] %vm215, 0
        %vm218 = vcmask 24576
        %219 = vst.msk [vmem:[#allocation2 + $0x8] sm:$0x1] %vm218, 0
        %s220 = scalar_lea.vmem [#allocation2], 204
        %221 = vst.msk [vmem:[%s220] sm:$0xf] %vm215, 0
        %222 = vst.msk [vmem:[%s220 + $0x4] sm:$0xf] %vm215, 0
        %223 = vst.msk [vmem:[%s220 + $0x8] sm:$0x1] %vm218, 0
        %vm224 = vcmask 24576
        %vm225 = vsmask.f32 256
        %vm226 = vmand %vm224, %vm225
        %v227 = vld [vmem:[#allocation2] sm:$0x1]
        %v228 = vsel %vm226, 0, %v227
        %229 = vst [vmem:[#allocation2] sm:$0x1] %v228
        %v230 = vld [vmem:[#allocation2 + $0xc] sm:$0x1]
        %v231 = vsel %vm226, 0, %v230
        %232 = vst [vmem:[#allocation2 + $0xc] sm:$0x1] %v231
        %v233 = vld [vmem:[#allocation2 + $0x18] sm:$0x1]
        %v234 = vsel %vm226, 0, %v233
        %235 = vst [vmem:[#allocation2 + $0x18] sm:$0x1] %v234
        %v236 = vld [vmem:[#allocation2 + $0x24] sm:$0x1]
        %v237 = vsel %vm226, 0, %v236
        %238 = vst [vmem:[#allocation2 + $0x24] sm:$0x1] %v237
        %v239 = vld [vmem:[#allocation2 + $0x30] sm:$0x1]
        %v240 = vsel %vm226, 0, %v239
        %241 = vst [vmem:[#allocation2 + $0x30] sm:$0x1] %v240
        %v242 = vld [vmem:[#allocation2 + $0x3c] sm:$0x1]
        %v243 = vsel %vm226, 0, %v242
        %244 = vst [vmem:[#allocation2 + $0x3c] sm:$0x1] %v243
        %v245 = vld [vmem:[#allocation2 + $0x48] sm:$0x1]
        %v246 = vsel %vm226, 0, %v245
        %247 = vst [vmem:[#allocation2 + $0x48] sm:$0x1] %v246
        %v248 = vld [vmem:[#allocation2 + $0x54] sm:$0x1]
        %v249 = vsel %vm226, 0, %v248
        %250 = vst [vmem:[#allocation2 + $0x54] sm:$0x1] %v249
        %v251 = vld [vmem:[#allocation2 + $0x60] sm:$0x1]
        %v252 = vsel %vm226, 0, %v251
        %253 = vst [vmem:[#allocation2 + $0x60] sm:$0x1] %v252
        %v254 = vld [vmem:[#allocation2 + $0x6c] sm:$0x1]
        %v255 = vsel %vm226, 0, %v254
        %256 = vst [vmem:[#allocation2 + $0x6c] sm:$0x1] %v255
        %v257 = vld [vmem:[#allocation2 + $0x78] sm:$0x1]
        %v258 = vsel %vm226, 0, %v257
        %259 = vst [vmem:[#allocation2 + $0x78] sm:$0x1] %v258
        %v260 = vld [vmem:[#allocation2 + $0x84] sm:$0x1]
        %v261 = vsel %vm226, 0, %v260
        %262 = vst [vmem:[#allocation2 + $0x84] sm:$0x1] %v261
        %v263 = vld [vmem:[#allocation2 + $0x90] sm:$0x1]
        %v264 = vsel %vm226, 0, %v263
        %265 = vst [vmem:[#allocation2 + $0x90] sm:$0x1] %v264
        %v266 = vld [vmem:[#allocation2 + $0x9c] sm:$0x1]
        %v267 = vsel %vm226, 0, %v266
        %268 = vst [vmem:[#allocation2 + $0x9c] sm:$0x1] %v267
        %v269 = vld [vmem:[#allocation2 + $0xa8] sm:$0x1]
        %v270 = vsel %vm226, 0, %v269
        %271 = vst [vmem:[#allocation2 + $0xa8] sm:$0x1] %v270
        %v272 = vld [vmem:[#allocation2 + $0xb4] sm:$0x1]
        %v273 = vsel %vm226, 0, %v272
        %274 = vst [vmem:[#allocation2 + $0xb4] sm:$0x1] %v273
        %v275 = vld [vmem:[#allocation2 + $0xc0] sm:$0x1]
        %v276 = vsel %vm226, 0, %v275
        %277 = vst [vmem:[#allocation2 + $0xc0] sm:$0x1] %v276
        %v278 = vld [vmem:[#allocation2 + $0xcc] sm:$0x1]
        %v279 = vsel %vm226, 0, %v278
        %280 = vst [vmem:[#allocation2 + $0xcc] sm:$0x1] %v279
        %vm281 = vsmask.f32 7938
        %vm282 = vmand %vm224, %vm281
        %v283 = vld [vmem:[#allocation2 + $0x8] sm:$0x1]
        %v284 = vsel %vm282, 0, %v283
        %285 = vst [vmem:[#allocation2 + $0x8] sm:$0x1] %v284
        %v286 = vld [vmem:[#allocation2 + $0x14] sm:$0x1]
        %v287 = vsel %vm282, 0, %v286
        %288 = vst [vmem:[#allocation2 + $0x14] sm:$0x1] %v287
        %v289 = vld [vmem:[#allocation2 + $0x20] sm:$0x1]
        %v290 = vsel %vm282, 0, %v289
        %291 = vst [vmem:[#allocation2 + $0x20] sm:$0x1] %v290
        %v292 = vld [vmem:[#allocation2 + $0x2c] sm:$0x1]
        %v293 = vsel %vm282, 0, %v292
        %294 = vst [vmem:[#allocation2 + $0x2c] sm:$0x1] %v293
        %v295 = vld [vmem:[#allocation2 + $0x38] sm:$0x1]
        %v296 = vsel %vm282, 0, %v295
        %297 = vst [vmem:[#allocation2 + $0x38] sm:$0x1] %v296
        %v298 = vld [vmem:[#allocation2 + $0x44] sm:$0x1]
        %v299 = vsel %vm282, 0, %v298
        %300 = vst [vmem:[#allocation2 + $0x44] sm:$0x1] %v299
        %v301 = vld [vmem:[#allocation2 + $0x50] sm:$0x1]
        %v302 = vsel %vm282, 0, %v301
        %303 = vst [vmem:[#allocation2 + $0x50] sm:$0x1] %v302
        %v304 = vld [vmem:[#allocation2 + $0x5c] sm:$0x1]
        %v305 = vsel %vm282, 0, %v304
        %306 = vst [vmem:[#allocation2 + $0x5c] sm:$0x1] %v305
        %v307 = vld [vmem:[#allocation2 + $0x68] sm:$0x1]
        %v308 = vsel %vm282, 0, %v307
        %309 = vst [vmem:[#allocation2 + $0x68] sm:$0x1] %v308
        %v310 = vld [vmem:[#allocation2 + $0x74] sm:$0x1]
        %v311 = vsel %vm282, 0, %v310
        %312 = vst [vmem:[#allocation2 + $0x74] sm:$0x1] %v311
        %v313 = vld [vmem:[#allocation2 + $0x80] sm:$0x1]
        %v314 = vsel %vm282, 0, %v313
        %315 = vst [vmem:[#allocation2 + $0x80] sm:$0x1] %v314
        %v316 = vld [vmem:[#allocation2 + $0x8c] sm:$0x1]
        %v317 = vsel %vm282, 0, %v316
        %318 = vst [vmem:[#allocation2 + $0x8c] sm:$0x1] %v317
        %v319 = vld [vmem:[#allocation2 + $0x98] sm:$0x1]
        %v320 = vsel %vm282, 0, %v319
        %321 = vst [vmem:[#allocation2 + $0x98] sm:$0x1] %v320
        %v322 = vld [vmem:[#allocation2 + $0xa4] sm:$0x1]
        %v323 = vsel %vm282, 0, %v322
        %324 = vst [vmem:[#allocation2 + $0xa4] sm:$0x1] %v323
        %v325 = vld [vmem:[#allocation2 + $0xb0] sm:$0x1]
        %v326 = vsel %vm282, 0, %v325
        %327 = vst [vmem:[#allocation2 + $0xb0] sm:$0x1] %v326
        %v328 = vld [vmem:[#allocation2 + $0xbc] sm:$0x1]
        %v329 = vsel %vm282, 0, %v328
        %330 = vst [vmem:[#allocation2 + $0xbc] sm:$0x1] %v329
        %v331 = vld [vmem:[#allocation2 + $0xc8] sm:$0x1]
        %v332 = vsel %vm282, 0, %v331
        %333 = vst [vmem:[#allocation2 + $0xc8] sm:$0x1] %v332
        %v334 = vld [vmem:[#allocation2 + $0xd4] sm:$0x1]
        %v335 = vsel %vm282, 0, %v334
        %336 = vst [vmem:[#allocation2 + $0xd4] sm:$0x1] %v335
        %v337 = vld [vmem:[%s206] sm:$0xf]
        %v338 = vld [vmem:[%s206 + $0x4] sm:$0xf]
        %v339 = vld [vmem:[%s206 + $0x8] sm:$0xf]
        %v340 = vld [vmem:[%s206 + $0xc] sm:$0xf]
        %v341 = vld [vmem:[%s206 + $0x10] sm:$0xf]
        %v342 = vld [vmem:[%s206 + $0x14] sm:$0xf]
        %v343 = vld [vmem:[%s206 + $0x18] sm:$0xf]
        %v344 = vld [vmem:[%s206 + $0x1c] sm:$0xf]
        %v345 = vld [vmem:[%s206 + $0x20] sm:$0xf]
        %v346 = vld [vmem:[%s206 + $0x24] sm:$0xf]
        %v347 = vld [vmem:[%s206 + $0x28] sm:$0xf]
        %v348 = vld [vmem:[%s206 + $0x2c] sm:$0xf]
        %v349 = vld [vmem:[%s206 + $0x30] sm:$0xf]
        %v350 = vld [vmem:[%s206 + $0x34] sm:$0xf]
        %v351 = vld [vmem:[%s206 + $0x38] sm:$0xf]
        %v352 = vld [vmem:[%s206 + $0x3c] sm:$0xf]
        %v353 = vld [vmem:[%s206 + $0x40] sm:$0xf]
        %v354 = vld [vmem:[%s206 + $0x44] sm:$0xf]
        %v355 = vld [vmem:[%s206 + $0x48] sm:$0xf]
        %v356 = vld [vmem:[%s206 + $0x4c] sm:$0xf]
        %v357 = vld [vmem:[%s206 + $0x50] sm:$0xf]
        %v358 = vld [vmem:[%s206 + $0x54] sm:$0xf]
        %v359 = vld [vmem:[%s206 + $0x58] sm:$0xf]
        %v360 = vld [vmem:[%s206 + $0x5c] sm:$0xf]
        %v361 = vld [vmem:[%s206 + $0x60] sm:$0xf]
        %v362 = vld [vmem:[%s206 + $0x64] sm:$0xf]
        %v363 = vld [vmem:[%s206 + $0x68] sm:$0xf]
        %v364 = vld [vmem:[%s206 + $0x6c] sm:$0xf]
        %v365 = vld [vmem:[%s206 + $0x70] sm:$0xf]
        %v366 = vld [vmem:[%s206 + $0x74] sm:$0xf]
        %v367 = vld [vmem:[%s206 + $0x78] sm:$0xf]
        %v368 = vld [vmem:[%s206 + $0x7c] sm:$0xf]
        %vm369 = vsmask.f32 4368
        %vm370 = vmor %vm225, %vm369
        %v372 = vshrl.u32 %v337, 16
        %v374 = vrot.slane %v372, 7
        %v375 = vshll.u32 %v337, 16
        %v377 = vor.u32 %v374, %v375
        %v378 = vrot.slane %v374, 4
        %v380 = vshrl.u32 %v338, 16
        %v382 = vrot.slane %v380, 7
        %v383 = vshll.u32 %v338, 16
        %v385 = vor.u32 %v382, %v383
        %v386 = vsel %vm370, %v378, %v385
        %v387 = vrot.slane %v382, 4
        %v389 = vshrl.u32 %v339, 16
        %v391 = vrot.slane %v389, 7
        %v392 = vshll.u32 %v339, 16
        %v394 = vor.u32 %v391, %v392
        %v395 = vrot.slane %v391, 4
        %v397 = vshrl.u32 %v340, 16
        %v399 = vrot.slane %v397, 7
        %v400 = vshll.u32 %v340, 16
        %v402 = vor.u32 %v399, %v400
        %v403 = vsel %vm370, %v395, %v402
        %v404 = vrot.slane %v399, 4
        %v406 = vshrl.u32 %v341, 16
        %v408 = vrot.slane %v406, 7
        %v409 = vshll.u32 %v341, 16
        %v411 = vor.u32 %v408, %v409
        %v412 = vrot.slane %v408, 4
        %v414 = vshrl.u32 %v342, 16
        %v416 = vrot.slane %v414, 7
        %v417 = vshll.u32 %v342, 16
        %v419 = vor.u32 %v416, %v417
        %v420 = vsel %vm370, %v412, %v419
        %v421 = vrot.slane %v416, 4
        %v423 = vshrl.u32 %v343, 16
        %v425 = vrot.slane %v423, 7
        %v426 = vshll.u32 %v343, 16
        %v428 = vor.u32 %v425, %v426
        %v429 = vrot.slane %v425, 4
        %v431 = vshrl.u32 %v344, 16
        %v433 = vrot.slane %v431, 7
        %v434 = vshll.u32 %v344, 16
        %v436 = vor.u32 %v433, %v434
        %v437 = vsel %vm370, %v429, %v436
        %v438 = vrot.slane %v433, 4
        %v440 = vshrl.u32 %v345, 16
        %v442 = vrot.slane %v440, 7
        %v443 = vshll.u32 %v345, 16
        %v445 = vor.u32 %v442, %v443
        %v446 = vrot.slane %v442, 4
        %v448 = vshrl.u32 %v346, 16
        %v450 = vrot.slane %v448, 7
        %v451 = vshll.u32 %v346, 16
        %v453 = vor.u32 %v450, %v451
        %v454 = vsel %vm370, %v446, %v453
        %v455 = vrot.slane %v450, 4
        %v457 = vshrl.u32 %v347, 16
        %v459 = vrot.slane %v457, 7
        %v460 = vshll.u32 %v347, 16
        %v462 = vor.u32 %v459, %v460
        %v463 = vrot.slane %v459, 4
        %v465 = vshrl.u32 %v348, 16
        %v467 = vrot.slane %v465, 7
        %v468 = vshll.u32 %v348, 16
        %v470 = vor.u32 %v467, %v468
        %v471 = vsel %vm370, %v463, %v470
        %v472 = vrot.slane %v467, 4
        %v474 = vshrl.u32 %v349, 16
        %v476 = vrot.slane %v474, 7
        %v477 = vshll.u32 %v349, 16
        %v479 = vor.u32 %v476, %v477
        %v480 = vrot.slane %v476, 4
        %v482 = vshrl.u32 %v350, 16
        %v484 = vrot.slane %v482, 7
        %v485 = vshll.u32 %v350, 16
        %v487 = vor.u32 %v484, %v485
        %v488 = vsel %vm370, %v480, %v487
        %v489 = vrot.slane %v484, 4
        %v491 = vshrl.u32 %v351, 16
        %v493 = vrot.slane %v491, 7
        %v494 = vshll.u32 %v351, 16
        %v496 = vor.u32 %v493, %v494
        %v497 = vrot.slane %v493, 4
        %v499 = vshrl.u32 %v352, 16
        %v501 = vrot.slane %v499, 7
        %v502 = vshll.u32 %v352, 16
        %v504 = vor.u32 %v501, %v502
        %v505 = vsel %vm370, %v497, %v504
        %v506 = vrot.slane %v501, 4
        %v508 = vshrl.u32 %v353, 16
        %v510 = vrot.slane %v508, 7
        %v511 = vshll.u32 %v353, 16
        %v513 = vor.u32 %v510, %v511
        %v514 = vrot.slane %v510, 4
        %v516 = vshrl.u32 %v354, 16
        %v518 = vrot.slane %v516, 7
        %v519 = vshll.u32 %v354, 16
        %v521 = vor.u32 %v518, %v519
        %v522 = vsel %vm370, %v514, %v521
        %v523 = vrot.slane %v518, 4
        %v525 = vshrl.u32 %v355, 16
        %v527 = vrot.slane %v525, 7
        %v528 = vshll.u32 %v355, 16
        %v530 = vor.u32 %v527, %v528
        %v531 = vrot.slane %v527, 4
        %v533 = vshrl.u32 %v356, 16
        %v535 = vrot.slane %v533, 7
        %v536 = vshll.u32 %v356, 16
        %v538 = vor.u32 %v535, %v536
        %v539 = vsel %vm370, %v531, %v538
        %v540 = vrot.slane %v535, 4
        %v542 = vshrl.u32 %v357, 16
        %v544 = vrot.slane %v542, 7
        %v545 = vshll.u32 %v357, 16
        %v547 = vor.u32 %v544, %v545
        %v548 = vrot.slane %v544, 4
        %v550 = vshrl.u32 %v358, 16
        %v552 = vrot.slane %v550, 7
        %v553 = vshll.u32 %v358, 16
        %v555 = vor.u32 %v552, %v553
        %v556 = vsel %vm370, %v548, %v555
        %v557 = vrot.slane %v552, 4
        %v559 = vshrl.u32 %v359, 16
        %v561 = vrot.slane %v559, 7
        %v562 = vshll.u32 %v359, 16
        %v564 = vor.u32 %v561, %v562
        %v565 = vrot.slane %v561, 4
        %v567 = vshrl.u32 %v360, 16
        %v569 = vrot.slane %v567, 7
        %v570 = vshll.u32 %v360, 16
        %v572 = vor.u32 %v569, %v570
        %v573 = vsel %vm370, %v565, %v572
        %v574 = vrot.slane %v569, 4
        %v576 = vshrl.u32 %v361, 16
        %v578 = vrot.slane %v576, 7
        %v579 = vshll.u32 %v361, 16
        %v581 = vor.u32 %v578, %v579
        %v582 = vrot.slane %v578, 4
        %v584 = vshrl.u32 %v362, 16
        %v586 = vrot.slane %v584, 7
        %v587 = vshll.u32 %v362, 16
        %v589 = vor.u32 %v586, %v587
        %v590 = vsel %vm370, %v582, %v589
        %v591 = vrot.slane %v586, 4
        %v593 = vshrl.u32 %v363, 16
        %v595 = vrot.slane %v593, 7
        %v596 = vshll.u32 %v363, 16
        %v598 = vor.u32 %v595, %v596
        %v599 = vrot.slane %v595, 4
        %v601 = vshrl.u32 %v364, 16
        %v603 = vrot.slane %v601, 7
        %v604 = vshll.u32 %v364, 16
        %v606 = vor.u32 %v603, %v604
        %v607 = vsel %vm370, %v599, %v606
        %v608 = vrot.slane %v603, 4
        %v610 = vshrl.u32 %v365, 16
        %v612 = vrot.slane %v610, 7
        %v613 = vshll.u32 %v365, 16
        %v615 = vor.u32 %v612, %v613
        %v616 = vrot.slane %v612, 4
        %v618 = vshrl.u32 %v366, 16
        %v620 = vrot.slane %v618, 7
        %v621 = vshll.u32 %v366, 16
        %v623 = vor.u32 %v620, %v621
        %v624 = vsel %vm370, %v616, %v623
        %v625 = vrot.slane %v620, 4
        %v627 = vshrl.u32 %v367, 16
        %v629 = vrot.slane %v627, 7
        %v630 = vshll.u32 %v367, 16
        %v632 = vor.u32 %v629, %v630
        %v633 = vrot.slane %v629, 4
        %v635 = vshrl.u32 %v368, 16
        %v637 = vrot.slane %v635, 7
        %v638 = vshll.u32 %v368, 16
        %v640 = vor.u32 %v637, %v638
        %v641 = vsel %vm370, %v633, %v640
        %v642 = vrot.slane %v637, 4
        %s691 = scalar_lea.vmem [#allocation2], 12
        %vm692 = vcmask 27648
        %vm693 = vmand %vm692, %vm281
        %v694 = vld [vmem:[%s691] sm:$0xf]
        %v695 = vsel %vm693, %v377, %v694
        %696 = vst [vmem:[%s691] sm:$0xf] %v695
        %697 = vst.msk [vmem:[%s691 + $0x4] sm:$0xf] %vm215, %v386
        %v698 = vld [vmem:[%s691 + $0x8] sm:$0x1]
        %v699 = vsel %vm226, %v387, %v698
        %700 = vst [vmem:[%s691 + $0x8] sm:$0x1] %v699
        %v701 = vld [vmem:[%s691 + $0xc] sm:$0xf]
        %v702 = vsel %vm693, %v394, %v701
        %703 = vst [vmem:[%s691 + $0xc] sm:$0xf] %v702
        %704 = vst.msk [vmem:[%s691 + $0x10] sm:$0xf] %vm215, %v403
        %v705 = vld [vmem:[%s691 + $0x14] sm:$0x1]
        %v706 = vsel %vm226, %v404, %v705
        %707 = vst [vmem:[%s691 + $0x14] sm:$0x1] %v706
        %v708 = vld [vmem:[%s691 + $0x18] sm:$0xf]
        %v709 = vsel %vm693, %v411, %v708
        %710 = vst [vmem:[%s691 + $0x18] sm:$0xf] %v709
        %711 = vst.msk [vmem:[%s691 + $0x1c] sm:$0xf] %vm215, %v420
        %v712 = vld [vmem:[%s691 + $0x20] sm:$0x1]
        %v713 = vsel %vm226, %v421, %v712
        %714 = vst [vmem:[%s691 + $0x20] sm:$0x1] %v713
        %v715 = vld [vmem:[%s691 + $0x24] sm:$0xf]
        %v716 = vsel %vm693, %v428, %v715
        %717 = vst [vmem:[%s691 + $0x24] sm:$0xf] %v716
        %718 = vst.msk [vmem:[%s691 + $0x28] sm:$0xf] %vm215, %v437
        %v719 = vld [vmem:[%s691 + $0x2c] sm:$0x1]
        %v720 = vsel %vm226, %v438, %v719
        %721 = vst [vmem:[%s691 + $0x2c] sm:$0x1] %v720
        %v722 = vld [vmem:[%s691 + $0x30] sm:$0xf]
        %v723 = vsel %vm693, %v445, %v722
        %724 = vst [vmem:[%s691 + $0x30] sm:$0xf] %v723
        %725 = vst.msk [vmem:[%s691 + $0x34] sm:$0xf] %vm215, %v454
        %v726 = vld [vmem:[%s691 + $0x38] sm:$0x1]
        %v727 = vsel %vm226, %v455, %v726
        %728 = vst [vmem:[%s691 + $0x38] sm:$0x1] %v727
        %v729 = vld [vmem:[%s691 + $0x3c] sm:$0xf]
        %v730 = vsel %vm693, %v462, %v729
        %731 = vst [vmem:[%s691 + $0x3c] sm:$0xf] %v730
        %732 = vst.msk [vmem:[%s691 + $0x40] sm:$0xf] %vm215, %v471
        %v733 = vld [vmem:[%s691 + $0x44] sm:$0x1]
        %v734 = vsel %vm226, %v472, %v733
        %735 = vst [vmem:[%s691 + $0x44] sm:$0x1] %v734
        %v736 = vld [vmem:[%s691 + $0x48] sm:$0xf]
        %v737 = vsel %vm693, %v479, %v736
        %738 = vst [vmem:[%s691 + $0x48] sm:$0xf] %v737
        %739 = vst.msk [vmem:[%s691 + $0x4c] sm:$0xf] %vm215, %v488
        %v740 = vld [vmem:[%s691 + $0x50] sm:$0x1]
        %v741 = vsel %vm226, %v489, %v740
        %742 = vst [vmem:[%s691 + $0x50] sm:$0x1] %v741
        %v743 = vld [vmem:[%s691 + $0x54] sm:$0xf]
        %v744 = vsel %vm693, %v496, %v743
        %745 = vst [vmem:[%s691 + $0x54] sm:$0xf] %v744
        %746 = vst.msk [vmem:[%s691 + $0x58] sm:$0xf] %vm215, %v505
        %v747 = vld [vmem:[%s691 + $0x5c] sm:$0x1]
        %v748 = vsel %vm226, %v506, %v747
        %749 = vst [vmem:[%s691 + $0x5c] sm:$0x1] %v748
        %v750 = vld [vmem:[%s691 + $0x60] sm:$0xf]
        %v751 = vsel %vm693, %v513, %v750
        %752 = vst [vmem:[%s691 + $0x60] sm:$0xf] %v751
        %753 = vst.msk [vmem:[%s691 + $0x64] sm:$0xf] %vm215, %v522
        %v754 = vld [vmem:[%s691 + $0x68] sm:$0x1]
        %v755 = vsel %vm226, %v523, %v754
        %756 = vst [vmem:[%s691 + $0x68] sm:$0x1] %v755
        %v757 = vld [vmem:[%s691 + $0x6c] sm:$0xf]
        %v758 = vsel %vm693, %v530, %v757
        %759 = vst [vmem:[%s691 + $0x6c] sm:$0xf] %v758
        %760 = vst.msk [vmem:[%s691 + $0x70] sm:$0xf] %vm215, %v539
        %v761 = vld [vmem:[%s691 + $0x74] sm:$0x1]
        %v762 = vsel %vm226, %v540, %v761
        %763 = vst [vmem:[%s691 + $0x74] sm:$0x1] %v762
        %v764 = vld [vmem:[%s691 + $0x78] sm:$0xf]
        %v765 = vsel %vm693, %v547, %v764
        %766 = vst [vmem:[%s691 + $0x78] sm:$0xf] %v765
        %767 = vst.msk [vmem:[%s691 + $0x7c] sm:$0xf] %vm215, %v556
        %v768 = vld [vmem:[%s691 + $0x80] sm:$0x1]
        %v769 = vsel %vm226, %v557, %v768
        %770 = vst [vmem:[%s691 + $0x80] sm:$0x1] %v769
        %v771 = vld [vmem:[%s691 + $0x84] sm:$0xf]
        %v772 = vsel %vm693, %v564, %v771
        %773 = vst [vmem:[%s691 + $0x84] sm:$0xf] %v772
        %774 = vst.msk [vmem:[%s691 + $0x88] sm:$0xf] %vm215, %v573
        %v775 = vld [vmem:[%s691 + $0x8c] sm:$0x1]
        %v776 = vsel %vm226, %v574, %v775
        %777 = vst [vmem:[%s691 + $0x8c] sm:$0x1] %v776
        %v778 = vld [vmem:[%s691 + $0x90] sm:$0xf]
        %v779 = vsel %vm693, %v581, %v778
        %780 = vst [vmem:[%s691 + $0x90] sm:$0xf] %v779
        %781 = vst.msk [vmem:[%s691 + $0x94] sm:$0xf] %vm215, %v590
        %v782 = vld [vmem:[%s691 + $0x98] sm:$0x1]
        %v783 = vsel %vm226, %v591, %v782
        %784 = vst [vmem:[%s691 + $0x98] sm:$0x1] %v783
        %v785 = vld [vmem:[%s691 + $0x9c] sm:$0xf]
        %v786 = vsel %vm693, %v598, %v785
        %787 = vst [vmem:[%s691 + $0x9c] sm:$0xf] %v786
        %788 = vst.msk [vmem:[%s691 + $0xa0] sm:$0xf] %vm215, %v607
        %v789 = vld [vmem:[%s691 + $0xa4] sm:$0x1]
        %v790 = vsel %vm226, %v608, %v789
        %791 = vst [vmem:[%s691 + $0xa4] sm:$0x1] %v790
        %v792 = vld [vmem:[%s691 + $0xa8] sm:$0xf]
        %v793 = vsel %vm693, %v615, %v792
        %794 = vst [vmem:[%s691 + $0xa8] sm:$0xf] %v793
        %795 = vst.msk [vmem:[%s691 + $0xac] sm:$0xf] %vm215, %v624
        %v796 = vld [vmem:[%s691 + $0xb0] sm:$0x1]
        %v797 = vsel %vm226, %v625, %v796
        %798 = vst [vmem:[%s691 + $0xb0] sm:$0x1] %v797
        %v799 = vld [vmem:[%s691 + $0xb4] sm:$0xf]
        %v800 = vsel %vm693, %v632, %v799
        %801 = vst [vmem:[%s691 + $0xb4] sm:$0xf] %v800
        %802 = vst.msk [vmem:[%s691 + $0xb8] sm:$0xf] %vm215, %v641
        %v803 = vld [vmem:[%s691 + $0xbc] sm:$0x1]
        %v804 = vsel %vm226, %v642, %v803
        %805 = vst [vmem:[%s691 + $0xbc] sm:$0x1] %v804
        %v806 = vld [vmem:[#allocation2] sm:$0xf]
        %v807 = vld [vmem:[#allocation2 + $0x4] sm:$0xf]
        %v808 = vld [vmem:[#allocation2 + $0x8] sm:$0x1]
        %v809 = vld [vmem:[#allocation2 + $0xc] sm:$0xf]
        %v810 = vld [vmem:[#allocation2 + $0x10] sm:$0xf]
        %v811 = vld [vmem:[#allocation2 + $0x14] sm:$0x1]
        %v812 = vld [vmem:[#allocation2 + $0x18] sm:$0xf]
        %v813 = vld [vmem:[#allocation2 + $0x1c] sm:$0xf]
        %v814 = vld [vmem:[#allocation2 + $0x20] sm:$0x1]
        %v815 = vld [vmem:[#allocation2 + $0x24] sm:$0xf]
        %v816 = vld [vmem:[#allocation2 + $0x28] sm:$0xf]
        %v817 = vld [vmem:[#allocation2 + $0x2c] sm:$0x1]
        %v818 = vld [vmem:[#allocation2 + $0x30] sm:$0xf]
        %v819 = vld [vmem:[#allocation2 + $0x34] sm:$0xf]
        %v820 = vld [vmem:[#allocation2 + $0x38] sm:$0x1]
        %v821 = vld [vmem:[#allocation2 + $0x3c] sm:$0xf]
        %v822 = vld [vmem:[#allocation2 + $0x40] sm:$0xf]
        %v823 = vld [vmem:[#allocation2 + $0x44] sm:$0x1]
        %v824 = vld [vmem:[#allocation2 + $0x48] sm:$0xf]
        %v825 = vld [vmem:[#allocation2 + $0x4c] sm:$0xf]
        %v826 = vld [vmem:[#allocation2 + $0x50] sm:$0x1]
        %v827 = vld [vmem:[#allocation2 + $0x54] sm:$0xf]
        %v828 = vld [vmem:[#allocation2 + $0x58] sm:$0xf]
        %v829 = vld [vmem:[#allocation2 + $0x5c] sm:$0x1]
        %v830 = vld [vmem:[#allocation2 + $0x60] sm:$0xf]
        %v831 = vld [vmem:[#allocation2 + $0x64] sm:$0xf]
        %v832 = vld [vmem:[#allocation2 + $0x68] sm:$0x1]
        %v833 = vld [vmem:[#allocation2 + $0x6c] sm:$0xf]
        %v834 = vld [vmem:[#allocation2 + $0x70] sm:$0xf]
        %v835 = vld [vmem:[#allocation2 + $0x74] sm:$0x1]
        %v836 = vld [vmem:[#allocation2 + $0x78] sm:$0xf]
        %v837 = vld [vmem:[#allocation2 + $0x7c] sm:$0xf]
        %v838 = vld [vmem:[#allocation2 + $0x80] sm:$0x1]
        %v839 = vld [vmem:[#allocation2 + $0x84] sm:$0xf]
        %v840 = vld [vmem:[#allocation2 + $0x88] sm:$0xf]
        %v841 = vld [vmem:[#allocation2 + $0x8c] sm:$0x1]
        %v842 = vld [vmem:[#allocation2 + $0x90] sm:$0xf]
        %v843 = vld [vmem:[#allocation2 + $0x94] sm:$0xf]
        %v844 = vld [vmem:[#allocation2 + $0x98] sm:$0x1]
        %v845 = vld [vmem:[#allocation2 + $0x9c] sm:$0xf]
        %v846 = vld [vmem:[#allocation2 + $0xa0] sm:$0xf]
        %v847 = vld [vmem:[#allocation2 + $0xa4] sm:$0x1]
        %v848 = vld [vmem:[#allocation2 + $0xa8] sm:$0xf]
        %v849 = vld [vmem:[#allocation2 + $0xac] sm:$0xf]
        %v850 = vld [vmem:[#allocation2 + $0xb0] sm:$0x1]
        %v851 = vld [vmem:[#allocation2 + $0xb4] sm:$0xf]
        %v852 = vld [vmem:[#allocation2 + $0xb8] sm:$0xf]
        %v853 = vld [vmem:[#allocation2 + $0xbc] sm:$0x1]
        %v854 = vld [vmem:[%s691] sm:$0xf]
        %v855 = vld [vmem:[%s691 + $0x4] sm:$0xf]
        %v856 = vld [vmem:[%s691 + $0x8] sm:$0x1]
        %v857 = vld [vmem:[%s691 + $0xc] sm:$0xf]
        %v858 = vld [vmem:[%s691 + $0x10] sm:$0xf]
        %v859 = vld [vmem:[%s691 + $0x14] sm:$0x1]
        %v860 = vld [vmem:[%s691 + $0x18] sm:$0xf]
        %v861 = vld [vmem:[%s691 + $0x1c] sm:$0xf]
        %v862 = vld [vmem:[%s691 + $0x20] sm:$0x1]
        %v863 = vld [vmem:[%s691 + $0x24] sm:$0xf]
        %v864 = vld [vmem:[%s691 + $0x28] sm:$0xf]
        %v865 = vld [vmem:[%s691 + $0x2c] sm:$0x1]
        %v866 = vld [vmem:[%s691 + $0x30] sm:$0xf]
        %v867 = vld [vmem:[%s691 + $0x34] sm:$0xf]
        %v868 = vld [vmem:[%s691 + $0x38] sm:$0x1]
        %v869 = vld [vmem:[%s691 + $0x3c] sm:$0xf]
        %v870 = vld [vmem:[%s691 + $0x40] sm:$0xf]
        %v871 = vld [vmem:[%s691 + $0x44] sm:$0x1]
        %v872 = vld [vmem:[%s691 + $0x48] sm:$0xf]
        %v873 = vld [vmem:[%s691 + $0x4c] sm:$0xf]
        %v874 = vld [vmem:[%s691 + $0x50] sm:$0x1]
        %v875 = vld [vmem:[%s691 + $0x54] sm:$0xf]
        %v876 = vld [vmem:[%s691 + $0x58] sm:$0xf]
        %v877 = vld [vmem:[%s691 + $0x5c] sm:$0x1]
        %v878 = vld [vmem:[%s691 + $0x60] sm:$0xf]
        %v879 = vld [vmem:[%s691 + $0x64] sm:$0xf]
        %v880 = vld [vmem:[%s691 + $0x68] sm:$0x1]
        %v881 = vld [vmem:[%s691 + $0x6c] sm:$0xf]
        %v882 = vld [vmem:[%s691 + $0x70] sm:$0xf]
        %v883 = vld [vmem:[%s691 + $0x74] sm:$0x1]
        %v884 = vld [vmem:[%s691 + $0x78] sm:$0xf]
        %v885 = vld [vmem:[%s691 + $0x7c] sm:$0xf]
        %v886 = vld [vmem:[%s691 + $0x80] sm:$0x1]
        %v887 = vld [vmem:[%s691 + $0x84] sm:$0xf]
        %v888 = vld [vmem:[%s691 + $0x88] sm:$0xf]
        %v889 = vld [vmem:[%s691 + $0x8c] sm:$0x1]
        %v890 = vld [vmem:[%s691 + $0x90] sm:$0xf]
        %v891 = vld [vmem:[%s691 + $0x94] sm:$0xf]
        %v892 = vld [vmem:[%s691 + $0x98] sm:$0x1]
        %v893 = vld [vmem:[%s691 + $0x9c] sm:$0xf]
        %v894 = vld [vmem:[%s691 + $0xa0] sm:$0xf]
        %v895 = vld [vmem:[%s691 + $0xa4] sm:$0x1]
        %v896 = vld [vmem:[%s691 + $0xa8] sm:$0xf]
        %v897 = vld [vmem:[%s691 + $0xac] sm:$0xf]
        %v898 = vld [vmem:[%s691 + $0xb0] sm:$0x1]
        %v899 = vld [vmem:[%s691 + $0xb4] sm:$0xf]
        %v900 = vld [vmem:[%s691 + $0xb8] sm:$0xf]
        %v901 = vld [vmem:[%s691 + $0xbc] sm:$0x1]
        %s902 = scalar_lea.vmem [#allocation2], 24
        %v903 = vld [vmem:[%s902] sm:$0xf]
        %v904 = vld [vmem:[%s902 + $0x4] sm:$0xf]
        %v905 = vld [vmem:[%s902 + $0x8] sm:$0x1]
        %v906 = vld [vmem:[%s902 + $0xc] sm:$0xf]
        %v907 = vld [vmem:[%s902 + $0x10] sm:$0xf]
        %v908 = vld [vmem:[%s902 + $0x14] sm:$0x1]
        %v909 = vld [vmem:[%s902 + $0x18] sm:$0xf]
        %v910 = vld [vmem:[%s902 + $0x1c] sm:$0xf]
        %v911 = vld [vmem:[%s902 + $0x20] sm:$0x1]
        %v912 = vld [vmem:[%s902 + $0x24] sm:$0xf]
        %v913 = vld [vmem:[%s902 + $0x28] sm:$0xf]
        %v914 = vld [vmem:[%s902 + $0x2c] sm:$0x1]
        %v915 = vld [vmem:[%s902 + $0x30] sm:$0xf]
        %v916 = vld [vmem:[%s902 + $0x34] sm:$0xf]
        %v917 = vld [vmem:[%s902 + $0x38] sm:$0x1]
        %v918 = vld [vmem:[%s902 + $0x3c] sm:$0xf]
        %v919 = vld [vmem:[%s902 + $0x40] sm:$0xf]
        %v920 = vld [vmem:[%s902 + $0x44] sm:$0x1]
        %v921 = vld [vmem:[%s902 + $0x48] sm:$0xf]
        %v922 = vld [vmem:[%s902 + $0x4c] sm:$0xf]
        %v923 = vld [vmem:[%s902 + $0x50] sm:$0x1]
        %v924 = vld [vmem:[%s902 + $0x54] sm:$0xf]
        %v925 = vld [vmem:[%s902 + $0x58] sm:$0xf]
        %v926 = vld [vmem:[%s902 + $0x5c] sm:$0x1]
        %v927 = vld [vmem:[%s902 + $0x60] sm:$0xf]
        %v928 = vld [vmem:[%s902 + $0x64] sm:$0xf]
        %v929 = vld [vmem:[%s902 + $0x68] sm:$0x1]
        %v930 = vld [vmem:[%s902 + $0x6c] sm:$0xf]
        %v931 = vld [vmem:[%s902 + $0x70] sm:$0xf]
        %v932 = vld [vmem:[%s902 + $0x74] sm:$0x1]
        %v933 = vld [vmem:[%s902 + $0x78] sm:$0xf]
        %v934 = vld [vmem:[%s902 + $0x7c] sm:$0xf]
        %v935 = vld [vmem:[%s902 + $0x80] sm:$0x1]
        %v936 = vld [vmem:[%s902 + $0x84] sm:$0xf]
        %v937 = vld [vmem:[%s902 + $0x88] sm:$0xf]
        %v938 = vld [vmem:[%s902 + $0x8c] sm:$0x1]
        %v939 = vld [vmem:[%s902 + $0x90] sm:$0xf]
        %v940 = vld [vmem:[%s902 + $0x94] sm:$0xf]
        %v941 = vld [vmem:[%s902 + $0x98] sm:$0x1]
        %v942 = vld [vmem:[%s902 + $0x9c] sm:$0xf]
        %v943 = vld [vmem:[%s902 + $0xa0] sm:$0xf]
        %v944 = vld [vmem:[%s902 + $0xa4] sm:$0x1]
        %v945 = vld [vmem:[%s902 + $0xa8] sm:$0xf]
        %v946 = vld [vmem:[%s902 + $0xac] sm:$0xf]
        %v947 = vld [vmem:[%s902 + $0xb0] sm:$0x1]
        %v948 = vld [vmem:[%s902 + $0xb4] sm:$0xf]
        %v949 = vld [vmem:[%s902 + $0xb8] sm:$0xf]
        %v950 = vld [vmem:[%s902 + $0xbc] sm:$0x1]
        %v983 = vunpack.c.l.b16 %v806
        %v984 = vunpack.c.l.b16 %v807
        %v985 = vunpack.c.l.b16 %v809
        %v986 = vunpack.c.l.b16 %v810
        %v987 = vunpack.c.l.b16 %v812
        %v988 = vunpack.c.l.b16 %v813
        %v989 = vunpack.c.l.b16 %v815
        %v990 = vunpack.c.l.b16 %v816
        %v991 = vunpack.c.l.b16 %v818
        %v992 = vunpack.c.l.b16 %v819
        %v993 = vunpack.c.l.b16 %v821
        %v994 = vunpack.c.l.b16 %v822
        %v995 = vunpack.c.l.b16 %v824
        %v996 = vunpack.c.l.b16 %v825
        %v997 = vunpack.c.l.b16 %v827
        %v998 = vunpack.c.l.b16 %v828
        %v999 = vunpack.c.l.b16 %v830
        %v1000 = vunpack.c.l.b16 %v831
        %v1001 = vunpack.c.l.b16 %v833
        %v1002 = vunpack.c.l.b16 %v834
        %v1003 = vunpack.c.l.b16 %v836
        %v1004 = vunpack.c.l.b16 %v837
        %v1005 = vunpack.c.l.b16 %v839
        %v1006 = vunpack.c.l.b16 %v840
        %v1007 = vunpack.c.l.b16 %v842
        %v1008 = vunpack.c.l.b16 %v843
        %v1009 = vunpack.c.l.b16 %v845
        %v1010 = vunpack.c.l.b16 %v846
        %v1011 = vunpack.c.l.b16 %v848
        %v1012 = vunpack.c.l.b16 %v849
        %v1013 = vunpack.c.l.b16 %v851
        %v1014 = vunpack.c.l.b16 %v852
        %v1015 = vpack.c.b16 %v984, %v983
        %v1016 = vpack.c.b16 %v986, %v985
        %v1017 = vpack.c.b16 %v988, %v987
        %v1018 = vpack.c.b16 %v990, %v989
        %v1019 = vpack.c.b16 %v992, %v991
        %v1020 = vpack.c.b16 %v994, %v993
        %v1021 = vpack.c.b16 %v996, %v995
        %v1022 = vpack.c.b16 %v998, %v997
        %v1023 = vpack.c.b16 %v1000, %v999
        %v1024 = vpack.c.b16 %v1002, %v1001
        %v1025 = vpack.c.b16 %v1004, %v1003
        %v1026 = vpack.c.b16 %v1006, %v1005
        %v1027 = vpack.c.b16 %v1008, %v1007
        %v1028 = vpack.c.b16 %v1010, %v1009
        %v1029 = vpack.c.b16 %v1012, %v1011
        %v1030 = vpack.c.b16 %v1014, %v1013
        %v1047 = vunpack.c.l.b16 %v808
        %v1048 = vunpack.c.l.b16 %v811
        %v1049 = vunpack.c.l.b16 %v814
        %v1050 = vunpack.c.l.b16 %v817
        %v1051 = vunpack.c.l.b16 %v820
        %v1052 = vunpack.c.l.b16 %v823
        %v1053 = vunpack.c.l.b16 %v826
        %v1054 = vunpack.c.l.b16 %v829
        %v1055 = vunpack.c.l.b16 %v832
        %v1056 = vunpack.c.l.b16 %v835
        %v1057 = vunpack.c.l.b16 %v838
        %v1058 = vunpack.c.l.b16 %v841
        %v1059 = vunpack.c.l.b16 %v844
        %v1060 = vunpack.c.l.b16 %v847
        %v1061 = vunpack.c.l.b16 %v850
        %v1062 = vunpack.c.l.b16 %v853
        %v1063 = vpack.c.b16 %v1047, %v1047
        %v1064 = vpack.c.b16 %v1048, %v1048
        %v1065 = vpack.c.b16 %v1049, %v1049
        %v1066 = vpack.c.b16 %v1050, %v1050
        %v1067 = vpack.c.b16 %v1051, %v1051
        %v1068 = vpack.c.b16 %v1052, %v1052
        %v1069 = vpack.c.b16 %v1053, %v1053
        %v1070 = vpack.c.b16 %v1054, %v1054
        %v1071 = vpack.c.b16 %v1055, %v1055
        %v1072 = vpack.c.b16 %v1056, %v1056
        %v1073 = vpack.c.b16 %v1057, %v1057
        %v1074 = vpack.c.b16 %v1058, %v1058
        %v1075 = vpack.c.b16 %v1059, %v1059
        %v1076 = vpack.c.b16 %v1060, %v1060
        %v1077 = vpack.c.b16 %v1061, %v1061
        %v1078 = vpack.c.b16 %v1062, %v1062
        %vm1079 = vsmask.f32 7424
        %v1081 = vshrl.u32 %v1015, 16
        %v1083 = vshll.u32 %v1015, 16
        %v1085 = vrot.slane %v1083, 1
        %v1086 = vor.u32 %v1081, %v1085
        %v1088 = vshll.u32 %v1063, 16
        %v1090 = vrot.slane %v1088, 1
        %v1091 = vsel %vm1079, %v1086, %v1090
        %v1093 = vshrl.u32 %v1016, 16
        %v1095 = vshll.u32 %v1016, 16
        %v1097 = vrot.slane %v1095, 1
        %v1098 = vor.u32 %v1093, %v1097
        %v1100 = vshll.u32 %v1064, 16
        %v1102 = vrot.slane %v1100, 1
        %v1103 = vsel %vm1079, %v1098, %v1102
        %v1105 = vshrl.u32 %v1017, 16
        %v1107 = vshll.u32 %v1017, 16
        %v1109 = vrot.slane %v1107, 1
        %v1110 = vor.u32 %v1105, %v1109
        %v1112 = vshll.u32 %v1065, 16
        %v1114 = vrot.slane %v1112, 1
        %v1115 = vsel %vm1079, %v1110, %v1114
        %v1117 = vshrl.u32 %v1018, 16
        %v1119 = vshll.u32 %v1018, 16
        %v1121 = vrot.slane %v1119, 1
        %v1122 = vor.u32 %v1117, %v1121
        %v1124 = vshll.u32 %v1066, 16
        %v1126 = vrot.slane %v1124, 1
        %v1127 = vsel %vm1079, %v1122, %v1126
        %v1129 = vshrl.u32 %v1019, 16
        %v1131 = vshll.u32 %v1019, 16
        %v1133 = vrot.slane %v1131, 1
        %v1134 = vor.u32 %v1129, %v1133
        %v1136 = vshll.u32 %v1067, 16
        %v1138 = vrot.slane %v1136, 1
        %v1139 = vsel %vm1079, %v1134, %v1138
        %v1141 = vshrl.u32 %v1020, 16
        %v1143 = vshll.u32 %v1020, 16
        %v1145 = vrot.slane %v1143, 1
        %v1146 = vor.u32 %v1141, %v1145
        %v1148 = vshll.u32 %v1068, 16
        %v1150 = vrot.slane %v1148, 1
        %v1151 = vsel %vm1079, %v1146, %v1150
        %v1153 = vshrl.u32 %v1021, 16
        %v1155 = vshll.u32 %v1021, 16
        %v1157 = vrot.slane %v1155, 1
        %v1158 = vor.u32 %v1153, %v1157
        %v1160 = vshll.u32 %v1069, 16
        %v1162 = vrot.slane %v1160, 1
        %v1163 = vsel %vm1079, %v1158, %v1162
        %v1165 = vshrl.u32 %v1022, 16
        %v1167 = vshll.u32 %v1022, 16
        %v1169 = vrot.slane %v1167, 1
        %v1170 = vor.u32 %v1165, %v1169
        %v1172 = vshll.u32 %v1070, 16
        %v1174 = vrot.slane %v1172, 1
        %v1175 = vsel %vm1079, %v1170, %v1174
        %v1177 = vshrl.u32 %v1023, 16
        %v1179 = vshll.u32 %v1023, 16
        %v1181 = vrot.slane %v1179, 1
        %v1182 = vor.u32 %v1177, %v1181
        %v1184 = vshll.u32 %v1071, 16
        %v1186 = vrot.slane %v1184, 1
        %v1187 = vsel %vm1079, %v1182, %v1186
        %v1189 = vshrl.u32 %v1024, 16
        %v1191 = vshll.u32 %v1024, 16
        %v1193 = vrot.slane %v1191, 1
        %v1194 = vor.u32 %v1189, %v1193
        %v1196 = vshll.u32 %v1072, 16
        %v1198 = vrot.slane %v1196, 1
        %v1199 = vsel %vm1079, %v1194, %v1198
        %v1201 = vshrl.u32 %v1025, 16
        %v1203 = vshll.u32 %v1025, 16
        %v1205 = vrot.slane %v1203, 1
        %v1206 = vor.u32 %v1201, %v1205
        %v1208 = vshll.u32 %v1073, 16
        %v1210 = vrot.slane %v1208, 1
        %v1211 = vsel %vm1079, %v1206, %v1210
        %v1213 = vshrl.u32 %v1026, 16
        %v1215 = vshll.u32 %v1026, 16
        %v1217 = vrot.slane %v1215, 1
        %v1218 = vor.u32 %v1213, %v1217
        %v1220 = vshll.u32 %v1074, 16
        %v1222 = vrot.slane %v1220, 1
        %v1223 = vsel %vm1079, %v1218, %v1222
        %v1225 = vshrl.u32 %v1027, 16
        %v1227 = vshll.u32 %v1027, 16
        %v1229 = vrot.slane %v1227, 1
        %v1230 = vor.u32 %v1225, %v1229
        %v1232 = vshll.u32 %v1075, 16
        %v1234 = vrot.slane %v1232, 1
        %v1235 = vsel %vm1079, %v1230, %v1234
        %v1237 = vshrl.u32 %v1028, 16
        %v1239 = vshll.u32 %v1028, 16
        %v1241 = vrot.slane %v1239, 1
        %v1242 = vor.u32 %v1237, %v1241
        %v1244 = vshll.u32 %v1076, 16
        %v1246 = vrot.slane %v1244, 1
        %v1247 = vsel %vm1079, %v1242, %v1246
        %v1249 = vshrl.u32 %v1029, 16
        %v1251 = vshll.u32 %v1029, 16
        %v1253 = vrot.slane %v1251, 1
        %v1254 = vor.u32 %v1249, %v1253
        %v1256 = vshll.u32 %v1077, 16
        %v1258 = vrot.slane %v1256, 1
        %v1259 = vsel %vm1079, %v1254, %v1258
        %v1261 = vshrl.u32 %v1030, 16
        %v1263 = vshll.u32 %v1030, 16
        %v1265 = vrot.slane %v1263, 1
        %v1266 = vor.u32 %v1261, %v1265
        %v1268 = vshll.u32 %v1078, 16
        %v1270 = vrot.slane %v1268, 1
        %v1271 = vsel %vm1079, %v1266, %v1270
        %1272 = vrot.lane.b32.xlu0 %v1091, 4
        %v1273 = vpop.permute.xlu0 %1272
        %1274 = vrot.lane.b32.xlu0 %v1103, 4
        %v1275 = vpop.permute.xlu0 %1274
        %1276 = vrot.lane.b32.xlu0 %v1115, 4
        %v1277 = vpop.permute.xlu0 %1276
        %1278 = vrot.lane.b32.xlu0 %v1127, 4
        %v1279 = vpop.permute.xlu0 %1278
        %1280 = vrot.lane.b32.xlu0 %v1139, 4
        %v1281 = vpop.permute.xlu0 %1280
        %1282 = vrot.lane.b32.xlu0 %v1151, 4
        %v1283 = vpop.permute.xlu0 %1282
        %1284 = vrot.lane.b32.xlu0 %v1163, 4
        %v1285 = vpop.permute.xlu0 %1284
        %1286 = vrot.lane.b32.xlu0 %v1175, 4
        %v1287 = vpop.permute.xlu0 %1286
        %1288 = vrot.lane.b32.xlu0 %v1187, 4
        %v1289 = vpop.permute.xlu0 %1288
        %1290 = vrot.lane.b32.xlu0 %v1199, 4
        %v1291 = vpop.permute.xlu0 %1290
        %1292 = vrot.lane.b32.xlu0 %v1211, 4
        %v1293 = vpop.permute.xlu0 %1292
        %1294 = vrot.lane.b32.xlu0 %v1223, 4
        %v1295 = vpop.permute.xlu0 %1294
        %1296 = vrot.lane.b32.xlu0 %v1235, 4
        %v1297 = vpop.permute.xlu0 %1296
        %1298 = vrot.lane.b32.xlu0 %v1247, 4
        %v1299 = vpop.permute.xlu0 %1298
        %1300 = vrot.lane.b32.xlu0 %v1259, 4
        %v1301 = vpop.permute.xlu0 %1300
        %1302 = vrot.lane.b32.xlu0 %v1271, 4
        %v1303 = vpop.permute.xlu0 %1302
        %vm1304 = vcmask 1046528
        %v1305 = vrot.slane %v1015, 1
        %v1306 = vrot.slane %v1063, 1
        %v1307 = vsel %vm1304, %v1305, %v1306
        %v1308 = vrot.slane %v1016, 1
        %v1309 = vrot.slane %v1064, 1
        %v1310 = vsel %vm1304, %v1308, %v1309
        %v1311 = vrot.slane %v1017, 1
        %v1312 = vrot.slane %v1065, 1
        %v1313 = vsel %vm1304, %v1311, %v1312
        %v1314 = vrot.slane %v1018, 1
        %v1315 = vrot.slane %v1066, 1
        %v1316 = vsel %vm1304, %v1314, %v1315
        %v1317 = vrot.slane %v1019, 1
        %v1318 = vrot.slane %v1067, 1
        %v1319 = vsel %vm1304, %v1317, %v1318
        %v1320 = vrot.slane %v1020, 1
        %v1321 = vrot.slane %v1068, 1
        %v1322 = vsel %vm1304, %v1320, %v1321
        %v1323 = vrot.slane %v1021, 1
        %v1324 = vrot.slane %v1069, 1
        %v1325 = vsel %vm1304, %v1323, %v1324
        %v1326 = vrot.slane %v1022, 1
        %v1327 = vrot.slane %v1070, 1
        %v1328 = vsel %vm1304, %v1326, %v1327
        %v1329 = vrot.slane %v1023, 1
        %v1330 = vrot.slane %v1071, 1
        %v1331 = vsel %vm1304, %v1329, %v1330
        %v1332 = vrot.slane %v1024, 1
        %v1333 = vrot.slane %v1072, 1
        %v1334 = vsel %vm1304, %v1332, %v1333
        %v1335 = vrot.slane %v1025, 1
        %v1336 = vrot.slane %v1073, 1
        %v1337 = vsel %vm1304, %v1335, %v1336
        %v1338 = vrot.slane %v1026, 1
        %v1339 = vrot.slane %v1074, 1
        %v1340 = vsel %vm1304, %v1338, %v1339
        %v1341 = vrot.slane %v1027, 1
        %v1342 = vrot.slane %v1075, 1
        %v1343 = vsel %vm1304, %v1341, %v1342
        %v1344 = vrot.slane %v1028, 1
        %v1345 = vrot.slane %v1076, 1
        %v1346 = vsel %vm1304, %v1344, %v1345
        %v1347 = vrot.slane %v1029, 1
        %v1348 = vrot.slane %v1077, 1
        %v1349 = vsel %vm1304, %v1347, %v1348
        %v1350 = vrot.slane %v1030, 1
        %v1351 = vrot.slane %v1078, 1
        %v1352 = vsel %vm1304, %v1350, %v1351
        %1353 = vrot.lane.b32.xlu0 %v1307, 8
        %v1354 = vpop.permute.xlu0 %1353
        %1355 = vrot.lane.b32.xlu0 %v1310, 8
        %v1356 = vpop.permute.xlu0 %1355
        %1357 = vrot.lane.b32.xlu0 %v1313, 8
        %v1358 = vpop.permute.xlu0 %1357
        %1359 = vrot.lane.b32.xlu0 %v1316, 8
        %v1360 = vpop.permute.xlu0 %1359
        %1361 = vrot.lane.b32.xlu0 %v1319, 8
        %v1362 = vpop.permute.xlu0 %1361
        %1363 = vrot.lane.b32.xlu0 %v1322, 8
        %v1364 = vpop.permute.xlu0 %1363
        %1365 = vrot.lane.b32.xlu0 %v1325, 8
        %v1366 = vpop.permute.xlu0 %1365
        %1367 = vrot.lane.b32.xlu0 %v1328, 8
        %v1368 = vpop.permute.xlu0 %1367
        %1369 = vrot.lane.b32.xlu0 %v1331, 8
        %v1370 = vpop.permute.xlu0 %1369
        %1371 = vrot.lane.b32.xlu0 %v1334, 8
        %v1372 = vpop.permute.xlu0 %1371
        %1373 = vrot.lane.b32.xlu0 %v1337, 8
        %v1374 = vpop.permute.xlu0 %1373
        %1375 = vrot.lane.b32.xlu0 %v1340, 8
        %v1376 = vpop.permute.xlu0 %1375
        %1377 = vrot.lane.b32.xlu0 %v1343, 8
        %v1378 = vpop.permute.xlu0 %1377
        %1379 = vrot.lane.b32.xlu0 %v1346, 8
        %v1380 = vpop.permute.xlu0 %1379
        %1381 = vrot.lane.b32.xlu0 %v1349, 8
        %v1382 = vpop.permute.xlu0 %1381
        %1383 = vrot.lane.b32.xlu0 %v1352, 8
        %v1384 = vpop.permute.xlu0 %1383
        %v1417 = vunpack.c.l.b16 %v854
        %v1418 = vunpack.c.l.b16 %v855
        %v1419 = vunpack.c.l.b16 %v857
        %v1420 = vunpack.c.l.b16 %v858
        %v1421 = vunpack.c.l.b16 %v860
        %v1422 = vunpack.c.l.b16 %v861
        %v1423 = vunpack.c.l.b16 %v863
        %v1424 = vunpack.c.l.b16 %v864
        %v1425 = vunpack.c.l.b16 %v866
        %v1426 = vunpack.c.l.b16 %v867
        %v1427 = vunpack.c.l.b16 %v869
        %v1428 = vunpack.c.l.b16 %v870
        %v1429 = vunpack.c.l.b16 %v872
        %v1430 = vunpack.c.l.b16 %v873
        %v1431 = vunpack.c.l.b16 %v875
        %v1432 = vunpack.c.l.b16 %v876
        %v1433 = vunpack.c.l.b16 %v878
        %v1434 = vunpack.c.l.b16 %v879
        %v1435 = vunpack.c.l.b16 %v881
        %v1436 = vunpack.c.l.b16 %v882
        %v1437 = vunpack.c.l.b16 %v884
        %v1438 = vunpack.c.l.b16 %v885
        %v1439 = vunpack.c.l.b16 %v887
        %v1440 = vunpack.c.l.b16 %v888
        %v1441 = vunpack.c.l.b16 %v890
        %v1442 = vunpack.c.l.b16 %v891
        %v1443 = vunpack.c.l.b16 %v893
        %v1444 = vunpack.c.l.b16 %v894
        %v1445 = vunpack.c.l.b16 %v896
        %v1446 = vunpack.c.l.b16 %v897
        %v1447 = vunpack.c.l.b16 %v899
        %v1448 = vunpack.c.l.b16 %v900
        %v1449 = vpack.c.b16 %v1418, %v1417
        %v1450 = vpack.c.b16 %v1420, %v1419
        %v1451 = vpack.c.b16 %v1422, %v1421
        %v1452 = vpack.c.b16 %v1424, %v1423
        %v1453 = vpack.c.b16 %v1426, %v1425
        %v1454 = vpack.c.b16 %v1428, %v1427
        %v1455 = vpack.c.b16 %v1430, %v1429
        %v1456 = vpack.c.b16 %v1432, %v1431
        %v1457 = vpack.c.b16 %v1434, %v1433
        %v1458 = vpack.c.b16 %v1436, %v1435
        %v1459 = vpack.c.b16 %v1438, %v1437
        %v1460 = vpack.c.b16 %v1440, %v1439
        %v1461 = vpack.c.b16 %v1442, %v1441
        %v1462 = vpack.c.b16 %v1444, %v1443
        %v1463 = vpack.c.b16 %v1446, %v1445
        %v1464 = vpack.c.b16 %v1448, %v1447
        %1465 = vrot.lane.b32.xlu0 %v1449, 12
        %v1466 = vpop.permute.xlu0 %1465
        %1467 = vrot.lane.b32.xlu0 %v1450, 12
        %v1468 = vpop.permute.xlu0 %1467
        %1469 = vrot.lane.b32.xlu0 %v1451, 12
        %v1470 = vpop.permute.xlu0 %1469
        %1471 = vrot.lane.b32.xlu0 %v1452, 12
        %v1472 = vpop.permute.xlu0 %1471
        %1473 = vrot.lane.b32.xlu0 %v1453, 12
        %v1474 = vpop.permute.xlu0 %1473
        %1475 = vrot.lane.b32.xlu0 %v1454, 12
        %v1476 = vpop.permute.xlu0 %1475
        %1477 = vrot.lane.b32.xlu0 %v1455, 12
        %v1478 = vpop.permute.xlu0 %1477
        %1479 = vrot.lane.b32.xlu0 %v1456, 12
        %v1480 = vpop.permute.xlu0 %1479
        %1481 = vrot.lane.b32.xlu0 %v1457, 12
        %v1482 = vpop.permute.xlu0 %1481
        %1483 = vrot.lane.b32.xlu0 %v1458, 12
        %v1484 = vpop.permute.xlu0 %1483
        %1485 = vrot.lane.b32.xlu0 %v1459, 12
        %v1486 = vpop.permute.xlu0 %1485
        %1487 = vrot.lane.b32.xlu0 %v1460, 12
        %v1488 = vpop.permute.xlu0 %1487
        %1489 = vrot.lane.b32.xlu0 %v1461, 12
        %v1490 = vpop.permute.xlu0 %1489
        %1491 = vrot.lane.b32.xlu0 %v1462, 12
        %v1492 = vpop.permute.xlu0 %1491
        %1493 = vrot.lane.b32.xlu0 %v1463, 12
        %v1494 = vpop.permute.xlu0 %1493
        %1495 = vrot.lane.b32.xlu0 %v1464, 12
        %v1496 = vpop.permute.xlu0 %1495
        %v1513 = vunpack.c.l.b16 %v856
        %v1514 = vunpack.c.l.b16 %v859
        %v1515 = vunpack.c.l.b16 %v862
        %v1516 = vunpack.c.l.b16 %v865
        %v1517 = vunpack.c.l.b16 %v868
        %v1518 = vunpack.c.l.b16 %v871
        %v1519 = vunpack.c.l.b16 %v874
        %v1520 = vunpack.c.l.b16 %v877
        %v1521 = vunpack.c.l.b16 %v880
        %v1522 = vunpack.c.l.b16 %v883
        %v1523 = vunpack.c.l.b16 %v886
        %v1524 = vunpack.c.l.b16 %v889
        %v1525 = vunpack.c.l.b16 %v892
        %v1526 = vunpack.c.l.b16 %v895
        %v1527 = vunpack.c.l.b16 %v898
        %v1528 = vunpack.c.l.b16 %v901
        %v1529 = vpack.c.b16 %v1513, %v1513
        %v1530 = vpack.c.b16 %v1514, %v1514
        %v1531 = vpack.c.b16 %v1515, %v1515
        %v1532 = vpack.c.b16 %v1516, %v1516
        %v1533 = vpack.c.b16 %v1517, %v1517
        %v1534 = vpack.c.b16 %v1518, %v1518
        %v1535 = vpack.c.b16 %v1519, %v1519
        %v1536 = vpack.c.b16 %v1520, %v1520
        %v1537 = vpack.c.b16 %v1521, %v1521
        %v1538 = vpack.c.b16 %v1522, %v1522
        %v1539 = vpack.c.b16 %v1523, %v1523
        %v1540 = vpack.c.b16 %v1524, %v1524
        %v1541 = vpack.c.b16 %v1525, %v1525
        %v1542 = vpack.c.b16 %v1526, %v1526
        %v1543 = vpack.c.b16 %v1527, %v1527
        %v1544 = vpack.c.b16 %v1528, %v1528
        %v1546 = vshrl.u32 %v1449, 16
        %v1548 = vshll.u32 %v1449, 16
        %v1550 = vrot.slane %v1548, 1
        %v1551 = vor.u32 %v1546, %v1550
        %v1553 = vshll.u32 %v1529, 16
        %v1555 = vrot.slane %v1553, 1
        %v1556 = vsel %vm1079, %v1551, %v1555
        %v1558 = vshrl.u32 %v1450, 16
        %v1560 = vshll.u32 %v1450, 16
        %v1562 = vrot.slane %v1560, 1
        %v1563 = vor.u32 %v1558, %v1562
        %v1565 = vshll.u32 %v1530, 16
        %v1567 = vrot.slane %v1565, 1
        %v1568 = vsel %vm1079, %v1563, %v1567
        %v1570 = vshrl.u32 %v1451, 16
        %v1572 = vshll.u32 %v1451, 16
        %v1574 = vrot.slane %v1572, 1
        %v1575 = vor.u32 %v1570, %v1574
        %v1577 = vshll.u32 %v1531, 16
        %v1579 = vrot.slane %v1577, 1
        %v1580 = vsel %vm1079, %v1575, %v1579
        %v1582 = vshrl.u32 %v1452, 16
        %v1584 = vshll.u32 %v1452, 16
        %v1586 = vrot.slane %v1584, 1
        %v1587 = vor.u32 %v1582, %v1586
        %v1589 = vshll.u32 %v1532, 16
        %v1591 = vrot.slane %v1589, 1
        %v1592 = vsel %vm1079, %v1587, %v1591
        %v1594 = vshrl.u32 %v1453, 16
        %v1596 = vshll.u32 %v1453, 16
        %v1598 = vrot.slane %v1596, 1
        %v1599 = vor.u32 %v1594, %v1598
        %v1601 = vshll.u32 %v1533, 16
        %v1603 = vrot.slane %v1601, 1
        %v1604 = vsel %vm1079, %v1599, %v1603
        %v1606 = vshrl.u32 %v1454, 16
        %v1608 = vshll.u32 %v1454, 16
        %v1610 = vrot.slane %v1608, 1
        %v1611 = vor.u32 %v1606, %v1610
        %v1613 = vshll.u32 %v1534, 16
        %v1615 = vrot.slane %v1613, 1
        %v1616 = vsel %vm1079, %v1611, %v1615
        %v1618 = vshrl.u32 %v1455, 16
        %v1620 = vshll.u32 %v1455, 16
        %v1622 = vrot.slane %v1620, 1
        %v1623 = vor.u32 %v1618, %v1622
        %v1625 = vshll.u32 %v1535, 16
        %v1627 = vrot.slane %v1625, 1
        %v1628 = vsel %vm1079, %v1623, %v1627
        %v1630 = vshrl.u32 %v1456, 16
        %v1632 = vshll.u32 %v1456, 16
        %v1634 = vrot.slane %v1632, 1
        %v1635 = vor.u32 %v1630, %v1634
        %v1637 = vshll.u32 %v1536, 16
        %v1639 = vrot.slane %v1637, 1
        %v1640 = vsel %vm1079, %v1635, %v1639
        %v1642 = vshrl.u32 %v1457, 16
        %v1644 = vshll.u32 %v1457, 16
        %v1646 = vrot.slane %v1644, 1
        %v1647 = vor.u32 %v1642, %v1646
        %v1649 = vshll.u32 %v1537, 16
        %v1651 = vrot.slane %v1649, 1
        %v1652 = vsel %vm1079, %v1647, %v1651
        %v1654 = vshrl.u32 %v1458, 16
        %v1656 = vshll.u32 %v1458, 16
        %v1658 = vrot.slane %v1656, 1
        %v1659 = vor.u32 %v1654, %v1658
        %v1661 = vshll.u32 %v1538, 16
        %v1663 = vrot.slane %v1661, 1
        %v1664 = vsel %vm1079, %v1659, %v1663
        %v1666 = vshrl.u32 %v1459, 16
        %v1668 = vshll.u32 %v1459, 16
        %v1670 = vrot.slane %v1668, 1
        %v1671 = vor.u32 %v1666, %v1670
        %v1673 = vshll.u32 %v1539, 16
        %v1675 = vrot.slane %v1673, 1
        %v1676 = vsel %vm1079, %v1671, %v1675
        %v1678 = vshrl.u32 %v1460, 16
        %v1680 = vshll.u32 %v1460, 16
        %v1682 = vrot.slane %v1680, 1
        %v1683 = vor.u32 %v1678, %v1682
        %v1685 = vshll.u32 %v1540, 16
        %v1687 = vrot.slane %v1685, 1
        %v1688 = vsel %vm1079, %v1683, %v1687
        %v1690 = vshrl.u32 %v1461, 16
        %v1692 = vshll.u32 %v1461, 16
        %v1694 = vrot.slane %v1692, 1
        %v1695 = vor.u32 %v1690, %v1694
        %v1697 = vshll.u32 %v1541, 16
        %v1699 = vrot.slane %v1697, 1
        %v1700 = vsel %vm1079, %v1695, %v1699
        %v1702 = vshrl.u32 %v1462, 16
        %v1704 = vshll.u32 %v1462, 16
        %v1706 = vrot.slane %v1704, 1
        %v1707 = vor.u32 %v1702, %v1706
        %v1709 = vshll.u32 %v1542, 16
        %v1711 = vrot.slane %v1709, 1
        %v1712 = vsel %vm1079, %v1707, %v1711
        %v1714 = vshrl.u32 %v1463, 16
        %v1716 = vshll.u32 %v1463, 16
        %v1718 = vrot.slane %v1716, 1
        %v1719 = vor.u32 %v1714, %v1718
        %v1721 = vshll.u32 %v1543, 16
        %v1723 = vrot.slane %v1721, 1
        %v1724 = vsel %vm1079, %v1719, %v1723
        %v1726 = vshrl.u32 %v1464, 16
        %v1728 = vshll.u32 %v1464, 16
        %v1730 = vrot.slane %v1728, 1
        %v1731 = vor.u32 %v1726, %v1730
        %v1733 = vshll.u32 %v1544, 16
        %v1735 = vrot.slane %v1733, 1
        %v1736 = vsel %vm1079, %v1731, %v1735
        %1737 = vrot.lane.b32.xlu0 %v1556, 16
        %v1738 = vpop.permute.xlu0 %1737
        %1739 = vrot.lane.b32.xlu0 %v1568, 16
        %v1740 = vpop.permute.xlu0 %1739
        %1741 = vrot.lane.b32.xlu0 %v1580, 16
        %v1742 = vpop.permute.xlu0 %1741
        %1743 = vrot.lane.b32.xlu0 %v1592, 16
        %v1744 = vpop.permute.xlu0 %1743
        %1745 = vrot.lane.b32.xlu0 %v1604, 16
        %v1746 = vpop.permute.xlu0 %1745
        %1747 = vrot.lane.b32.xlu0 %v1616, 16
        %v1748 = vpop.permute.xlu0 %1747
        %1749 = vrot.lane.b32.xlu0 %v1628, 16
        %v1750 = vpop.permute.xlu0 %1749
        %1751 = vrot.lane.b32.xlu0 %v1640, 16
        %v1752 = vpop.permute.xlu0 %1751
        %1753 = vrot.lane.b32.xlu0 %v1652, 16
        %v1754 = vpop.permute.xlu0 %1753
        %1755 = vrot.lane.b32.xlu0 %v1664, 16
        %v1756 = vpop.permute.xlu0 %1755
        %1757 = vrot.lane.b32.xlu0 %v1676, 16
        %v1758 = vpop.permute.xlu0 %1757
        %1759 = vrot.lane.b32.xlu0 %v1688, 16
        %v1760 = vpop.permute.xlu0 %1759
        %1761 = vrot.lane.b32.xlu0 %v1700, 16
        %v1762 = vpop.permute.xlu0 %1761
        %1763 = vrot.lane.b32.xlu0 %v1712, 16
        %v1764 = vpop.permute.xlu0 %1763
        %1765 = vrot.lane.b32.xlu0 %v1724, 16
        %v1766 = vpop.permute.xlu0 %1765
        %1767 = vrot.lane.b32.xlu0 %v1736, 16
        %v1768 = vpop.permute.xlu0 %1767
        %v1769 = vrot.slane %v1449, 1
        %v1770 = vrot.slane %v1529, 1
        %v1771 = vsel %vm1304, %v1769, %v1770
        %v1772 = vrot.slane %v1450, 1
        %v1773 = vrot.slane %v1530, 1
        %v1774 = vsel %vm1304, %v1772, %v1773
        %v1775 = vrot.slane %v1451, 1
        %v1776 = vrot.slane %v1531, 1
        %v1777 = vsel %vm1304, %v1775, %v1776
        %v1778 = vrot.slane %v1452, 1
        %v1779 = vrot.slane %v1532, 1
        %v1780 = vsel %vm1304, %v1778, %v1779
        %v1781 = vrot.slane %v1453, 1
        %v1782 = vrot.slane %v1533, 1
        %v1783 = vsel %vm1304, %v1781, %v1782
        %v1784 = vrot.slane %v1454, 1
        %v1785 = vrot.slane %v1534, 1
        %v1786 = vsel %vm1304, %v1784, %v1785
        %v1787 = vrot.slane %v1455, 1
        %v1788 = vrot.slane %v1535, 1
        %v1789 = vsel %vm1304, %v1787, %v1788
        %v1790 = vrot.slane %v1456, 1
        %v1791 = vrot.slane %v1536, 1
        %v1792 = vsel %vm1304, %v1790, %v1791
        %v1793 = vrot.slane %v1457, 1
        %v1794 = vrot.slane %v1537, 1
        %v1795 = vsel %vm1304, %v1793, %v1794
        %v1796 = vrot.slane %v1458, 1
        %v1797 = vrot.slane %v1538, 1
        %v1798 = vsel %vm1304, %v1796, %v1797
        %v1799 = vrot.slane %v1459, 1
        %v1800 = vrot.slane %v1539, 1
        %v1801 = vsel %vm1304, %v1799, %v1800
        %v1802 = vrot.slane %v1460, 1
        %v1803 = vrot.slane %v1540, 1
        %v1804 = vsel %vm1304, %v1802, %v1803
        %v1805 = vrot.slane %v1461, 1
        %v1806 = vrot.slane %v1541, 1
        %v1807 = vsel %vm1304, %v1805, %v1806
        %v1808 = vrot.slane %v1462, 1
        %v1809 = vrot.slane %v1542, 1
        %v1810 = vsel %vm1304, %v1808, %v1809
        %v1811 = vrot.slane %v1463, 1
        %v1812 = vrot.slane %v1543, 1
        %v1813 = vsel %vm1304, %v1811, %v1812
        %v1814 = vrot.slane %v1464, 1
        %v1815 = vrot.slane %v1544, 1
        %v1816 = vsel %vm1304, %v1814, %v1815
        %1817 = vrot.lane.b32.xlu0 %v1771, 20
        %v1818 = vpop.permute.xlu0 %1817
        %1819 = vrot.lane.b32.xlu0 %v1774, 20
        %v1820 = vpop.permute.xlu0 %1819
        %1821 = vrot.lane.b32.xlu0 %v1777, 20
        %v1822 = vpop.permute.xlu0 %1821
        %1823 = vrot.lane.b32.xlu0 %v1780, 20
        %v1824 = vpop.permute.xlu0 %1823
        %1825 = vrot.lane.b32.xlu0 %v1783, 20
        %v1826 = vpop.permute.xlu0 %1825
        %1827 = vrot.lane.b32.xlu0 %v1786, 20
        %v1828 = vpop.permute.xlu0 %1827
        %1829 = vrot.lane.b32.xlu0 %v1789, 20
        %v1830 = vpop.permute.xlu0 %1829
        %1831 = vrot.lane.b32.xlu0 %v1792, 20
        %v1832 = vpop.permute.xlu0 %1831
        %1833 = vrot.lane.b32.xlu0 %v1795, 20
        %v1834 = vpop.permute.xlu0 %1833
        %1835 = vrot.lane.b32.xlu0 %v1798, 20
        %v1836 = vpop.permute.xlu0 %1835
        %1837 = vrot.lane.b32.xlu0 %v1801, 20
        %v1838 = vpop.permute.xlu0 %1837
        %1839 = vrot.lane.b32.xlu0 %v1804, 20
        %v1840 = vpop.permute.xlu0 %1839
        %1841 = vrot.lane.b32.xlu0 %v1807, 20
        %v1842 = vpop.permute.xlu0 %1841
        %1843 = vrot.lane.b32.xlu0 %v1810, 20
        %v1844 = vpop.permute.xlu0 %1843
        %1845 = vrot.lane.b32.xlu0 %v1813, 20
        %v1846 = vpop.permute.xlu0 %1845
        %1847 = vrot.lane.b32.xlu0 %v1816, 20
        %v1848 = vpop.permute.xlu0 %1847
        %v1881 = vunpack.c.l.b16 %v903
        %v1882 = vunpack.c.l.b16 %v904
        %v1883 = vunpack.c.l.b16 %v906
        %v1884 = vunpack.c.l.b16 %v907
        %v1885 = vunpack.c.l.b16 %v909
        %v1886 = vunpack.c.l.b16 %v910
        %v1887 = vunpack.c.l.b16 %v912
        %v1888 = vunpack.c.l.b16 %v913
        %v1889 = vunpack.c.l.b16 %v915
        %v1890 = vunpack.c.l.b16 %v916
        %v1891 = vunpack.c.l.b16 %v918
        %v1892 = vunpack.c.l.b16 %v919
        %v1893 = vunpack.c.l.b16 %v921
        %v1894 = vunpack.c.l.b16 %v922
        %v1895 = vunpack.c.l.b16 %v924
        %v1896 = vunpack.c.l.b16 %v925
        %v1897 = vunpack.c.l.b16 %v927
        %v1898 = vunpack.c.l.b16 %v928
        %v1899 = vunpack.c.l.b16 %v930
        %v1900 = vunpack.c.l.b16 %v931
        %v1901 = vunpack.c.l.b16 %v933
        %v1902 = vunpack.c.l.b16 %v934
        %v1903 = vunpack.c.l.b16 %v936
        %v1904 = vunpack.c.l.b16 %v937
        %v1905 = vunpack.c.l.b16 %v939
        %v1906 = vunpack.c.l.b16 %v940
        %v1907 = vunpack.c.l.b16 %v942
        %v1908 = vunpack.c.l.b16 %v943
        %v1909 = vunpack.c.l.b16 %v945
        %v1910 = vunpack.c.l.b16 %v946
        %v1911 = vunpack.c.l.b16 %v948
        %v1912 = vunpack.c.l.b16 %v949
        %v1913 = vpack.c.b16 %v1882, %v1881
        %v1914 = vpack.c.b16 %v1884, %v1883
        %v1915 = vpack.c.b16 %v1886, %v1885
        %v1916 = vpack.c.b16 %v1888, %v1887
        %v1917 = vpack.c.b16 %v1890, %v1889
        %v1918 = vpack.c.b16 %v1892, %v1891
        %v1919 = vpack.c.b16 %v1894, %v1893
        %v1920 = vpack.c.b16 %v1896, %v1895
        %v1921 = vpack.c.b16 %v1898, %v1897
        %v1922 = vpack.c.b16 %v1900, %v1899
        %v1923 = vpack.c.b16 %v1902, %v1901
        %v1924 = vpack.c.b16 %v1904, %v1903
        %v1925 = vpack.c.b16 %v1906, %v1905
        %v1926 = vpack.c.b16 %v1908, %v1907
        %v1927 = vpack.c.b16 %v1910, %v1909
        %v1928 = vpack.c.b16 %v1912, %v1911
        %1929 = vrot.lane.b32.xlu0 %v1913, 24
        %v1930 = vpop.permute.xlu0 %1929
        %1931 = vrot.lane.b32.xlu0 %v1914, 24
        %v1932 = vpop.permute.xlu0 %1931
        %1933 = vrot.lane.b32.xlu0 %v1915, 24
        %v1934 = vpop.permute.xlu0 %1933
        %1935 = vrot.lane.b32.xlu0 %v1916, 24
        %v1936 = vpop.permute.xlu0 %1935
        %1937 = vrot.lane.b32.xlu0 %v1917, 24
        %v1938 = vpop.permute.xlu0 %1937
        %1939 = vrot.lane.b32.xlu0 %v1918, 24
        %v1940 = vpop.permute.xlu0 %1939
        %1941 = vrot.lane.b32.xlu0 %v1919, 24
        %v1942 = vpop.permute.xlu0 %1941
        %1943 = vrot.lane.b32.xlu0 %v1920, 24
        %v1944 = vpop.permute.xlu0 %1943
        %1945 = vrot.lane.b32.xlu0 %v1921, 24
        %v1946 = vpop.permute.xlu0 %1945
        %1947 = vrot.lane.b32.xlu0 %v1922, 24
        %v1948 = vpop.permute.xlu0 %1947
        %1949 = vrot.lane.b32.xlu0 %v1923, 24
        %v1950 = vpop.permute.xlu0 %1949
        %1951 = vrot.lane.b32.xlu0 %v1924, 24
        %v1952 = vpop.permute.xlu0 %1951
        %1953 = vrot.lane.b32.xlu0 %v1925, 24
        %v1954 = vpop.permute.xlu0 %1953
        %1955 = vrot.lane.b32.xlu0 %v1926, 24
        %v1956 = vpop.permute.xlu0 %1955
        %1957 = vrot.lane.b32.xlu0 %v1927, 24
        %v1958 = vpop.permute.xlu0 %1957
        %1959 = vrot.lane.b32.xlu0 %v1928, 24
        %v1960 = vpop.permute.xlu0 %1959
        %v1977 = vunpack.c.l.b16 %v905
        %v1978 = vunpack.c.l.b16 %v908
        %v1979 = vunpack.c.l.b16 %v911
        %v1980 = vunpack.c.l.b16 %v914
        %v1981 = vunpack.c.l.b16 %v917
        %v1982 = vunpack.c.l.b16 %v920
        %v1983 = vunpack.c.l.b16 %v923
        %v1984 = vunpack.c.l.b16 %v926
        %v1985 = vunpack.c.l.b16 %v929
        %v1986 = vunpack.c.l.b16 %v932
        %v1987 = vunpack.c.l.b16 %v935
        %v1988 = vunpack.c.l.b16 %v938
        %v1989 = vunpack.c.l.b16 %v941
        %v1990 = vunpack.c.l.b16 %v944
        %v1991 = vunpack.c.l.b16 %v947
        %v1992 = vunpack.c.l.b16 %v950
        %v1993 = vpack.c.b16 %v1977, %v1977
        %v1994 = vpack.c.b16 %v1978, %v1978
        %v1995 = vpack.c.b16 %v1979, %v1979
        %v1996 = vpack.c.b16 %v1980, %v1980
        %v1997 = vpack.c.b16 %v1981, %v1981
        %v1998 = vpack.c.b16 %v1982, %v1982
        %v1999 = vpack.c.b16 %v1983, %v1983
        %v2000 = vpack.c.b16 %v1984, %v1984
        %v2001 = vpack.c.b16 %v1985, %v1985
        %v2002 = vpack.c.b16 %v1986, %v1986
        %v2003 = vpack.c.b16 %v1987, %v1987
        %v2004 = vpack.c.b16 %v1988, %v1988
        %v2005 = vpack.c.b16 %v1989, %v1989
        %v2006 = vpack.c.b16 %v1990, %v1990
        %v2007 = vpack.c.b16 %v1991, %v1991
        %v2008 = vpack.c.b16 %v1992, %v1992
        %v2010 = vshrl.u32 %v1913, 16
        %v2012 = vshll.u32 %v1913, 16
        %v2014 = vrot.slane %v2012, 1
        %v2015 = vor.u32 %v2010, %v2014
        %v2017 = vshll.u32 %v1993, 16
        %v2019 = vrot.slane %v2017, 1
        %v2020 = vsel %vm1079, %v2015, %v2019
        %v2022 = vshrl.u32 %v1914, 16
        %v2024 = vshll.u32 %v1914, 16
        %v2026 = vrot.slane %v2024, 1
        %v2027 = vor.u32 %v2022, %v2026
        %v2029 = vshll.u32 %v1994, 16
        %v2031 = vrot.slane %v2029, 1
        %v2032 = vsel %vm1079, %v2027, %v2031
        %v2034 = vshrl.u32 %v1915, 16
        %v2036 = vshll.u32 %v1915, 16
        %v2038 = vrot.slane %v2036, 1
        %v2039 = vor.u32 %v2034, %v2038
        %v2041 = vshll.u32 %v1995, 16
        %v2043 = vrot.slane %v2041, 1
        %v2044 = vsel %vm1079, %v2039, %v2043
        %v2046 = vshrl.u32 %v1916, 16
        %v2048 = vshll.u32 %v1916, 16
        %v2050 = vrot.slane %v2048, 1
        %v2051 = vor.u32 %v2046, %v2050
        %v2053 = vshll.u32 %v1996, 16
        %v2055 = vrot.slane %v2053, 1
        %v2056 = vsel %vm1079, %v2051, %v2055
        %v2058 = vshrl.u32 %v1917, 16
        %v2060 = vshll.u32 %v1917, 16
        %v2062 = vrot.slane %v2060, 1
        %v2063 = vor.u32 %v2058, %v2062
        %v2065 = vshll.u32 %v1997, 16
        %v2067 = vrot.slane %v2065, 1
        %v2068 = vsel %vm1079, %v2063, %v2067
        %v2070 = vshrl.u32 %v1918, 16
        %v2072 = vshll.u32 %v1918, 16
        %v2074 = vrot.slane %v2072, 1
        %v2075 = vor.u32 %v2070, %v2074
        %v2077 = vshll.u32 %v1998, 16
        %v2079 = vrot.slane %v2077, 1
        %v2080 = vsel %vm1079, %v2075, %v2079
        %v2082 = vshrl.u32 %v1919, 16
        %v2084 = vshll.u32 %v1919, 16
        %v2086 = vrot.slane %v2084, 1
        %v2087 = vor.u32 %v2082, %v2086
        %v2089 = vshll.u32 %v1999, 16
        %v2091 = vrot.slane %v2089, 1
        %v2092 = vsel %vm1079, %v2087, %v2091
        %v2094 = vshrl.u32 %v1920, 16
        %v2096 = vshll.u32 %v1920, 16
        %v2098 = vrot.slane %v2096, 1
        %v2099 = vor.u32 %v2094, %v2098
        %v2101 = vshll.u32 %v2000, 16
        %v2103 = vrot.slane %v2101, 1
        %v2104 = vsel %vm1079, %v2099, %v2103
        %v2106 = vshrl.u32 %v1921, 16
        %v2108 = vshll.u32 %v1921, 16
        %v2110 = vrot.slane %v2108, 1
        %v2111 = vor.u32 %v2106, %v2110
        %v2113 = vshll.u32 %v2001, 16
        %v2115 = vrot.slane %v2113, 1
        %v2116 = vsel %vm1079, %v2111, %v2115
        %v2118 = vshrl.u32 %v1922, 16
        %v2120 = vshll.u32 %v1922, 16
        %v2122 = vrot.slane %v2120, 1
        %v2123 = vor.u32 %v2118, %v2122
        %v2125 = vshll.u32 %v2002, 16
        %v2127 = vrot.slane %v2125, 1
        %v2128 = vsel %vm1079, %v2123, %v2127
        %v2130 = vshrl.u32 %v1923, 16
        %v2132 = vshll.u32 %v1923, 16
        %v2134 = vrot.slane %v2132, 1
        %v2135 = vor.u32 %v2130, %v2134
        %v2137 = vshll.u32 %v2003, 16
        %v2139 = vrot.slane %v2137, 1
        %v2140 = vsel %vm1079, %v2135, %v2139
        %v2142 = vshrl.u32 %v1924, 16
        %v2144 = vshll.u32 %v1924, 16
        %v2146 = vrot.slane %v2144, 1
        %v2147 = vor.u32 %v2142, %v2146
        %v2149 = vshll.u32 %v2004, 16
        %v2151 = vrot.slane %v2149, 1
        %v2152 = vsel %vm1079, %v2147, %v2151
        %v2154 = vshrl.u32 %v1925, 16
        %v2156 = vshll.u32 %v1925, 16
        %v2158 = vrot.slane %v2156, 1
        %v2159 = vor.u32 %v2154, %v2158
        %v2161 = vshll.u32 %v2005, 16
        %v2163 = vrot.slane %v2161, 1
        %v2164 = vsel %vm1079, %v2159, %v2163
        %v2166 = vshrl.u32 %v1926, 16
        %v2168 = vshll.u32 %v1926, 16
        %v2170 = vrot.slane %v2168, 1
        %v2171 = vor.u32 %v2166, %v2170
        %v2173 = vshll.u32 %v2006, 16
        %v2175 = vrot.slane %v2173, 1
        %v2176 = vsel %vm1079, %v2171, %v2175
        %v2178 = vshrl.u32 %v1927, 16
        %v2180 = vshll.u32 %v1927, 16
        %v2182 = vrot.slane %v2180, 1
        %v2183 = vor.u32 %v2178, %v2182
        %v2185 = vshll.u32 %v2007, 16
        %v2187 = vrot.slane %v2185, 1
        %v2188 = vsel %vm1079, %v2183, %v2187
        %v2190 = vshrl.u32 %v1928, 16
        %v2192 = vshll.u32 %v1928, 16
        %v2194 = vrot.slane %v2192, 1
        %v2195 = vor.u32 %v2190, %v2194
        %v2197 = vshll.u32 %v2008, 16
        %v2199 = vrot.slane %v2197, 1
        %v2200 = vsel %vm1079, %v2195, %v2199
        %2201 = vrot.lane.b32.xlu0 %v2020, 28
        %v2202 = vpop.permute.xlu0 %2201
        %2203 = vrot.lane.b32.xlu0 %v2032, 28
        %v2204 = vpop.permute.xlu0 %2203
        %2205 = vrot.lane.b32.xlu0 %v2044, 28
        %v2206 = vpop.permute.xlu0 %2205
        %2207 = vrot.lane.b32.xlu0 %v2056, 28
        %v2208 = vpop.permute.xlu0 %2207
        %2209 = vrot.lane.b32.xlu0 %v2068, 28
        %v2210 = vpop.permute.xlu0 %2209
        %2211 = vrot.lane.b32.xlu0 %v2080, 28
        %v2212 = vpop.permute.xlu0 %2211
        %2213 = vrot.lane.b32.xlu0 %v2092, 28
        %v2214 = vpop.permute.xlu0 %2213
        %2215 = vrot.lane.b32.xlu0 %v2104, 28
        %v2216 = vpop.permute.xlu0 %2215
        %2217 = vrot.lane.b32.xlu0 %v2116, 28
        %v2218 = vpop.permute.xlu0 %2217
        %2219 = vrot.lane.b32.xlu0 %v2128, 28
        %v2220 = vpop.permute.xlu0 %2219
        %2221 = vrot.lane.b32.xlu0 %v2140, 28
        %v2222 = vpop.permute.xlu0 %2221
        %2223 = vrot.lane.b32.xlu0 %v2152, 28
        %v2224 = vpop.permute.xlu0 %2223
        %2225 = vrot.lane.b32.xlu0 %v2164, 28
        %v2226 = vpop.permute.xlu0 %2225
        %2227 = vrot.lane.b32.xlu0 %v2176, 28
        %v2228 = vpop.permute.xlu0 %2227
        %2229 = vrot.lane.b32.xlu0 %v2188, 28
        %v2230 = vpop.permute.xlu0 %2229
        %2231 = vrot.lane.b32.xlu0 %v2200, 28
        %v2232 = vpop.permute.xlu0 %2231
        %v2233 = vrot.slane %v1913, 1
        %v2234 = vrot.slane %v1993, 1
        %v2235 = vsel %vm1304, %v2233, %v2234
        %v2236 = vrot.slane %v1914, 1
        %v2237 = vrot.slane %v1994, 1
        %v2238 = vsel %vm1304, %v2236, %v2237
        %v2239 = vrot.slane %v1915, 1
        %v2240 = vrot.slane %v1995, 1
        %v2241 = vsel %vm1304, %v2239, %v2240
        %v2242 = vrot.slane %v1916, 1
        %v2243 = vrot.slane %v1996, 1
        %v2244 = vsel %vm1304, %v2242, %v2243
        %v2245 = vrot.slane %v1917, 1
        %v2246 = vrot.slane %v1997, 1
        %v2247 = vsel %vm1304, %v2245, %v2246
        %v2248 = vrot.slane %v1918, 1
        %v2249 = vrot.slane %v1998, 1
        %v2250 = vsel %vm1304, %v2248, %v2249
        %v2251 = vrot.slane %v1919, 1
        %v2252 = vrot.slane %v1999, 1
        %v2253 = vsel %vm1304, %v2251, %v2252
        %v2254 = vrot.slane %v1920, 1
        %v2255 = vrot.slane %v2000, 1
        %v2256 = vsel %vm1304, %v2254, %v2255
        %v2257 = vrot.slane %v1921, 1
        %v2258 = vrot.slane %v2001, 1
        %v2259 = vsel %vm1304, %v2257, %v2258
        %v2260 = vrot.slane %v1922, 1
        %v2261 = vrot.slane %v2002, 1
        %v2262 = vsel %vm1304, %v2260, %v2261
        %v2263 = vrot.slane %v1923, 1
        %v2264 = vrot.slane %v2003, 1
        %v2265 = vsel %vm1304, %v2263, %v2264
        %v2266 = vrot.slane %v1924, 1
        %v2267 = vrot.slane %v2004, 1
        %v2268 = vsel %vm1304, %v2266, %v2267
        %v2269 = vrot.slane %v1925, 1
        %v2270 = vrot.slane %v2005, 1
        %v2271 = vsel %vm1304, %v2269, %v2270
        %v2272 = vrot.slane %v1926, 1
        %v2273 = vrot.slane %v2006, 1
        %v2274 = vsel %vm1304, %v2272, %v2273
        %v2275 = vrot.slane %v1927, 1
        %v2276 = vrot.slane %v2007, 1
        %v2277 = vsel %vm1304, %v2275, %v2276
        %v2278 = vrot.slane %v1928, 1
        %v2279 = vrot.slane %v2008, 1
        %v2280 = vsel %vm1304, %v2278, %v2279
        %2281 = vrot.lane.b32.xlu0 %v2235, 32
        %v2282 = vpop.permute.xlu0 %2281
        %2283 = vrot.lane.b32.xlu0 %v2238, 32
        %v2284 = vpop.permute.xlu0 %2283
        %2285 = vrot.lane.b32.xlu0 %v2241, 32
        %v2286 = vpop.permute.xlu0 %2285
        %2287 = vrot.lane.b32.xlu0 %v2244, 32
        %v2288 = vpop.permute.xlu0 %2287
        %2289 = vrot.lane.b32.xlu0 %v2247, 32
        %v2290 = vpop.permute.xlu0 %2289
        %2291 = vrot.lane.b32.xlu0 %v2250, 32
        %v2292 = vpop.permute.xlu0 %2291
        %2293 = vrot.lane.b32.xlu0 %v2253, 32
        %v2294 = vpop.permute.xlu0 %2293
        %2295 = vrot.lane.b32.xlu0 %v2256, 32
        %v2296 = vpop.permute.xlu0 %2295
        %2297 = vrot.lane.b32.xlu0 %v2259, 32
        %v2298 = vpop.permute.xlu0 %2297
        %2299 = vrot.lane.b32.xlu0 %v2262, 32
        %v2300 = vpop.permute.xlu0 %2299
        %2301 = vrot.lane.b32.xlu0 %v2265, 32
        %v2302 = vpop.permute.xlu0 %2301
        %2303 = vrot.lane.b32.xlu0 %v2268, 32
        %v2304 = vpop.permute.xlu0 %2303
        %2305 = vrot.lane.b32.xlu0 %v2271, 32
        %v2306 = vpop.permute.xlu0 %2305
        %2307 = vrot.lane.b32.xlu0 %v2274, 32
        %v2308 = vpop.permute.xlu0 %2307
        %2309 = vrot.lane.b32.xlu0 %v2277, 32
        %v2310 = vpop.permute.xlu0 %2309
        %2311 = vrot.lane.b32.xlu0 %v2280, 32
        %v2312 = vpop.permute.xlu0 %2311
        %vm2313 = vcmask 31744
        %v2315 = vsel %vm2313, %v1015, %v1273
        %v2317 = vsel %vm2313, %v1016, %v1275
        %v2319 = vsel %vm2313, %v1017, %v1277
        %v2321 = vsel %vm2313, %v1018, %v1279
        %v2323 = vsel %vm2313, %v1019, %v1281
        %v2325 = vsel %vm2313, %v1020, %v1283
        %v2327 = vsel %vm2313, %v1021, %v1285
        %v2329 = vsel %vm2313, %v1022, %v1287
        %v2331 = vsel %vm2313, %v1023, %v1289
        %v2333 = vsel %vm2313, %v1024, %v1291
        %v2335 = vsel %vm2313, %v1025, %v1293
        %v2337 = vsel %vm2313, %v1026, %v1295
        %v2339 = vsel %vm2313, %v1027, %v1297
        %v2341 = vsel %vm2313, %v1028, %v1299
        %v2343 = vsel %vm2313, %v1029, %v1301
        %v2345 = vsel %vm2313, %v1030, %v1303
        %vm2346 = vcmask 64512
        %v2348 = vsel %vm2346, %v2315, %v1354
        %v2350 = vsel %vm2346, %v2317, %v1356
        %v2352 = vsel %vm2346, %v2319, %v1358
        %v2354 = vsel %vm2346, %v2321, %v1360
        %v2356 = vsel %vm2346, %v2323, %v1362
        %v2358 = vsel %vm2346, %v2325, %v1364
        %v2360 = vsel %vm2346, %v2327, %v1366
        %v2362 = vsel %vm2346, %v2329, %v1368
        %v2364 = vsel %vm2346, %v2331, %v1370
        %v2366 = vsel %vm2346, %v2333, %v1372
        %v2368 = vsel %vm2346, %v2335, %v1374
        %v2370 = vsel %vm2346, %v2337, %v1376
        %v2372 = vsel %vm2346, %v2339, %v1378
        %v2374 = vsel %vm2346, %v2341, %v1380
        %v2376 = vsel %vm2346, %v2343, %v1382
        %v2378 = vsel %vm2346, %v2345, %v1384
        %vm2379 = vcmask 97280
        %v2381 = vsel %vm2379, %v2348, %v1466
        %v2383 = vsel %vm2379, %v2350, %v1468
        %v2385 = vsel %vm2379, %v2352, %v1470
        %v2387 = vsel %vm2379, %v2354, %v1472
        %v2389 = vsel %vm2379, %v2356, %v1474
        %v2391 = vsel %vm2379, %v2358, %v1476
        %v2393 = vsel %vm2379, %v2360, %v1478
        %v2395 = vsel %vm2379, %v2362, %v1480
        %v2397 = vsel %vm2379, %v2364, %v1482
        %v2399 = vsel %vm2379, %v2366, %v1484
        %v2401 = vsel %vm2379, %v2368, %v1486
        %v2403 = vsel %vm2379, %v2370, %v1488
        %v2405 = vsel %vm2379, %v2372, %v1490
        %v2407 = vsel %vm2379, %v2374, %v1492
        %v2409 = vsel %vm2379, %v2376, %v1494
        %v2411 = vsel %vm2379, %v2378, %v1496
        %vm2412 = vcmask 130048
        %v2414 = vsel %vm2412, %v2381, %v1738
        %v2416 = vsel %vm2412, %v2383, %v1740
        %v2418 = vsel %vm2412, %v2385, %v1742
        %v2420 = vsel %vm2412, %v2387, %v1744
        %v2422 = vsel %vm2412, %v2389, %v1746
        %v2424 = vsel %vm2412, %v2391, %v1748
        %v2426 = vsel %vm2412, %v2393, %v1750
        %v2428 = vsel %vm2412, %v2395, %v1752
        %v2430 = vsel %vm2412, %v2397, %v1754
        %v2432 = vsel %vm2412, %v2399, %v1756
        %v2434 = vsel %vm2412, %v2401, %v1758
        %v2436 = vsel %vm2412, %v2403, %v1760
        %v2438 = vsel %vm2412, %v2405, %v1762
        %v2440 = vsel %vm2412, %v2407, %v1764
        %v2442 = vsel %vm2412, %v2409, %v1766
        %v2444 = vsel %vm2412, %v2411, %v1768
        %vm2445 = vcmask 162816
        %v2447 = vsel %vm2445, %v2414, %v1818
        %v2449 = vsel %vm2445, %v2416, %v1820
        %v2451 = vsel %vm2445, %v2418, %v1822
        %v2453 = vsel %vm2445, %v2420, %v1824
        %v2455 = vsel %vm2445, %v2422, %v1826
        %v2457 = vsel %vm2445, %v2424, %v1828
        %v2459 = vsel %vm2445, %v2426, %v1830
        %v2461 = vsel %vm2445, %v2428, %v1832
        %v2463 = vsel %vm2445, %v2430, %v1834
        %v2465 = vsel %vm2445, %v2432, %v1836
        %v2467 = vsel %vm2445, %v2434, %v1838
        %v2469 = vsel %vm2445, %v2436, %v1840
        %v2471 = vsel %vm2445, %v2438, %v1842
        %v2473 = vsel %vm2445, %v2440, %v1844
        %v2475 = vsel %vm2445, %v2442, %v1846
        %v2477 = vsel %vm2445, %v2444, %v1848
        %vm2478 = vcmask 195584
        %v2480 = vsel %vm2478, %v2447, %v1930
        %v2482 = vsel %vm2478, %v2449, %v1932
        %v2484 = vsel %vm2478, %v2451, %v1934
        %v2486 = vsel %vm2478, %v2453, %v1936
        %v2488 = vsel %vm2478, %v2455, %v1938
        %v2490 = vsel %vm2478, %v2457, %v1940
        %v2492 = vsel %vm2478, %v2459, %v1942
        %v2494 = vsel %vm2478, %v2461, %v1944
        %v2496 = vsel %vm2478, %v2463, %v1946
        %v2498 = vsel %vm2478, %v2465, %v1948
        %v2500 = vsel %vm2478, %v2467, %v1950
        %v2502 = vsel %vm2478, %v2469, %v1952
        %v2504 = vsel %vm2478, %v2471, %v1954
        %v2506 = vsel %vm2478, %v2473, %v1956
        %v2508 = vsel %vm2478, %v2475, %v1958
        %v2510 = vsel %vm2478, %v2477, %v1960
        %vm2511 = vcmask 228352
        %v2513 = vsel %vm2511, %v2480, %v2202
        %v2515 = vsel %vm2511, %v2482, %v2204
        %v2517 = vsel %vm2511, %v2484, %v2206
        %v2519 = vsel %vm2511, %v2486, %v2208
        %v2521 = vsel %vm2511, %v2488, %v2210
        %v2523 = vsel %vm2511, %v2490, %v2212
        %v2525 = vsel %vm2511, %v2492, %v2214
        %v2527 = vsel %vm2511, %v2494, %v2216
        %v2529 = vsel %vm2511, %v2496, %v2218
        %v2531 = vsel %vm2511, %v2498, %v2220
        %v2533 = vsel %vm2511, %v2500, %v2222
        %v2535 = vsel %vm2511, %v2502, %v2224
        %v2537 = vsel %vm2511, %v2504, %v2226
        %v2539 = vsel %vm2511, %v2506, %v2228
        %v2541 = vsel %vm2511, %v2508, %v2230
        %v2543 = vsel %vm2511, %v2510, %v2232
        %vm2544 = vcmask 261120
        %v2546 = vsel %vm2544, %v2513, %v2282
        %v2548 = vsel %vm2544, %v2515, %v2284
        %v2550 = vsel %vm2544, %v2517, %v2286
        %v2552 = vsel %vm2544, %v2519, %v2288
        %v2554 = vsel %vm2544, %v2521, %v2290
        %v2556 = vsel %vm2544, %v2523, %v2292
        %v2558 = vsel %vm2544, %v2525, %v2294
        %v2560 = vsel %vm2544, %v2527, %v2296
        %v2562 = vsel %vm2544, %v2529, %v2298
        %v2564 = vsel %vm2544, %v2531, %v2300
        %v2566 = vsel %vm2544, %v2533, %v2302
        %v2568 = vsel %vm2544, %v2535, %v2304
        %v2570 = vsel %vm2544, %v2537, %v2306
        %v2572 = vsel %vm2544, %v2539, %v2308
        %v2574 = vsel %vm2544, %v2541, %v2310
        %v2576 = vsel %vm2544, %v2543, %v2312
        %v2577 = vld [vmem:[%s210] sm:$0xf]
        %v2578 = vld [vmem:[%s210 + $0x4] sm:$0xf]
        %v2579 = vld [vmem:[%s210 + $0x8] sm:$0xf]
        %v2580 = vld [vmem:[%s210 + $0xc] sm:$0xf]
        %v2581 = vld [vmem:[%s210 + $0x10] sm:$0x3]
        %v2582 = vld [vmem:[%s213] sm:$0x1]
        %v2584 = vperm.slane %v2582, 0
        %v2591 = vunpack.c.l.b16 %v2577
        %v2592 = vunpack.c.l.b16 %v2578
        %v2593 = vunpack.c.l.b16 %v2579
        %v2594 = vunpack.c.l.b16 %v2580
        %v2595 = vunpack.c.l.b16 %v2581
        %v2596 = vpack.c.b16 %v2592, %v2591
        %v2597 = vpack.c.b16 %v2594, %v2593
        %v2598 = vpack.c.b16 %v2595, %v2595
        %vm2601 = vcmask 293888
        %v2602 = vsel %vm2601, %v2546, 0
        %v2604 = vsel %vm2601, %v2548, 0
        %v2606 = vsel %vm2601, %v2550, 0
        %v2608 = vsel %vm2601, %v2552, 0
        %v2610 = vsel %vm2601, %v2554, 0
        %v2612 = vsel %vm2601, %v2556, 0
        %v2614 = vsel %vm2601, %v2558, 0
        %v2616 = vsel %vm2601, %v2560, 0
        %v2618 = vsel %vm2601, %v2562, 0
        %v2620 = vsel %vm2601, %v2564, 0
        %v2622 = vsel %vm2601, %v2566, 0
        %v2624 = vsel %vm2601, %v2568, 0
        %v2626 = vsel %vm2601, %v2570, 0
        %v2628 = vsel %vm2601, %v2572, 0
        %v2630 = vsel %vm2601, %v2574, 0
        %v2632 = vsel %vm2601, %v2576, 0
        %vm2634 = vcmask 1041408
        %v2636 = vsel %vm2634, %v2598, 0
        %2638 = vmatpush.bf16.msra.mxu0 0
        %2639 = vmatpush.bf16.msra.mxu0 0
        %2640 = vmatpush.bf16.msra.mxu0 0
        %2641 = vmatpush.bf16.msra.mxu0 0
        %2642 = vmatpush.bf16.msra.mxu0 0
        %2643 = vmatpush.bf16.msra.mxu0 %v2636
        %2644 = vmatpush.bf16.msra.mxu0 %v2597
        %2645 = vmatpush.bf16.msra.mxu0 %v2596
        %2646 = vmatmul.bf16.gmra.mxu0 %v2602
        %v2647 = vpop.f32.mrf.mxu0
        %v2648 = vadd.f32 %v2584, %v2647
        %v2649 = vpop.f32.mrf.mxu0
        %v2650 = vadd.f32 %v2584, %v2649
        %2651 = vmatmul.bf16.gmra.mxu0 %v2604
        %v2652 = vpop.f32.mrf.mxu0
        %v2653 = vadd.f32 %v2584, %v2652
        %v2654 = vpop.f32.mrf.mxu0
        %v2655 = vadd.f32 %v2584, %v2654
        %2656 = vmatmul.bf16.gmra.mxu0 %v2606
        %v2657 = vpop.f32.mrf.mxu0
        %v2658 = vadd.f32 %v2584, %v2657
        %v2659 = vpop.f32.mrf.mxu0
        %v2660 = vadd.f32 %v2584, %v2659
        %2661 = vmatmul.bf16.gmra.mxu0 %v2608
        %v2662 = vpop.f32.mrf.mxu0
        %v2663 = vadd.f32 %v2584, %v2662
        %v2664 = vpop.f32.mrf.mxu0
        %v2665 = vadd.f32 %v2584, %v2664
        %2666 = vmatmul.bf16.gmra.mxu0 %v2610
        %v2667 = vpop.f32.mrf.mxu0
        %v2668 = vadd.f32 %v2584, %v2667
        %v2669 = vpop.f32.mrf.mxu0
        %v2670 = vadd.f32 %v2584, %v2669
        %2671 = vmatmul.bf16.gmra.mxu0 %v2612
        %v2672 = vpop.f32.mrf.mxu0
        %v2673 = vadd.f32 %v2584, %v2672
        %v2674 = vpop.f32.mrf.mxu0
        %v2675 = vadd.f32 %v2584, %v2674
        %2676 = vmatmul.bf16.gmra.mxu0 %v2614
        %v2677 = vpop.f32.mrf.mxu0
        %v2678 = vadd.f32 %v2584, %v2677
        %v2679 = vpop.f32.mrf.mxu0
        %v2680 = vadd.f32 %v2584, %v2679
        %2681 = vmatmul.bf16.gmra.mxu0 %v2616
        %v2682 = vpop.f32.mrf.mxu0
        %v2683 = vadd.f32 %v2584, %v2682
        %v2684 = vpop.f32.mrf.mxu0
        %v2685 = vadd.f32 %v2584, %v2684
        %2686 = vmatmul.bf16.gmra.mxu0 %v2618
        %v2687 = vpop.f32.mrf.mxu0
        %v2688 = vadd.f32 %v2584, %v2687
        %v2689 = vpop.f32.mrf.mxu0
        %v2690 = vadd.f32 %v2584, %v2689
        %2691 = vmatmul.bf16.gmra.mxu0 %v2620
        %v2692 = vpop.f32.mrf.mxu0
        %v2693 = vadd.f32 %v2584, %v2692
        %v2694 = vpop.f32.mrf.mxu0
        %v2695 = vadd.f32 %v2584, %v2694
        %2696 = vmatmul.bf16.gmra.mxu0 %v2622
        %v2697 = vpop.f32.mrf.mxu0
        %v2698 = vadd.f32 %v2584, %v2697
        %v2699 = vpop.f32.mrf.mxu0
        %v2700 = vadd.f32 %v2584, %v2699
        %2701 = vmatmul.bf16.gmra.mxu0 %v2624
        %v2702 = vpop.f32.mrf.mxu0
        %v2703 = vadd.f32 %v2584, %v2702
        %v2704 = vpop.f32.mrf.mxu0
        %v2705 = vadd.f32 %v2584, %v2704
        %2706 = vmatmul.bf16.gmra.mxu0 %v2626
        %v2707 = vpop.f32.mrf.mxu0
        %v2708 = vadd.f32 %v2584, %v2707
        %v2709 = vpop.f32.mrf.mxu0
        %v2710 = vadd.f32 %v2584, %v2709
        %2711 = vmatmul.bf16.gmra.mxu0 %v2628
        %v2712 = vpop.f32.mrf.mxu0
        %v2713 = vadd.f32 %v2584, %v2712
        %v2714 = vpop.f32.mrf.mxu0
        %v2715 = vadd.f32 %v2584, %v2714
        %2716 = vmatmul.bf16.gmra.mxu0 %v2630
        %v2717 = vpop.f32.mrf.mxu0
        %v2718 = vadd.f32 %v2584, %v2717
        %v2719 = vpop.f32.mrf.mxu0
        %v2720 = vadd.f32 %v2584, %v2719
        %2721 = vmatmul.bf16.gmra.mxu0 %v2632
        %v2722 = vpop.f32.mrf.mxu0
        %v2723 = vadd.f32 %v2584, %v2722
        %v2724 = vpop.f32.mrf.mxu0
        %v2725 = vadd.f32 %v2584, %v2724
        %2726 = vdwg.mxu0
        %v2727 = vmax.f32 %v2648, 0.0
        %v2728 = vmax.f32 %v2650, 0.0
        %v2729 = vmax.f32 %v2653, 0.0
        %v2730 = vmax.f32 %v2655, 0.0
        %v2731 = vmax.f32 %v2658, 0.0
        %v2732 = vmax.f32 %v2660, 0.0
        %v2733 = vmax.f32 %v2663, 0.0
        %v2734 = vmax.f32 %v2665, 0.0
        %v2735 = vmax.f32 %v2668, 0.0
        %v2736 = vmax.f32 %v2670, 0.0
        %v2737 = vmax.f32 %v2673, 0.0
        %v2738 = vmax.f32 %v2675, 0.0
        %v2739 = vmax.f32 %v2678, 0.0
        %v2740 = vmax.f32 %v2680, 0.0
        %v2741 = vmax.f32 %v2683, 0.0
        %v2742 = vmax.f32 %v2685, 0.0
        %v2743 = vmax.f32 %v2688, 0.0
        %v2744 = vmax.f32 %v2690, 0.0
        %v2745 = vmax.f32 %v2693, 0.0
        %v2746 = vmax.f32 %v2695, 0.0
        %v2747 = vmax.f32 %v2698, 0.0
        %v2748 = vmax.f32 %v2700, 0.0
        %v2749 = vmax.f32 %v2703, 0.0
        %v2750 = vmax.f32 %v2705, 0.0
        %v2751 = vmax.f32 %v2708, 0.0
        %v2752 = vmax.f32 %v2710, 0.0
        %v2753 = vmax.f32 %v2713, 0.0
        %v2754 = vmax.f32 %v2715, 0.0
        %v2755 = vmax.f32 %v2718, 0.0
        %v2756 = vmax.f32 %v2720, 0.0
        %v2757 = vmax.f32 %v2723, 0.0
        %v2758 = vmax.f32 %v2725, 0.0
        %v2791 = vrot.slane %v2727, 2
        %v2792 = vrot.slane %v2727, 4
        %v2793 = vrot.slane %v2727, 6
        %v2794 = vrot.slane %v2728, 2
        %v2795 = vrot.slane %v2728, 4
        %v2796 = vrot.slane %v2728, 6
        %v2797 = vrot.slane %v2729, 2
        %v2798 = vrot.slane %v2729, 4
        %v2799 = vrot.slane %v2729, 6
        %v2800 = vrot.slane %v2730, 2
        %v2801 = vrot.slane %v2730, 4
        %v2802 = vrot.slane %v2730, 6
        %v2803 = vrot.slane %v2731, 2
        %v2804 = vrot.slane %v2731, 4
        %v2805 = vrot.slane %v2731, 6
        %v2806 = vrot.slane %v2732, 2
        %v2807 = vrot.slane %v2732, 4
        %v2808 = vrot.slane %v2732, 6
        %v2809 = vrot.slane %v2733, 2
        %v2810 = vrot.slane %v2733, 4
        %v2811 = vrot.slane %v2733, 6
        %v2812 = vrot.slane %v2734, 2
        %v2813 = vrot.slane %v2734, 4
        %v2814 = vrot.slane %v2734, 6
        %v2815 = vrot.slane %v2735, 2
        %v2816 = vrot.slane %v2735, 4
        %v2817 = vrot.slane %v2735, 6
        %v2818 = vrot.slane %v2736, 2
        %v2819 = vrot.slane %v2736, 4
        %v2820 = vrot.slane %v2736, 6
        %v2821 = vrot.slane %v2737, 2
        %v2822 = vrot.slane %v2737, 4
        %v2823 = vrot.slane %v2737, 6
        %v2824 = vrot.slane %v2738, 2
        %v2825 = vrot.slane %v2738, 4
        %v2826 = vrot.slane %v2738, 6
        %v2827 = vrot.slane %v2739, 2
        %v2828 = vrot.slane %v2739, 4
        %v2829 = vrot.slane %v2739, 6
        %v2830 = vrot.slane %v2740, 2
        %v2831 = vrot.slane %v2740, 4
        %v2832 = vrot.slane %v2740, 6
        %v2833 = vrot.slane %v2741, 2
        %v2834 = vrot.slane %v2741, 4
        %v2835 = vrot.slane %v2741, 6
        %v2836 = vrot.slane %v2742, 2
        %v2837 = vrot.slane %v2742, 4
        %v2838 = vrot.slane %v2742, 6
        %v2839 = vrot.slane %v2743, 2
        %v2840 = vrot.slane %v2743, 4
        %v2841 = vrot.slane %v2743, 6
        %v2842 = vrot.slane %v2744, 2
        %v2843 = vrot.slane %v2744, 4
        %v2844 = vrot.slane %v2744, 6
        %v2845 = vrot.slane %v2745, 2
        %v2846 = vrot.slane %v2745, 4
        %v2847 = vrot.slane %v2745, 6
        %v2848 = vrot.slane %v2746, 2
        %v2849 = vrot.slane %v2746, 4
        %v2850 = vrot.slane %v2746, 6
        %v2851 = vrot.slane %v2747, 2
        %v2852 = vrot.slane %v2747, 4
        %v2853 = vrot.slane %v2747, 6
        %v2854 = vrot.slane %v2748, 2
        %v2855 = vrot.slane %v2748, 4
        %v2856 = vrot.slane %v2748, 6
        %v2857 = vrot.slane %v2749, 2
        %v2858 = vrot.slane %v2749, 4
        %v2859 = vrot.slane %v2749, 6
        %v2860 = vrot.slane %v2750, 2
        %v2861 = vrot.slane %v2750, 4
        %v2862 = vrot.slane %v2750, 6
        %v2863 = vrot.slane %v2751, 2
        %v2864 = vrot.slane %v2751, 4
        %v2865 = vrot.slane %v2751, 6
        %v2866 = vrot.slane %v2752, 2
        %v2867 = vrot.slane %v2752, 4
        %v2868 = vrot.slane %v2752, 6
        %v2869 = vrot.slane %v2753, 2
        %v2870 = vrot.slane %v2753, 4
        %v2871 = vrot.slane %v2753, 6
        %v2872 = vrot.slane %v2754, 2
        %v2873 = vrot.slane %v2754, 4
        %v2874 = vrot.slane %v2754, 6
        %v2875 = vrot.slane %v2755, 2
        %v2876 = vrot.slane %v2755, 4
        %v2877 = vrot.slane %v2755, 6
        %v2878 = vrot.slane %v2756, 2
        %v2879 = vrot.slane %v2756, 4
        %v2880 = vrot.slane %v2756, 6
        %v2881 = vrot.slane %v2757, 2
        %v2882 = vrot.slane %v2757, 4
        %v2883 = vrot.slane %v2757, 6
        %v2884 = vrot.slane %v2758, 2
        %v2885 = vrot.slane %v2758, 4
        %v2886 = vrot.slane %v2758, 6
        %vm2983 = vcmask 58368
        %v2984 = vsel %vm2983, %v2727, -inf
        %v2985 = vrot.slane %v2984, 4
        %v2986 = vmax.f32 %v2984, %v2985
        %v2987 = vrot.slane %v2986, 2
        %v2988 = vmax.f32 %v2986, %v2987
        %v2989 = vrot.slane %v2988, 1
        %v2990 = vmax.f32 %v2988, %v2989
        %v2991 = vsel %vm2983, %v2791, -inf
        %v2992 = vrot.slane %v2991, 4
        %v2993 = vmax.f32 %v2991, %v2992
        %v2994 = vrot.slane %v2993, 2
        %v2995 = vmax.f32 %v2993, %v2994
        %v2996 = vrot.slane %v2995, 1
        %v2997 = vmax.f32 %v2995, %v2996
        %v2998 = vsel %vm2983, %v2792, -inf
        %v2999 = vrot.slane %v2998, 4
        %v3000 = vmax.f32 %v2998, %v2999
        %v3001 = vrot.slane %v3000, 2
        %v3002 = vmax.f32 %v3000, %v3001
        %v3003 = vrot.slane %v3002, 1
        %v3004 = vmax.f32 %v3002, %v3003
        %v3005 = vsel %vm2983, %v2793, -inf
        %v3006 = vrot.slane %v3005, 4
        %v3007 = vmax.f32 %v3005, %v3006
        %v3008 = vrot.slane %v3007, 2
        %v3009 = vmax.f32 %v3007, %v3008
        %v3010 = vrot.slane %v3009, 1
        %v3011 = vmax.f32 %v3009, %v3010
        %v3012 = vsel %vm2983, %v2728, -inf
        %v3013 = vrot.slane %v3012, 4
        %v3014 = vmax.f32 %v3012, %v3013
        %v3015 = vrot.slane %v3014, 2
        %v3016 = vmax.f32 %v3014, %v3015
        %v3017 = vrot.slane %v3016, 1
        %v3018 = vmax.f32 %v3016, %v3017
        %v3019 = vsel %vm2983, %v2794, -inf
        %v3020 = vrot.slane %v3019, 4
        %v3021 = vmax.f32 %v3019, %v3020
        %v3022 = vrot.slane %v3021, 2
        %v3023 = vmax.f32 %v3021, %v3022
        %v3024 = vrot.slane %v3023, 1
        %v3025 = vmax.f32 %v3023, %v3024
        %v3026 = vsel %vm2983, %v2795, -inf
        %v3027 = vrot.slane %v3026, 4
        %v3028 = vmax.f32 %v3026, %v3027
        %v3029 = vrot.slane %v3028, 2
        %v3030 = vmax.f32 %v3028, %v3029
        %v3031 = vrot.slane %v3030, 1
        %v3032 = vmax.f32 %v3030, %v3031
        %v3033 = vsel %vm2983, %v2796, -inf
        %v3034 = vrot.slane %v3033, 4
        %v3035 = vmax.f32 %v3033, %v3034
        %v3036 = vrot.slane %v3035, 2
        %v3037 = vmax.f32 %v3035, %v3036
        %v3038 = vrot.slane %v3037, 1
        %v3039 = vmax.f32 %v3037, %v3038
        %v3040 = vsel %vm2983, %v2729, -inf
        %v3041 = vrot.slane %v3040, 4
        %v3042 = vmax.f32 %v3040, %v3041
        %v3043 = vrot.slane %v3042, 2
        %v3044 = vmax.f32 %v3042, %v3043
        %v3045 = vrot.slane %v3044, 1
        %v3046 = vmax.f32 %v3044, %v3045
        %v3047 = vsel %vm2983, %v2797, -inf
        %v3048 = vrot.slane %v3047, 4
        %v3049 = vmax.f32 %v3047, %v3048
        %v3050 = vrot.slane %v3049, 2
        %v3051 = vmax.f32 %v3049, %v3050
        %v3052 = vrot.slane %v3051, 1
        %v3053 = vmax.f32 %v3051, %v3052
        %v3054 = vsel %vm2983, %v2798, -inf
        %v3055 = vrot.slane %v3054, 4
        %v3056 = vmax.f32 %v3054, %v3055
        %v3057 = vrot.slane %v3056, 2
        %v3058 = vmax.f32 %v3056, %v3057
        %v3059 = vrot.slane %v3058, 1
        %v3060 = vmax.f32 %v3058, %v3059
        %v3061 = vsel %vm2983, %v2799, -inf
        %v3062 = vrot.slane %v3061, 4
        %v3063 = vmax.f32 %v3061, %v3062
        %v3064 = vrot.slane %v3063, 2
        %v3065 = vmax.f32 %v3063, %v3064
        %v3066 = vrot.slane %v3065, 1
        %v3067 = vmax.f32 %v3065, %v3066
        %v3068 = vsel %vm2983, %v2730, -inf
        %v3069 = vrot.slane %v3068, 4
        %v3070 = vmax.f32 %v3068, %v3069
        %v3071 = vrot.slane %v3070, 2
        %v3072 = vmax.f32 %v3070, %v3071
        %v3073 = vrot.slane %v3072, 1
        %v3074 = vmax.f32 %v3072, %v3073
        %v3075 = vsel %vm2983, %v2800, -inf
        %v3076 = vrot.slane %v3075, 4
        %v3077 = vmax.f32 %v3075, %v3076
        %v3078 = vrot.slane %v3077, 2
        %v3079 = vmax.f32 %v3077, %v3078
        %v3080 = vrot.slane %v3079, 1
        %v3081 = vmax.f32 %v3079, %v3080
        %v3082 = vsel %vm2983, %v2801, -inf
        %v3083 = vrot.slane %v3082, 4
        %v3084 = vmax.f32 %v3082, %v3083
        %v3085 = vrot.slane %v3084, 2
        %v3086 = vmax.f32 %v3084, %v3085
        %v3087 = vrot.slane %v3086, 1
        %v3088 = vmax.f32 %v3086, %v3087
        %v3089 = vsel %vm2983, %v2802, -inf
        %v3090 = vrot.slane %v3089, 4
        %v3091 = vmax.f32 %v3089, %v3090
        %v3092 = vrot.slane %v3091, 2
        %v3093 = vmax.f32 %v3091, %v3092
        %v3094 = vrot.slane %v3093, 1
        %v3095 = vmax.f32 %v3093, %v3094
        %v3096 = vsel %vm2983, %v2731, -inf
        %v3097 = vrot.slane %v3096, 4
        %v3098 = vmax.f32 %v3096, %v3097
        %v3099 = vrot.slane %v3098, 2
        %v3100 = vmax.f32 %v3098, %v3099
        %v3101 = vrot.slane %v3100, 1
        %v3102 = vmax.f32 %v3100, %v3101
        %v3103 = vsel %vm2983, %v2803, -inf
        %v3104 = vrot.slane %v3103, 4
        %v3105 = vmax.f32 %v3103, %v3104
        %v3106 = vrot.slane %v3105, 2
        %v3107 = vmax.f32 %v3105, %v3106
        %v3108 = vrot.slane %v3107, 1
        %v3109 = vmax.f32 %v3107, %v3108
        %v3110 = vsel %vm2983, %v2804, -inf
        %v3111 = vrot.slane %v3110, 4
        %v3112 = vmax.f32 %v3110, %v3111
        %v3113 = vrot.slane %v3112, 2
        %v3114 = vmax.f32 %v3112, %v3113
        %v3115 = vrot.slane %v3114, 1
        %v3116 = vmax.f32 %v3114, %v3115
        %v3117 = vsel %vm2983, %v2805, -inf
        %v3118 = vrot.slane %v3117, 4
        %v3119 = vmax.f32 %v3117, %v3118
        %v3120 = vrot.slane %v3119, 2
        %v3121 = vmax.f32 %v3119, %v3120
        %v3122 = vrot.slane %v3121, 1
        %v3123 = vmax.f32 %v3121, %v3122
        %v3124 = vsel %vm2983, %v2732, -inf
        %v3125 = vrot.slane %v3124, 4
        %v3126 = vmax.f32 %v3124, %v3125
        %v3127 = vrot.slane %v3126, 2
        %v3128 = vmax.f32 %v3126, %v3127
        %v3129 = vrot.slane %v3128, 1
        %v3130 = vmax.f32 %v3128, %v3129
        %v3131 = vsel %vm2983, %v2806, -inf
        %v3132 = vrot.slane %v3131, 4
        %v3133 = vmax.f32 %v3131, %v3132
        %v3134 = vrot.slane %v3133, 2
        %v3135 = vmax.f32 %v3133, %v3134
        %v3136 = vrot.slane %v3135, 1
        %v3137 = vmax.f32 %v3135, %v3136
        %v3138 = vsel %vm2983, %v2807, -inf
        %v3139 = vrot.slane %v3138, 4
        %v3140 = vmax.f32 %v3138, %v3139
        %v3141 = vrot.slane %v3140, 2
        %v3142 = vmax.f32 %v3140, %v3141
        %v3143 = vrot.slane %v3142, 1
        %v3144 = vmax.f32 %v3142, %v3143
        %v3145 = vsel %vm2983, %v2808, -inf
        %v3146 = vrot.slane %v3145, 4
        %v3147 = vmax.f32 %v3145, %v3146
        %v3148 = vrot.slane %v3147, 2
        %v3149 = vmax.f32 %v3147, %v3148
        %v3150 = vrot.slane %v3149, 1
        %v3151 = vmax.f32 %v3149, %v3150
        %v3152 = vsel %vm2983, %v2733, -inf
        %v3153 = vrot.slane %v3152, 4
        %v3154 = vmax.f32 %v3152, %v3153
        %v3155 = vrot.slane %v3154, 2
        %v3156 = vmax.f32 %v3154, %v3155
        %v3157 = vrot.slane %v3156, 1
        %v3158 = vmax.f32 %v3156, %v3157
        %v3159 = vsel %vm2983, %v2809, -inf
        %v3160 = vrot.slane %v3159, 4
        %v3161 = vmax.f32 %v3159, %v3160
        %v3162 = vrot.slane %v3161, 2
        %v3163 = vmax.f32 %v3161, %v3162
        %v3164 = vrot.slane %v3163, 1
        %v3165 = vmax.f32 %v3163, %v3164
        %v3166 = vsel %vm2983, %v2810, -inf
        %v3167 = vrot.slane %v3166, 4
        %v3168 = vmax.f32 %v3166, %v3167
        %v3169 = vrot.slane %v3168, 2
        %v3170 = vmax.f32 %v3168, %v3169
        %v3171 = vrot.slane %v3170, 1
        %v3172 = vmax.f32 %v3170, %v3171
        %v3173 = vsel %vm2983, %v2811, -inf
        %v3174 = vrot.slane %v3173, 4
        %v3175 = vmax.f32 %v3173, %v3174
        %v3176 = vrot.slane %v3175, 2
        %v3177 = vmax.f32 %v3175, %v3176
        %v3178 = vrot.slane %v3177, 1
        %v3179 = vmax.f32 %v3177, %v3178
        %v3180 = vsel %vm2983, %v2734, -inf
        %v3181 = vrot.slane %v3180, 4
        %v3182 = vmax.f32 %v3180, %v3181
        %v3183 = vrot.slane %v3182, 2
        %v3184 = vmax.f32 %v3182, %v3183
        %v3185 = vrot.slane %v3184, 1
        %v3186 = vmax.f32 %v3184, %v3185
        %v3187 = vsel %vm2983, %v2812, -inf
        %v3188 = vrot.slane %v3187, 4
        %v3189 = vmax.f32 %v3187, %v3188
        %v3190 = vrot.slane %v3189, 2
        %v3191 = vmax.f32 %v3189, %v3190
        %v3192 = vrot.slane %v3191, 1
        %v3193 = vmax.f32 %v3191, %v3192
        %v3194 = vsel %vm2983, %v2813, -inf
        %v3195 = vrot.slane %v3194, 4
        %v3196 = vmax.f32 %v3194, %v3195
        %v3197 = vrot.slane %v3196, 2
        %v3198 = vmax.f32 %v3196, %v3197
        %v3199 = vrot.slane %v3198, 1
        %v3200 = vmax.f32 %v3198, %v3199
        %v3201 = vsel %vm2983, %v2814, -inf
        %v3202 = vrot.slane %v3201, 4
        %v3203 = vmax.f32 %v3201, %v3202
        %v3204 = vrot.slane %v3203, 2
        %v3205 = vmax.f32 %v3203, %v3204
        %v3206 = vrot.slane %v3205, 1
        %v3207 = vmax.f32 %v3205, %v3206
        %v3208 = vsel %vm2983, %v2735, -inf
        %v3209 = vrot.slane %v3208, 4
        %v3210 = vmax.f32 %v3208, %v3209
        %v3211 = vrot.slane %v3210, 2
        %v3212 = vmax.f32 %v3210, %v3211
        %v3213 = vrot.slane %v3212, 1
        %v3214 = vmax.f32 %v3212, %v3213
        %v3215 = vsel %vm2983, %v2815, -inf
        %v3216 = vrot.slane %v3215, 4
        %v3217 = vmax.f32 %v3215, %v3216
        %v3218 = vrot.slane %v3217, 2
        %v3219 = vmax.f32 %v3217, %v3218
        %v3220 = vrot.slane %v3219, 1
        %v3221 = vmax.f32 %v3219, %v3220
        %v3222 = vsel %vm2983, %v2816, -inf
        %v3223 = vrot.slane %v3222, 4
        %v3224 = vmax.f32 %v3222, %v3223
        %v3225 = vrot.slane %v3224, 2
        %v3226 = vmax.f32 %v3224, %v3225
        %v3227 = vrot.slane %v3226, 1
        %v3228 = vmax.f32 %v3226, %v3227
        %v3229 = vsel %vm2983, %v2817, -inf
        %v3230 = vrot.slane %v3229, 4
        %v3231 = vmax.f32 %v3229, %v3230
        %v3232 = vrot.slane %v3231, 2
        %v3233 = vmax.f32 %v3231, %v3232
        %v3234 = vrot.slane %v3233, 1
        %v3235 = vmax.f32 %v3233, %v3234
        %v3236 = vsel %vm2983, %v2736, -inf
        %v3237 = vrot.slane %v3236, 4
        %v3238 = vmax.f32 %v3236, %v3237
        %v3239 = vrot.slane %v3238, 2
        %v3240 = vmax.f32 %v3238, %v3239
        %v3241 = vrot.slane %v3240, 1
        %v3242 = vmax.f32 %v3240, %v3241
        %v3243 = vsel %vm2983, %v2818, -inf
        %v3244 = vrot.slane %v3243, 4
        %v3245 = vmax.f32 %v3243, %v3244
        %v3246 = vrot.slane %v3245, 2
        %v3247 = vmax.f32 %v3245, %v3246
        %v3248 = vrot.slane %v3247, 1
        %v3249 = vmax.f32 %v3247, %v3248
        %v3250 = vsel %vm2983, %v2819, -inf
        %v3251 = vrot.slane %v3250, 4
        %v3252 = vmax.f32 %v3250, %v3251
        %v3253 = vrot.slane %v3252, 2
        %v3254 = vmax.f32 %v3252, %v3253
        %v3255 = vrot.slane %v3254, 1
        %v3256 = vmax.f32 %v3254, %v3255
        %v3257 = vsel %vm2983, %v2820, -inf
        %v3258 = vrot.slane %v3257, 4
        %v3259 = vmax.f32 %v3257, %v3258
        %v3260 = vrot.slane %v3259, 2
        %v3261 = vmax.f32 %v3259, %v3260
        %v3262 = vrot.slane %v3261, 1
        %v3263 = vmax.f32 %v3261, %v3262
        %v3264 = vsel %vm2983, %v2737, -inf
        %v3265 = vrot.slane %v3264, 4
        %v3266 = vmax.f32 %v3264, %v3265
        %v3267 = vrot.slane %v3266, 2
        %v3268 = vmax.f32 %v3266, %v3267
        %v3269 = vrot.slane %v3268, 1
        %v3270 = vmax.f32 %v3268, %v3269
        %v3271 = vsel %vm2983, %v2821, -inf
        %v3272 = vrot.slane %v3271, 4
        %v3273 = vmax.f32 %v3271, %v3272
        %v3274 = vrot.slane %v3273, 2
        %v3275 = vmax.f32 %v3273, %v3274
        %v3276 = vrot.slane %v3275, 1
        %v3277 = vmax.f32 %v3275, %v3276
        %v3278 = vsel %vm2983, %v2822, -inf
        %v3279 = vrot.slane %v3278, 4
        %v3280 = vmax.f32 %v3278, %v3279
        %v3281 = vrot.slane %v3280, 2
        %v3282 = vmax.f32 %v3280, %v3281
        %v3283 = vrot.slane %v3282, 1
        %v3284 = vmax.f32 %v3282, %v3283
        %v3285 = vsel %vm2983, %v2823, -inf
        %v3286 = vrot.slane %v3285, 4
        %v3287 = vmax.f32 %v3285, %v3286
        %v3288 = vrot.slane %v3287, 2
        %v3289 = vmax.f32 %v3287, %v3288
        %v3290 = vrot.slane %v3289, 1
        %v3291 = vmax.f32 %v3289, %v3290
        %v3292 = vsel %vm2983, %v2738, -inf
        %v3293 = vrot.slane %v3292, 4
        %v3294 = vmax.f32 %v3292, %v3293
        %v3295 = vrot.slane %v3294, 2
        %v3296 = vmax.f32 %v3294, %v3295
        %v3297 = vrot.slane %v3296, 1
        %v3298 = vmax.f32 %v3296, %v3297
        %v3299 = vsel %vm2983, %v2824, -inf
        %v3300 = vrot.slane %v3299, 4
        %v3301 = vmax.f32 %v3299, %v3300
        %v3302 = vrot.slane %v3301, 2
        %v3303 = vmax.f32 %v3301, %v3302
        %v3304 = vrot.slane %v3303, 1
        %v3305 = vmax.f32 %v3303, %v3304
        %v3306 = vsel %vm2983, %v2825, -inf
        %v3307 = vrot.slane %v3306, 4
        %v3308 = vmax.f32 %v3306, %v3307
        %v3309 = vrot.slane %v3308, 2
        %v3310 = vmax.f32 %v3308, %v3309
        %v3311 = vrot.slane %v3310, 1
        %v3312 = vmax.f32 %v3310, %v3311
        %v3313 = vsel %vm2983, %v2826, -inf
        %v3314 = vrot.slane %v3313, 4
        %v3315 = vmax.f32 %v3313, %v3314
        %v3316 = vrot.slane %v3315, 2
        %v3317 = vmax.f32 %v3315, %v3316
        %v3318 = vrot.slane %v3317, 1
        %v3319 = vmax.f32 %v3317, %v3318
        %v3320 = vsel %vm2983, %v2739, -inf
        %v3321 = vrot.slane %v3320, 4
        %v3322 = vmax.f32 %v3320, %v3321
        %v3323 = vrot.slane %v3322, 2
        %v3324 = vmax.f32 %v3322, %v3323
        %v3325 = vrot.slane %v3324, 1
        %v3326 = vmax.f32 %v3324, %v3325
        %v3327 = vsel %vm2983, %v2827, -inf
        %v3328 = vrot.slane %v3327, 4
        %v3329 = vmax.f32 %v3327, %v3328
        %v3330 = vrot.slane %v3329, 2
        %v3331 = vmax.f32 %v3329, %v3330
        %v3332 = vrot.slane %v3331, 1
        %v3333 = vmax.f32 %v3331, %v3332
        %v3334 = vsel %vm2983, %v2828, -inf
        %v3335 = vrot.slane %v3334, 4
        %v3336 = vmax.f32 %v3334, %v3335
        %v3337 = vrot.slane %v3336, 2
        %v3338 = vmax.f32 %v3336, %v3337
        %v3339 = vrot.slane %v3338, 1
        %v3340 = vmax.f32 %v3338, %v3339
        %v3341 = vsel %vm2983, %v2829, -inf
        %v3342 = vrot.slane %v3341, 4
        %v3343 = vmax.f32 %v3341, %v3342
        %v3344 = vrot.slane %v3343, 2
        %v3345 = vmax.f32 %v3343, %v3344
        %v3346 = vrot.slane %v3345, 1
        %v3347 = vmax.f32 %v3345, %v3346
        %v3348 = vsel %vm2983, %v2740, -inf
        %v3349 = vrot.slane %v3348, 4
        %v3350 = vmax.f32 %v3348, %v3349
        %v3351 = vrot.slane %v3350, 2
        %v3352 = vmax.f32 %v3350, %v3351
        %v3353 = vrot.slane %v3352, 1
        %v3354 = vmax.f32 %v3352, %v3353
        %v3355 = vsel %vm2983, %v2830, -inf
        %v3356 = vrot.slane %v3355, 4
        %v3357 = vmax.f32 %v3355, %v3356
        %v3358 = vrot.slane %v3357, 2
        %v3359 = vmax.f32 %v3357, %v3358
        %v3360 = vrot.slane %v3359, 1
        %v3361 = vmax.f32 %v3359, %v3360
        %v3362 = vsel %vm2983, %v2831, -inf
        %v3363 = vrot.slane %v3362, 4
        %v3364 = vmax.f32 %v3362, %v3363
        %v3365 = vrot.slane %v3364, 2
        %v3366 = vmax.f32 %v3364, %v3365
        %v3367 = vrot.slane %v3366, 1
        %v3368 = vmax.f32 %v3366, %v3367
        %v3369 = vsel %vm2983, %v2832, -inf
        %v3370 = vrot.slane %v3369, 4
        %v3371 = vmax.f32 %v3369, %v3370
        %v3372 = vrot.slane %v3371, 2
        %v3373 = vmax.f32 %v3371, %v3372
        %v3374 = vrot.slane %v3373, 1
        %v3375 = vmax.f32 %v3373, %v3374
        %v3376 = vsel %vm2983, %v2741, -inf
        %v3377 = vrot.slane %v3376, 4
        %v3378 = vmax.f32 %v3376, %v3377
        %v3379 = vrot.slane %v3378, 2
        %v3380 = vmax.f32 %v3378, %v3379
        %v3381 = vrot.slane %v3380, 1
        %v3382 = vmax.f32 %v3380, %v3381
        %v3383 = vsel %vm2983, %v2833, -inf
        %v3384 = vrot.slane %v3383, 4
        %v3385 = vmax.f32 %v3383, %v3384
        %v3386 = vrot.slane %v3385, 2
        %v3387 = vmax.f32 %v3385, %v3386
        %v3388 = vrot.slane %v3387, 1
        %v3389 = vmax.f32 %v3387, %v3388
        %v3390 = vsel %vm2983, %v2834, -inf
        %v3391 = vrot.slane %v3390, 4
        %v3392 = vmax.f32 %v3390, %v3391
        %v3393 = vrot.slane %v3392, 2
        %v3394 = vmax.f32 %v3392, %v3393
        %v3395 = vrot.slane %v3394, 1
        %v3396 = vmax.f32 %v3394, %v3395
        %v3397 = vsel %vm2983, %v2835, -inf
        %v3398 = vrot.slane %v3397, 4
        %v3399 = vmax.f32 %v3397, %v3398
        %v3400 = vrot.slane %v3399, 2
        %v3401 = vmax.f32 %v3399, %v3400
        %v3402 = vrot.slane %v3401, 1
        %v3403 = vmax.f32 %v3401, %v3402
        %v3404 = vsel %vm2983, %v2742, -inf
        %v3405 = vrot.slane %v3404, 4
        %v3406 = vmax.f32 %v3404, %v3405
        %v3407 = vrot.slane %v3406, 2
        %v3408 = vmax.f32 %v3406, %v3407
        %v3409 = vrot.slane %v3408, 1
        %v3410 = vmax.f32 %v3408, %v3409
        %v3411 = vsel %vm2983, %v2836, -inf
        %v3412 = vrot.slane %v3411, 4
        %v3413 = vmax.f32 %v3411, %v3412
        %v3414 = vrot.slane %v3413, 2
        %v3415 = vmax.f32 %v3413, %v3414
        %v3416 = vrot.slane %v3415, 1
        %v3417 = vmax.f32 %v3415, %v3416
        %v3418 = vsel %vm2983, %v2837, -inf
        %v3419 = vrot.slane %v3418, 4
        %v3420 = vmax.f32 %v3418, %v3419
        %v3421 = vrot.slane %v3420, 2
        %v3422 = vmax.f32 %v3420, %v3421
        %v3423 = vrot.slane %v3422, 1
        %v3424 = vmax.f32 %v3422, %v3423
        %v3425 = vsel %vm2983, %v2838, -inf
        %v3426 = vrot.slane %v3425, 4
        %v3427 = vmax.f32 %v3425, %v3426
        %v3428 = vrot.slane %v3427, 2
        %v3429 = vmax.f32 %v3427, %v3428
        %v3430 = vrot.slane %v3429, 1
        %v3431 = vmax.f32 %v3429, %v3430
        %v3432 = vsel %vm2983, %v2743, -inf
        %v3433 = vrot.slane %v3432, 4
        %v3434 = vmax.f32 %v3432, %v3433
        %v3435 = vrot.slane %v3434, 2
        %v3436 = vmax.f32 %v3434, %v3435
        %v3437 = vrot.slane %v3436, 1
        %v3438 = vmax.f32 %v3436, %v3437
        %v3439 = vsel %vm2983, %v2839, -inf
        %v3440 = vrot.slane %v3439, 4
        %v3441 = vmax.f32 %v3439, %v3440
        %v3442 = vrot.slane %v3441, 2
        %v3443 = vmax.f32 %v3441, %v3442
        %v3444 = vrot.slane %v3443, 1
        %v3445 = vmax.f32 %v3443, %v3444
        %v3446 = vsel %vm2983, %v2840, -inf
        %v3447 = vrot.slane %v3446, 4
        %v3448 = vmax.f32 %v3446, %v3447
        %v3449 = vrot.slane %v3448, 2
        %v3450 = vmax.f32 %v3448, %v3449
        %v3451 = vrot.slane %v3450, 1
        %v3452 = vmax.f32 %v3450, %v3451
        %v3453 = vsel %vm2983, %v2841, -inf
        %v3454 = vrot.slane %v3453, 4
        %v3455 = vmax.f32 %v3453, %v3454
        %v3456 = vrot.slane %v3455, 2
        %v3457 = vmax.f32 %v3455, %v3456
        %v3458 = vrot.slane %v3457, 1
        %v3459 = vmax.f32 %v3457, %v3458
        %v3460 = vsel %vm2983, %v2744, -inf
        %v3461 = vrot.slane %v3460, 4
        %v3462 = vmax.f32 %v3460, %v3461
        %v3463 = vrot.slane %v3462, 2
        %v3464 = vmax.f32 %v3462, %v3463
        %v3465 = vrot.slane %v3464, 1
        %v3466 = vmax.f32 %v3464, %v3465
        %v3467 = vsel %vm2983, %v2842, -inf
        %v3468 = vrot.slane %v3467, 4
        %v3469 = vmax.f32 %v3467, %v3468
        %v3470 = vrot.slane %v3469, 2
        %v3471 = vmax.f32 %v3469, %v3470
        %v3472 = vrot.slane %v3471, 1
        %v3473 = vmax.f32 %v3471, %v3472
        %v3474 = vsel %vm2983, %v2843, -inf
        %v3475 = vrot.slane %v3474, 4
        %v3476 = vmax.f32 %v3474, %v3475
        %v3477 = vrot.slane %v3476, 2
        %v3478 = vmax.f32 %v3476, %v3477
        %v3479 = vrot.slane %v3478, 1
        %v3480 = vmax.f32 %v3478, %v3479
        %v3481 = vsel %vm2983, %v2844, -inf
        %v3482 = vrot.slane %v3481, 4
        %v3483 = vmax.f32 %v3481, %v3482
        %v3484 = vrot.slane %v3483, 2
        %v3485 = vmax.f32 %v3483, %v3484
        %v3486 = vrot.slane %v3485, 1
        %v3487 = vmax.f32 %v3485, %v3486
        %v3488 = vsel %vm2983, %v2745, -inf
        %v3489 = vrot.slane %v3488, 4
        %v3490 = vmax.f32 %v3488, %v3489
        %v3491 = vrot.slane %v3490, 2
        %v3492 = vmax.f32 %v3490, %v3491
        %v3493 = vrot.slane %v3492, 1
        %v3494 = vmax.f32 %v3492, %v3493
        %v3495 = vsel %vm2983, %v2845, -inf
        %v3496 = vrot.slane %v3495, 4
        %v3497 = vmax.f32 %v3495, %v3496
        %v3498 = vrot.slane %v3497, 2
        %v3499 = vmax.f32 %v3497, %v3498
        %v3500 = vrot.slane %v3499, 1
        %v3501 = vmax.f32 %v3499, %v3500
        %v3502 = vsel %vm2983, %v2846, -inf
        %v3503 = vrot.slane %v3502, 4
        %v3504 = vmax.f32 %v3502, %v3503
        %v3505 = vrot.slane %v3504, 2
        %v3506 = vmax.f32 %v3504, %v3505
        %v3507 = vrot.slane %v3506, 1
        %v3508 = vmax.f32 %v3506, %v3507
        %v3509 = vsel %vm2983, %v2847, -inf
        %v3510 = vrot.slane %v3509, 4
        %v3511 = vmax.f32 %v3509, %v3510
        %v3512 = vrot.slane %v3511, 2
        %v3513 = vmax.f32 %v3511, %v3512
        %v3514 = vrot.slane %v3513, 1
        %v3515 = vmax.f32 %v3513, %v3514
        %v3516 = vsel %vm2983, %v2746, -inf
        %v3517 = vrot.slane %v3516, 4
        %v3518 = vmax.f32 %v3516, %v3517
        %v3519 = vrot.slane %v3518, 2
        %v3520 = vmax.f32 %v3518, %v3519
        %v3521 = vrot.slane %v3520, 1
        %v3522 = vmax.f32 %v3520, %v3521
        %v3523 = vsel %vm2983, %v2848, -inf
        %v3524 = vrot.slane %v3523, 4
        %v3525 = vmax.f32 %v3523, %v3524
        %v3526 = vrot.slane %v3525, 2
        %v3527 = vmax.f32 %v3525, %v3526
        %v3528 = vrot.slane %v3527, 1
        %v3529 = vmax.f32 %v3527, %v3528
        %v3530 = vsel %vm2983, %v2849, -inf
        %v3531 = vrot.slane %v3530, 4
        %v3532 = vmax.f32 %v3530, %v3531
        %v3533 = vrot.slane %v3532, 2
        %v3534 = vmax.f32 %v3532, %v3533
        %v3535 = vrot.slane %v3534, 1
        %v3536 = vmax.f32 %v3534, %v3535
        %v3537 = vsel %vm2983, %v2850, -inf
        %v3538 = vrot.slane %v3537, 4
        %v3539 = vmax.f32 %v3537, %v3538
        %v3540 = vrot.slane %v3539, 2
        %v3541 = vmax.f32 %v3539, %v3540
        %v3542 = vrot.slane %v3541, 1
        %v3543 = vmax.f32 %v3541, %v3542
        %v3544 = vsel %vm2983, %v2747, -inf
        %v3545 = vrot.slane %v3544, 4
        %v3546 = vmax.f32 %v3544, %v3545
        %v3547 = vrot.slane %v3546, 2
        %v3548 = vmax.f32 %v3546, %v3547
        %v3549 = vrot.slane %v3548, 1
        %v3550 = vmax.f32 %v3548, %v3549
        %v3551 = vsel %vm2983, %v2851, -inf
        %v3552 = vrot.slane %v3551, 4
        %v3553 = vmax.f32 %v3551, %v3552
        %v3554 = vrot.slane %v3553, 2
        %v3555 = vmax.f32 %v3553, %v3554
        %v3556 = vrot.slane %v3555, 1
        %v3557 = vmax.f32 %v3555, %v3556
        %v3558 = vsel %vm2983, %v2852, -inf
        %v3559 = vrot.slane %v3558, 4
        %v3560 = vmax.f32 %v3558, %v3559
        %v3561 = vrot.slane %v3560, 2
        %v3562 = vmax.f32 %v3560, %v3561
        %v3563 = vrot.slane %v3562, 1
        %v3564 = vmax.f32 %v3562, %v3563
        %v3565 = vsel %vm2983, %v2853, -inf
        %v3566 = vrot.slane %v3565, 4
        %v3567 = vmax.f32 %v3565, %v3566
        %v3568 = vrot.slane %v3567, 2
        %v3569 = vmax.f32 %v3567, %v3568
        %v3570 = vrot.slane %v3569, 1
        %v3571 = vmax.f32 %v3569, %v3570
        %v3572 = vsel %vm2983, %v2748, -inf
        %v3573 = vrot.slane %v3572, 4
        %v3574 = vmax.f32 %v3572, %v3573
        %v3575 = vrot.slane %v3574, 2
        %v3576 = vmax.f32 %v3574, %v3575
        %v3577 = vrot.slane %v3576, 1
        %v3578 = vmax.f32 %v3576, %v3577
        %v3579 = vsel %vm2983, %v2854, -inf
        %v3580 = vrot.slane %v3579, 4
        %v3581 = vmax.f32 %v3579, %v3580
        %v3582 = vrot.slane %v3581, 2
        %v3583 = vmax.f32 %v3581, %v3582
        %v3584 = vrot.slane %v3583, 1
        %v3585 = vmax.f32 %v3583, %v3584
        %v3586 = vsel %vm2983, %v2855, -inf
        %v3587 = vrot.slane %v3586, 4
        %v3588 = vmax.f32 %v3586, %v3587
        %v3589 = vrot.slane %v3588, 2
        %v3590 = vmax.f32 %v3588, %v3589
        %v3591 = vrot.slane %v3590, 1
        %v3592 = vmax.f32 %v3590, %v3591
        %v3593 = vsel %vm2983, %v2856, -inf
        %v3594 = vrot.slane %v3593, 4
        %v3595 = vmax.f32 %v3593, %v3594
        %v3596 = vrot.slane %v3595, 2
        %v3597 = vmax.f32 %v3595, %v3596
        %v3598 = vrot.slane %v3597, 1
        %v3599 = vmax.f32 %v3597, %v3598
        %v3600 = vsel %vm2983, %v2749, -inf
        %v3601 = vrot.slane %v3600, 4
        %v3602 = vmax.f32 %v3600, %v3601
        %v3603 = vrot.slane %v3602, 2
        %v3604 = vmax.f32 %v3602, %v3603
        %v3605 = vrot.slane %v3604, 1
        %v3606 = vmax.f32 %v3604, %v3605
        %v3607 = vsel %vm2983, %v2857, -inf
        %v3608 = vrot.slane %v3607, 4
        %v3609 = vmax.f32 %v3607, %v3608
        %v3610 = vrot.slane %v3609, 2
        %v3611 = vmax.f32 %v3609, %v3610
        %v3612 = vrot.slane %v3611, 1
        %v3613 = vmax.f32 %v3611, %v3612
        %v3614 = vsel %vm2983, %v2858, -inf
        %v3615 = vrot.slane %v3614, 4
        %v3616 = vmax.f32 %v3614, %v3615
        %v3617 = vrot.slane %v3616, 2
        %v3618 = vmax.f32 %v3616, %v3617
        %v3619 = vrot.slane %v3618, 1
        %v3620 = vmax.f32 %v3618, %v3619
        %v3621 = vsel %vm2983, %v2859, -inf
        %v3622 = vrot.slane %v3621, 4
        %v3623 = vmax.f32 %v3621, %v3622
        %v3624 = vrot.slane %v3623, 2
        %v3625 = vmax.f32 %v3623, %v3624
        %v3626 = vrot.slane %v3625, 1
        %v3627 = vmax.f32 %v3625, %v3626
        %v3628 = vsel %vm2983, %v2750, -inf
        %v3629 = vrot.slane %v3628, 4
        %v3630 = vmax.f32 %v3628, %v3629
        %v3631 = vrot.slane %v3630, 2
        %v3632 = vmax.f32 %v3630, %v3631
        %v3633 = vrot.slane %v3632, 1
        %v3634 = vmax.f32 %v3632, %v3633
        %v3635 = vsel %vm2983, %v2860, -inf
        %v3636 = vrot.slane %v3635, 4
        %v3637 = vmax.f32 %v3635, %v3636
        %v3638 = vrot.slane %v3637, 2
        %v3639 = vmax.f32 %v3637, %v3638
        %v3640 = vrot.slane %v3639, 1
        %v3641 = vmax.f32 %v3639, %v3640
        %v3642 = vsel %vm2983, %v2861, -inf
        %v3643 = vrot.slane %v3642, 4
        %v3644 = vmax.f32 %v3642, %v3643
        %v3645 = vrot.slane %v3644, 2
        %v3646 = vmax.f32 %v3644, %v3645
        %v3647 = vrot.slane %v3646, 1
        %v3648 = vmax.f32 %v3646, %v3647
        %v3649 = vsel %vm2983, %v2862, -inf
        %v3650 = vrot.slane %v3649, 4
        %v3651 = vmax.f32 %v3649, %v3650
        %v3652 = vrot.slane %v3651, 2
        %v3653 = vmax.f32 %v3651, %v3652
        %v3654 = vrot.slane %v3653, 1
        %v3655 = vmax.f32 %v3653, %v3654
        %v3656 = vsel %vm2983, %v2751, -inf
        %v3657 = vrot.slane %v3656, 4
        %v3658 = vmax.f32 %v3656, %v3657
        %v3659 = vrot.slane %v3658, 2
        %v3660 = vmax.f32 %v3658, %v3659
        %v3661 = vrot.slane %v3660, 1
        %v3662 = vmax.f32 %v3660, %v3661
        %v3663 = vsel %vm2983, %v2863, -inf
        %v3664 = vrot.slane %v3663, 4
        %v3665 = vmax.f32 %v3663, %v3664
        %v3666 = vrot.slane %v3665, 2
        %v3667 = vmax.f32 %v3665, %v3666
        %v3668 = vrot.slane %v3667, 1
        %v3669 = vmax.f32 %v3667, %v3668
        %v3670 = vsel %vm2983, %v2864, -inf
        %v3671 = vrot.slane %v3670, 4
        %v3672 = vmax.f32 %v3670, %v3671
        %v3673 = vrot.slane %v3672, 2
        %v3674 = vmax.f32 %v3672, %v3673
        %v3675 = vrot.slane %v3674, 1
        %v3676 = vmax.f32 %v3674, %v3675
        %v3677 = vsel %vm2983, %v2865, -inf
        %v3678 = vrot.slane %v3677, 4
        %v3679 = vmax.f32 %v3677, %v3678
        %v3680 = vrot.slane %v3679, 2
        %v3681 = vmax.f32 %v3679, %v3680
        %v3682 = vrot.slane %v3681, 1
        %v3683 = vmax.f32 %v3681, %v3682
        %v3684 = vsel %vm2983, %v2752, -inf
        %v3685 = vrot.slane %v3684, 4
        %v3686 = vmax.f32 %v3684, %v3685
        %v3687 = vrot.slane %v3686, 2
        %v3688 = vmax.f32 %v3686, %v3687
        %v3689 = vrot.slane %v3688, 1
        %v3690 = vmax.f32 %v3688, %v3689
        %v3691 = vsel %vm2983, %v2866, -inf
        %v3692 = vrot.slane %v3691, 4
        %v3693 = vmax.f32 %v3691, %v3692
        %v3694 = vrot.slane %v3693, 2
        %v3695 = vmax.f32 %v3693, %v3694
        %v3696 = vrot.slane %v3695, 1
        %v3697 = vmax.f32 %v3695, %v3696
        %v3698 = vsel %vm2983, %v2867, -inf
        %v3699 = vrot.slane %v3698, 4
        %v3700 = vmax.f32 %v3698, %v3699
        %v3701 = vrot.slane %v3700, 2
        %v3702 = vmax.f32 %v3700, %v3701
        %v3703 = vrot.slane %v3702, 1
        %v3704 = vmax.f32 %v3702, %v3703
        %v3705 = vsel %vm2983, %v2868, -inf
        %v3706 = vrot.slane %v3705, 4
        %v3707 = vmax.f32 %v3705, %v3706
        %v3708 = vrot.slane %v3707, 2
        %v3709 = vmax.f32 %v3707, %v3708
        %v3710 = vrot.slane %v3709, 1
        %v3711 = vmax.f32 %v3709, %v3710
        %v3712 = vsel %vm2983, %v2753, -inf
        %v3713 = vrot.slane %v3712, 4
        %v3714 = vmax.f32 %v3712, %v3713
        %v3715 = vrot.slane %v3714, 2
        %v3716 = vmax.f32 %v3714, %v3715
        %v3717 = vrot.slane %v3716, 1
        %v3718 = vmax.f32 %v3716, %v3717
        %v3719 = vsel %vm2983, %v2869, -inf
        %v3720 = vrot.slane %v3719, 4
        %v3721 = vmax.f32 %v3719, %v3720
        %v3722 = vrot.slane %v3721, 2
        %v3723 = vmax.f32 %v3721, %v3722
        %v3724 = vrot.slane %v3723, 1
        %v3725 = vmax.f32 %v3723, %v3724
        %v3726 = vsel %vm2983, %v2870, -inf
        %v3727 = vrot.slane %v3726, 4
        %v3728 = vmax.f32 %v3726, %v3727
        %v3729 = vrot.slane %v3728, 2
        %v3730 = vmax.f32 %v3728, %v3729
        %v3731 = vrot.slane %v3730, 1
        %v3732 = vmax.f32 %v3730, %v3731
        %v3733 = vsel %vm2983, %v2871, -inf
        %v3734 = vrot.slane %v3733, 4
        %v3735 = vmax.f32 %v3733, %v3734
        %v3736 = vrot.slane %v3735, 2
        %v3737 = vmax.f32 %v3735, %v3736
        %v3738 = vrot.slane %v3737, 1
        %v3739 = vmax.f32 %v3737, %v3738
        %v3740 = vsel %vm2983, %v2754, -inf
        %v3741 = vrot.slane %v3740, 4
        %v3742 = vmax.f32 %v3740, %v3741
        %v3743 = vrot.slane %v3742, 2
        %v3744 = vmax.f32 %v3742, %v3743
        %v3745 = vrot.slane %v3744, 1
        %v3746 = vmax.f32 %v3744, %v3745
        %v3747 = vsel %vm2983, %v2872, -inf
        %v3748 = vrot.slane %v3747, 4
        %v3749 = vmax.f32 %v3747, %v3748
        %v3750 = vrot.slane %v3749, 2
        %v3751 = vmax.f32 %v3749, %v3750
        %v3752 = vrot.slane %v3751, 1
        %v3753 = vmax.f32 %v3751, %v3752
        %v3754 = vsel %vm2983, %v2873, -inf
        %v3755 = vrot.slane %v3754, 4
        %v3756 = vmax.f32 %v3754, %v3755
        %v3757 = vrot.slane %v3756, 2
        %v3758 = vmax.f32 %v3756, %v3757
        %v3759 = vrot.slane %v3758, 1
        %v3760 = vmax.f32 %v3758, %v3759
        %v3761 = vsel %vm2983, %v2874, -inf
        %v3762 = vrot.slane %v3761, 4
        %v3763 = vmax.f32 %v3761, %v3762
        %v3764 = vrot.slane %v3763, 2
        %v3765 = vmax.f32 %v3763, %v3764
        %v3766 = vrot.slane %v3765, 1
        %v3767 = vmax.f32 %v3765, %v3766
        %v3768 = vsel %vm2983, %v2755, -inf
        %v3769 = vrot.slane %v3768, 4
        %v3770 = vmax.f32 %v3768, %v3769
        %v3771 = vrot.slane %v3770, 2
        %v3772 = vmax.f32 %v3770, %v3771
        %v3773 = vrot.slane %v3772, 1
        %v3774 = vmax.f32 %v3772, %v3773
        %v3775 = vsel %vm2983, %v2875, -inf
        %v3776 = vrot.slane %v3775, 4
        %v3777 = vmax.f32 %v3775, %v3776
        %v3778 = vrot.slane %v3777, 2
        %v3779 = vmax.f32 %v3777, %v3778
        %v3780 = vrot.slane %v3779, 1
        %v3781 = vmax.f32 %v3779, %v3780
        %v3782 = vsel %vm2983, %v2876, -inf
        %v3783 = vrot.slane %v3782, 4
        %v3784 = vmax.f32 %v3782, %v3783
        %v3785 = vrot.slane %v3784, 2
        %v3786 = vmax.f32 %v3784, %v3785
        %v3787 = vrot.slane %v3786, 1
        %v3788 = vmax.f32 %v3786, %v3787
        %v3789 = vsel %vm2983, %v2877, -inf
        %v3790 = vrot.slane %v3789, 4
        %v3791 = vmax.f32 %v3789, %v3790
        %v3792 = vrot.slane %v3791, 2
        %v3793 = vmax.f32 %v3791, %v3792
        %v3794 = vrot.slane %v3793, 1
        %v3795 = vmax.f32 %v3793, %v3794
        %v3796 = vsel %vm2983, %v2756, -inf
        %v3797 = vrot.slane %v3796, 4
        %v3798 = vmax.f32 %v3796, %v3797
        %v3799 = vrot.slane %v3798, 2
        %v3800 = vmax.f32 %v3798, %v3799
        %v3801 = vrot.slane %v3800, 1
        %v3802 = vmax.f32 %v3800, %v3801
        %v3803 = vsel %vm2983, %v2878, -inf
        %v3804 = vrot.slane %v3803, 4
        %v3805 = vmax.f32 %v3803, %v3804
        %v3806 = vrot.slane %v3805, 2
        %v3807 = vmax.f32 %v3805, %v3806
        %v3808 = vrot.slane %v3807, 1
        %v3809 = vmax.f32 %v3807, %v3808
        %v3810 = vsel %vm2983, %v2879, -inf
        %v3811 = vrot.slane %v3810, 4
        %v3812 = vmax.f32 %v3810, %v3811
        %v3813 = vrot.slane %v3812, 2
        %v3814 = vmax.f32 %v3812, %v3813
        %v3815 = vrot.slane %v3814, 1
        %v3816 = vmax.f32 %v3814, %v3815
        %v3817 = vsel %vm2983, %v2880, -inf
        %v3818 = vrot.slane %v3817, 4
        %v3819 = vmax.f32 %v3817, %v3818
        %v3820 = vrot.slane %v3819, 2
        %v3821 = vmax.f32 %v3819, %v3820
        %v3822 = vrot.slane %v3821, 1
        %v3823 = vmax.f32 %v3821, %v3822
        %v3824 = vsel %vm2983, %v2757, -inf
        %v3825 = vrot.slane %v3824, 4
        %v3826 = vmax.f32 %v3824, %v3825
        %v3827 = vrot.slane %v3826, 2
        %v3828 = vmax.f32 %v3826, %v3827
        %v3829 = vrot.slane %v3828, 1
        %v3830 = vmax.f32 %v3828, %v3829
        %v3831 = vsel %vm2983, %v2881, -inf
        %v3832 = vrot.slane %v3831, 4
        %v3833 = vmax.f32 %v3831, %v3832
        %v3834 = vrot.slane %v3833, 2
        %v3835 = vmax.f32 %v3833, %v3834
        %v3836 = vrot.slane %v3835, 1
        %v3837 = vmax.f32 %v3835, %v3836
        %v3838 = vsel %vm2983, %v2882, -inf
        %v3839 = vrot.slane %v3838, 4
        %v3840 = vmax.f32 %v3838, %v3839
        %v3841 = vrot.slane %v3840, 2
        %v3842 = vmax.f32 %v3840, %v3841
        %v3843 = vrot.slane %v3842, 1
        %v3844 = vmax.f32 %v3842, %v3843
        %v3845 = vsel %vm2983, %v2883, -inf
        %v3846 = vrot.slane %v3845, 4
        %v3847 = vmax.f32 %v3845, %v3846
        %v3848 = vrot.slane %v3847, 2
        %v3849 = vmax.f32 %v3847, %v3848
        %v3850 = vrot.slane %v3849, 1
        %v3851 = vmax.f32 %v3849, %v3850
        %v3852 = vsel %vm2983, %v2758, -inf
        %v3853 = vrot.slane %v3852, 4
        %v3854 = vmax.f32 %v3852, %v3853
        %v3855 = vrot.slane %v3854, 2
        %v3856 = vmax.f32 %v3854, %v3855
        %v3857 = vrot.slane %v3856, 1
        %v3858 = vmax.f32 %v3856, %v3857
        %v3859 = vsel %vm2983, %v2884, -inf
        %v3860 = vrot.slane %v3859, 4
        %v3861 = vmax.f32 %v3859, %v3860
        %v3862 = vrot.slane %v3861, 2
        %v3863 = vmax.f32 %v3861, %v3862
        %v3864 = vrot.slane %v3863, 1
        %v3865 = vmax.f32 %v3863, %v3864
        %v3866 = vsel %vm2983, %v2885, -inf
        %v3867 = vrot.slane %v3866, 4
        %v3868 = vmax.f32 %v3866, %v3867
        %v3869 = vrot.slane %v3868, 2
        %v3870 = vmax.f32 %v3868, %v3869
        %v3871 = vrot.slane %v3870, 1
        %v3872 = vmax.f32 %v3870, %v3871
        %v3873 = vsel %vm2983, %v2886, -inf
        %v3874 = vrot.slane %v3873, 4
        %v3875 = vmax.f32 %v3873, %v3874
        %v3876 = vrot.slane %v3875, 2
        %v3877 = vmax.f32 %v3875, %v3876
        %v3878 = vrot.slane %v3877, 1
        %v3879 = vmax.f32 %v3877, %v3878
        %v3880 = vsel %vm2346, %v2990, -inf
        %v3881 = vsel %vm2346, %v3046, -inf
        %v3882 = vmax.f32 %v3880, %v3881
        %v3883 = vsel %vm2346, %v2997, -inf
        %v3884 = vsel %vm2346, %v3053, -inf
        %v3885 = vmax.f32 %v3883, %v3884
        %v3886 = vsel %vm2346, %v3004, -inf
        %v3887 = vsel %vm2346, %v3060, -inf
        %v3888 = vmax.f32 %v3886, %v3887
        %v3889 = vsel %vm2346, %v3011, -inf
        %v3890 = vsel %vm2346, %v3067, -inf
        %v3891 = vmax.f32 %v3889, %v3890
        %v3892 = vsel %vm2346, %v3018, -inf
        %v3893 = vsel %vm2346, %v3074, -inf
        %v3894 = vmax.f32 %v3892, %v3893
        %v3895 = vsel %vm2346, %v3025, -inf
        %v3896 = vsel %vm2346, %v3081, -inf
        %v3897 = vmax.f32 %v3895, %v3896
        %v3898 = vsel %vm2346, %v3032, -inf
        %v3899 = vsel %vm2346, %v3088, -inf
        %v3900 = vmax.f32 %v3898, %v3899
        %v3901 = vsel %vm2346, %v3039, -inf
        %v3902 = vsel %vm2346, %v3095, -inf
        %v3903 = vmax.f32 %v3901, %v3902
        %v3904 = vsel %vm2346, %v3102, -inf
        %v3905 = vsel %vm2346, %v3158, -inf
        %v3906 = vmax.f32 %v3904, %v3905
        %v3907 = vsel %vm2346, %v3109, -inf
        %v3908 = vsel %vm2346, %v3165, -inf
        %v3909 = vmax.f32 %v3907, %v3908
        %v3910 = vsel %vm2346, %v3116, -inf
        %v3911 = vsel %vm2346, %v3172, -inf
        %v3912 = vmax.f32 %v3910, %v3911
        %v3913 = vsel %vm2346, %v3123, -inf
        %v3914 = vsel %vm2346, %v3179, -inf
        %v3915 = vmax.f32 %v3913, %v3914
        %v3916 = vsel %vm2346, %v3130, -inf
        %v3917 = vsel %vm2346, %v3186, -inf
        %v3918 = vmax.f32 %v3916, %v3917
        %v3919 = vsel %vm2346, %v3137, -inf
        %v3920 = vsel %vm2346, %v3193, -inf
        %v3921 = vmax.f32 %v3919, %v3920
        %v3922 = vsel %vm2346, %v3144, -inf
        %v3923 = vsel %vm2346, %v3200, -inf
        %v3924 = vmax.f32 %v3922, %v3923
        %v3925 = vsel %vm2346, %v3151, -inf
        %v3926 = vsel %vm2346, %v3207, -inf
        %v3927 = vmax.f32 %v3925, %v3926
        %v3928 = vsel %vm2346, %v3214, -inf
        %v3929 = vsel %vm2346, %v3270, -inf
        %v3930 = vmax.f32 %v3928, %v3929
        %v3931 = vsel %vm2346, %v3221, -inf
        %v3932 = vsel %vm2346, %v3277, -inf
        %v3933 = vmax.f32 %v3931, %v3932
        %v3934 = vsel %vm2346, %v3228, -inf
        %v3935 = vsel %vm2346, %v3284, -inf
        %v3936 = vmax.f32 %v3934, %v3935
        %v3937 = vsel %vm2346, %v3235, -inf
        %v3938 = vsel %vm2346, %v3291, -inf
        %v3939 = vmax.f32 %v3937, %v3938
        %v3940 = vsel %vm2346, %v3242, -inf
        %v3941 = vsel %vm2346, %v3298, -inf
        %v3942 = vmax.f32 %v3940, %v3941
        %v3943 = vsel %vm2346, %v3249, -inf
        %v3944 = vsel %vm2346, %v3305, -inf
        %v3945 = vmax.f32 %v3943, %v3944
        %v3946 = vsel %vm2346, %v3256, -inf
        %v3947 = vsel %vm2346, %v3312, -inf
        %v3948 = vmax.f32 %v3946, %v3947
        %v3949 = vsel %vm2346, %v3263, -inf
        %v3950 = vsel %vm2346, %v3319, -inf
        %v3951 = vmax.f32 %v3949, %v3950
        %v3952 = vsel %vm2346, %v3326, -inf
        %v3953 = vsel %vm2346, %v3382, -inf
        %v3954 = vmax.f32 %v3952, %v3953
        %v3955 = vsel %vm2346, %v3333, -inf
        %v3956 = vsel %vm2346, %v3389, -inf
        %v3957 = vmax.f32 %v3955, %v3956
        %v3958 = vsel %vm2346, %v3340, -inf
        %v3959 = vsel %vm2346, %v3396, -inf
        %v3960 = vmax.f32 %v3958, %v3959
        %v3961 = vsel %vm2346, %v3347, -inf
        %v3962 = vsel %vm2346, %v3403, -inf
        %v3963 = vmax.f32 %v3961, %v3962
        %v3964 = vsel %vm2346, %v3354, -inf
        %v3965 = vsel %vm2346, %v3410, -inf
        %v3966 = vmax.f32 %v3964, %v3965
        %v3967 = vsel %vm2346, %v3361, -inf
        %v3968 = vsel %vm2346, %v3417, -inf
        %v3969 = vmax.f32 %v3967, %v3968
        %v3970 = vsel %vm2346, %v3368, -inf
        %v3971 = vsel %vm2346, %v3424, -inf
        %v3972 = vmax.f32 %v3970, %v3971
        %v3973 = vsel %vm2346, %v3375, -inf
        %v3974 = vsel %vm2346, %v3431, -inf
        %v3975 = vmax.f32 %v3973, %v3974
        %v3976 = vsel %vm2346, %v3438, -inf
        %v3977 = vsel %vm2346, %v3494, -inf
        %v3978 = vmax.f32 %v3976, %v3977
        %v3979 = vsel %vm2346, %v3445, -inf
        %v3980 = vsel %vm2346, %v3501, -inf
        %v3981 = vmax.f32 %v3979, %v3980
        %v3982 = vsel %vm2346, %v3452, -inf
        %v3983 = vsel %vm2346, %v3508, -inf
        %v3984 = vmax.f32 %v3982, %v3983
        %v3985 = vsel %vm2346, %v3459, -inf
        %v3986 = vsel %vm2346, %v3515, -inf
        %v3987 = vmax.f32 %v3985, %v3986
        %v3988 = vsel %vm2346, %v3466, -inf
        %v3989 = vsel %vm2346, %v3522, -inf
        %v3990 = vmax.f32 %v3988, %v3989
        %v3991 = vsel %vm2346, %v3473, -inf
        %v3992 = vsel %vm2346, %v3529, -inf
        %v3993 = vmax.f32 %v3991, %v3992
        %v3994 = vsel %vm2346, %v3480, -inf
        %v3995 = vsel %vm2346, %v3536, -inf
        %v3996 = vmax.f32 %v3994, %v3995
        %v3997 = vsel %vm2346, %v3487, -inf
        %v3998 = vsel %vm2346, %v3543, -inf
        %v3999 = vmax.f32 %v3997, %v3998
        %v4000 = vsel %vm2346, %v3550, -inf
        %v4001 = vsel %vm2346, %v3606, -inf
        %v4002 = vmax.f32 %v4000, %v4001
        %v4003 = vsel %vm2346, %v3557, -inf
        %v4004 = vsel %vm2346, %v3613, -inf
        %v4005 = vmax.f32 %v4003, %v4004
        %v4006 = vsel %vm2346, %v3564, -inf
        %v4007 = vsel %vm2346, %v3620, -inf
        %v4008 = vmax.f32 %v4006, %v4007
        %v4009 = vsel %vm2346, %v3571, -inf
        %v4010 = vsel %vm2346, %v3627, -inf
        %v4011 = vmax.f32 %v4009, %v4010
        %v4012 = vsel %vm2346, %v3578, -inf
        %v4013 = vsel %vm2346, %v3634, -inf
        %v4014 = vmax.f32 %v4012, %v4013
        %v4015 = vsel %vm2346, %v3585, -inf
        %v4016 = vsel %vm2346, %v3641, -inf
        %v4017 = vmax.f32 %v4015, %v4016
        %v4018 = vsel %vm2346, %v3592, -inf
        %v4019 = vsel %vm2346, %v3648, -inf
        %v4020 = vmax.f32 %v4018, %v4019
        %v4021 = vsel %vm2346, %v3599, -inf
        %v4022 = vsel %vm2346, %v3655, -inf
        %v4023 = vmax.f32 %v4021, %v4022
        %v4024 = vsel %vm2346, %v3662, -inf
        %v4025 = vsel %vm2346, %v3718, -inf
        %v4026 = vmax.f32 %v4024, %v4025
        %v4027 = vsel %vm2346, %v3669, -inf
        %v4028 = vsel %vm2346, %v3725, -inf
        %v4029 = vmax.f32 %v4027, %v4028
        %v4030 = vsel %vm2346, %v3676, -inf
        %v4031 = vsel %vm2346, %v3732, -inf
        %v4032 = vmax.f32 %v4030, %v4031
        %v4033 = vsel %vm2346, %v3683, -inf
        %v4034 = vsel %vm2346, %v3739, -inf
        %v4035 = vmax.f32 %v4033, %v4034
        %v4036 = vsel %vm2346, %v3690, -inf
        %v4037 = vsel %vm2346, %v3746, -inf
        %v4038 = vmax.f32 %v4036, %v4037
        %v4039 = vsel %vm2346, %v3697, -inf
        %v4040 = vsel %vm2346, %v3753, -inf
        %v4041 = vmax.f32 %v4039, %v4040
        %v4042 = vsel %vm2346, %v3704, -inf
        %v4043 = vsel %vm2346, %v3760, -inf
        %v4044 = vmax.f32 %v4042, %v4043
        %v4045 = vsel %vm2346, %v3711, -inf
        %v4046 = vsel %vm2346, %v3767, -inf
        %v4047 = vmax.f32 %v4045, %v4046
        %v4048 = vsel %vm2346, %v3774, -inf
        %v4049 = vsel %vm2346, %v3830, -inf
        %v4050 = vmax.f32 %v4048, %v4049
        %v4051 = vsel %vm2346, %v3781, -inf
        %v4052 = vsel %vm2346, %v3837, -inf
        %v4053 = vmax.f32 %v4051, %v4052
        %v4054 = vsel %vm2346, %v3788, -inf
        %v4055 = vsel %vm2346, %v3844, -inf
        %v4056 = vmax.f32 %v4054, %v4055
        %v4057 = vsel %vm2346, %v3795, -inf
        %v4058 = vsel %vm2346, %v3851, -inf
        %v4059 = vmax.f32 %v4057, %v4058
        %v4060 = vsel %vm2346, %v3802, -inf
        %v4061 = vsel %vm2346, %v3858, -inf
        %v4062 = vmax.f32 %v4060, %v4061
        %v4063 = vsel %vm2346, %v3809, -inf
        %v4064 = vsel %vm2346, %v3865, -inf
        %v4065 = vmax.f32 %v4063, %v4064
        %v4066 = vsel %vm2346, %v3816, -inf
        %v4067 = vsel %vm2346, %v3872, -inf
        %v4068 = vmax.f32 %v4066, %v4067
        %v4069 = vsel %vm2346, %v3823, -inf
        %v4070 = vsel %vm2346, %v3879, -inf
        %v4071 = vmax.f32 %v4069, %v4070
        %v4072 = vpack.c.bf16 %v3882, %v3882
        %v4073 = vpack.c.bf16 %v3885, %v3885
        %v4074 = vpack.c.bf16 %v3888, %v3888
        %v4075 = vpack.c.bf16 %v3891, %v3891
        %v4076 = vpack.c.bf16 %v3894, %v3894
        %v4077 = vpack.c.bf16 %v3897, %v3897
        %v4078 = vpack.c.bf16 %v3900, %v3900
        %v4079 = vpack.c.bf16 %v3903, %v3903
        %v4080 = vpack.c.bf16 %v3906, %v3906
        %v4081 = vpack.c.bf16 %v3909, %v3909
        %v4082 = vpack.c.bf16 %v3912, %v3912
        %v4083 = vpack.c.bf16 %v3915, %v3915
        %v4084 = vpack.c.bf16 %v3918, %v3918
        %v4085 = vpack.c.bf16 %v3921, %v3921
        %v4086 = vpack.c.bf16 %v3924, %v3924
        %v4087 = vpack.c.bf16 %v3927, %v3927
        %v4088 = vpack.c.bf16 %v3930, %v3930
        %v4089 = vpack.c.bf16 %v3933, %v3933
        %v4090 = vpack.c.bf16 %v3936, %v3936
        %v4091 = vpack.c.bf16 %v3939, %v3939
        %v4092 = vpack.c.bf16 %v3942, %v3942
        %v4093 = vpack.c.bf16 %v3945, %v3945
        %v4094 = vpack.c.bf16 %v3948, %v3948
        %v4095 = vpack.c.bf16 %v3951, %v3951
        %v4096 = vpack.c.bf16 %v3954, %v3954
        %v4097 = vpack.c.bf16 %v3957, %v3957
        %v4098 = vpack.c.bf16 %v3960, %v3960
        %v4099 = vpack.c.bf16 %v3963, %v3963
        %v4100 = vpack.c.bf16 %v3966, %v3966
        %v4101 = vpack.c.bf16 %v3969, %v3969
        %v4102 = vpack.c.bf16 %v3972, %v3972
        %v4103 = vpack.c.bf16 %v3975, %v3975
        %v4104 = vpack.c.bf16 %v3978, %v3978
        %v4105 = vpack.c.bf16 %v3981, %v3981
        %v4106 = vpack.c.bf16 %v3984, %v3984
        %v4107 = vpack.c.bf16 %v3987, %v3987
        %v4108 = vpack.c.bf16 %v3990, %v3990
        %v4109 = vpack.c.bf16 %v3993, %v3993
        %v4110 = vpack.c.bf16 %v3996, %v3996
        %v4111 = vpack.c.bf16 %v3999, %v3999
        %v4112 = vpack.c.bf16 %v4002, %v4002
        %v4113 = vpack.c.bf16 %v4005, %v4005
        %v4114 = vpack.c.bf16 %v4008, %v4008
        %v4115 = vpack.c.bf16 %v4011, %v4011
        %v4116 = vpack.c.bf16 %v4014, %v4014
        %v4117 = vpack.c.bf16 %v4017, %v4017
        %v4118 = vpack.c.bf16 %v4020, %v4020
        %v4119 = vpack.c.bf16 %v4023, %v4023
        %v4120 = vpack.c.bf16 %v4026, %v4026
        %v4121 = vpack.c.bf16 %v4029, %v4029
        %v4122 = vpack.c.bf16 %v4032, %v4032
        %v4123 = vpack.c.bf16 %v4035, %v4035
        %v4124 = vpack.c.bf16 %v4038, %v4038
        %v4125 = vpack.c.bf16 %v4041, %v4041
        %v4126 = vpack.c.bf16 %v4044, %v4044
        %v4127 = vpack.c.bf16 %v4047, %v4047
        %v4128 = vpack.c.bf16 %v4050, %v4050
        %v4129 = vpack.c.bf16 %v4053, %v4053
        %v4130 = vpack.c.bf16 %v4056, %v4056
        %v4131 = vpack.c.bf16 %v4059, %v4059
        %v4132 = vpack.c.bf16 %v4062, %v4062
        %v4133 = vpack.c.bf16 %v4065, %v4065
        %v4134 = vpack.c.bf16 %v4068, %v4068
        %v4135 = vpack.c.bf16 %v4071, %v4071
        %v4200 = vunpack.c.l.b16 %v4072
        %v4201 = vunpack.c.l.b16 %v4073
        %v4202 = vunpack.c.l.b16 %v4074
        %v4203 = vunpack.c.l.b16 %v4075
        %v4204 = vunpack.c.l.b16 %v4076
        %v4205 = vunpack.c.l.b16 %v4077
        %v4206 = vunpack.c.l.b16 %v4078
        %v4207 = vunpack.c.l.b16 %v4079
        %v4208 = vunpack.c.l.b16 %v4080
        %v4209 = vunpack.c.l.b16 %v4081
        %v4210 = vunpack.c.l.b16 %v4082
        %v4211 = vunpack.c.l.b16 %v4083
        %v4212 = vunpack.c.l.b16 %v4084
        %v4213 = vunpack.c.l.b16 %v4085
        %v4214 = vunpack.c.l.b16 %v4086
        %v4215 = vunpack.c.l.b16 %v4087
        %v4216 = vunpack.c.l.b16 %v4088
        %v4217 = vunpack.c.l.b16 %v4089
        %v4218 = vunpack.c.l.b16 %v4090
        %v4219 = vunpack.c.l.b16 %v4091
        %v4220 = vunpack.c.l.b16 %v4092
        %v4221 = vunpack.c.l.b16 %v4093
        %v4222 = vunpack.c.l.b16 %v4094
        %v4223 = vunpack.c.l.b16 %v4095
        %v4224 = vunpack.c.l.b16 %v4096
        %v4225 = vunpack.c.l.b16 %v4097
        %v4226 = vunpack.c.l.b16 %v4098
        %v4227 = vunpack.c.l.b16 %v4099
        %v4228 = vunpack.c.l.b16 %v4100
        %v4229 = vunpack.c.l.b16 %v4101
        %v4230 = vunpack.c.l.b16 %v4102
        %v4231 = vunpack.c.l.b16 %v4103
        %v4232 = vunpack.c.l.b16 %v4104
        %v4233 = vunpack.c.l.b16 %v4105
        %v4234 = vunpack.c.l.b16 %v4106
        %v4235 = vunpack.c.l.b16 %v4107
        %v4236 = vunpack.c.l.b16 %v4108
        %v4237 = vunpack.c.l.b16 %v4109
        %v4238 = vunpack.c.l.b16 %v4110
        %v4239 = vunpack.c.l.b16 %v4111
        %v4240 = vunpack.c.l.b16 %v4112
        %v4241 = vunpack.c.l.b16 %v4113
        %v4242 = vunpack.c.l.b16 %v4114
        %v4243 = vunpack.c.l.b16 %v4115
        %v4244 = vunpack.c.l.b16 %v4116
        %v4245 = vunpack.c.l.b16 %v4117
        %v4246 = vunpack.c.l.b16 %v4118
        %v4247 = vunpack.c.l.b16 %v4119
        %v4248 = vunpack.c.l.b16 %v4120
        %v4249 = vunpack.c.l.b16 %v4121
        %v4250 = vunpack.c.l.b16 %v4122
        %v4251 = vunpack.c.l.b16 %v4123
        %v4252 = vunpack.c.l.b16 %v4124
        %v4253 = vunpack.c.l.b16 %v4125
        %v4254 = vunpack.c.l.b16 %v4126
        %v4255 = vunpack.c.l.b16 %v4127
        %v4256 = vunpack.c.l.b16 %v4128
        %v4257 = vunpack.c.l.b16 %v4129
        %v4258 = vunpack.c.l.b16 %v4130
        %v4259 = vunpack.c.l.b16 %v4131
        %v4260 = vunpack.c.l.b16 %v4132
        %v4261 = vunpack.c.l.b16 %v4133
        %v4262 = vunpack.c.l.b16 %v4134
        %v4263 = vunpack.c.l.b16 %v4135
        %vm4264 = vcmask 1041409
        %v4265 = vsel %vm4264, %v4201, %v4200
        %vm4266 = vcmask 1042434
        %v4267 = vsel %vm4266, %v4202, %v4265
        %vm4268 = vcmask 1043459
        %v4269 = vsel %vm4268, %v4203, %v4267
        %vm4270 = vcmask 1044484
        %v4271 = vsel %vm4270, %v4204, %v4269
        %vm4272 = vcmask 1045509
        %v4273 = vsel %vm4272, %v4205, %v4271
        %vm4274 = vcmask 1046534
        %v4275 = vsel %vm4274, %v4206, %v4273
        %vm4276 = vcmask 1047559
        %v4277 = vsel %vm4276, %v4207, %v4275
        %v4278 = vsel %vm4264, %v4209, %v4208
        %v4279 = vsel %vm4266, %v4210, %v4278
        %v4280 = vsel %vm4268, %v4211, %v4279
        %v4281 = vsel %vm4270, %v4212, %v4280
        %v4282 = vsel %vm4272, %v4213, %v4281
        %v4283 = vsel %vm4274, %v4214, %v4282
        %v4284 = vsel %vm4276, %v4215, %v4283
        %v4285 = vsel %vm4264, %v4217, %v4216
        %v4286 = vsel %vm4266, %v4218, %v4285
        %v4287 = vsel %vm4268, %v4219, %v4286
        %v4288 = vsel %vm4270, %v4220, %v4287
        %v4289 = vsel %vm4272, %v4221, %v4288
        %v4290 = vsel %vm4274, %v4222, %v4289
        %v4291 = vsel %vm4276, %v4223, %v4290
        %v4292 = vsel %vm4264, %v4225, %v4224
        %v4293 = vsel %vm4266, %v4226, %v4292
        %v4294 = vsel %vm4268, %v4227, %v4293
        %v4295 = vsel %vm4270, %v4228, %v4294
        %v4296 = vsel %vm4272, %v4229, %v4295
        %v4297 = vsel %vm4274, %v4230, %v4296
        %v4298 = vsel %vm4276, %v4231, %v4297
        %v4299 = vsel %vm4264, %v4233, %v4232
        %v4300 = vsel %vm4266, %v4234, %v4299
        %v4301 = vsel %vm4268, %v4235, %v4300
        %v4302 = vsel %vm4270, %v4236, %v4301
        %v4303 = vsel %vm4272, %v4237, %v4302
        %v4304 = vsel %vm4274, %v4238, %v4303
        %v4305 = vsel %vm4276, %v4239, %v4304
        %v4306 = vsel %vm4264, %v4241, %v4240
        %v4307 = vsel %vm4266, %v4242, %v4306
        %v4308 = vsel %vm4268, %v4243, %v4307
        %v4309 = vsel %vm4270, %v4244, %v4308
        %v4310 = vsel %vm4272, %v4245, %v4309
        %v4311 = vsel %vm4274, %v4246, %v4310
        %v4312 = vsel %vm4276, %v4247, %v4311
        %v4313 = vsel %vm4264, %v4249, %v4248
        %v4314 = vsel %vm4266, %v4250, %v4313
        %v4315 = vsel %vm4268, %v4251, %v4314
        %v4316 = vsel %vm4270, %v4252, %v4315
        %v4317 = vsel %vm4272, %v4253, %v4316
        %v4318 = vsel %vm4274, %v4254, %v4317
        %v4319 = vsel %vm4276, %v4255, %v4318
        %v4320 = vsel %vm4264, %v4257, %v4256
        %v4321 = vsel %vm4266, %v4258, %v4320
        %v4322 = vsel %vm4268, %v4259, %v4321
        %v4323 = vsel %vm4270, %v4260, %v4322
        %v4324 = vsel %vm4272, %v4261, %v4323
        %v4325 = vsel %vm4274, %v4262, %v4324
        %v4326 = vsel %vm4276, %v4263, %v4325
        %v4327 = vpack.c.b16 %v4277, %v4277
        %v4328 = vpack.c.b16 %v4284, %v4284
        %v4329 = vpack.c.b16 %v4291, %v4291
        %v4330 = vpack.c.b16 %v4298, %v4298
        %v4331 = vpack.c.b16 %v4305, %v4305
        %v4332 = vpack.c.b16 %v4312, %v4312
        %v4333 = vpack.c.b16 %v4319, %v4319
        %v4334 = vpack.c.b16 %v4326, %v4326
        %vm4343 = vcmask 60416
        %4344 = vst.msk [vmem:[%s201] sm:$0xf] %vm4343, %v4327
        %4345 = vst.msk [vmem:[%s201 + $0x4] sm:$0xf] %vm4343, %v4328
        %4346 = vst.msk [vmem:[%s201 + $0x8] sm:$0xf] %vm4343, %v4329
        %4347 = vst.msk [vmem:[%s201 + $0xc] sm:$0xf] %vm4343, %v4330
        %4348 = vst.msk [vmem:[%s201 + $0x10] sm:$0xf] %vm4343, %v4331
        %4349 = vst.msk [vmem:[%s201 + $0x14] sm:$0xf] %vm4343, %v4332
        %4350 = vst.msk [vmem:[%s201 + $0x18] sm:$0xf] %vm4343, %v4333
        %4351 = vst.msk [vmem:[%s201 + $0x1c] sm:$0xf] %vm4343, %v4334
        %s4352 = sand.u32 %s117, 1
        %s4353 = scalar_lea.sflag [#allocation4], %s4352
        %s4354 = sand.u32 %s117, 1
        %s4355 = smul.addr %s4354, 32
        %s4356 = scalar_lea.vmem [#allocation3], %s4355
        // Predicated region
        $region33: #{tpu_custom_call.1} parent=31 // pred_check
          %p4357 = pneg %p127
        $region34: #{tpu_custom_call.1} parent=31 // pred_check_branch
          %4359 = sbr.rel (%p4357) target = $region36
        $region35: #{tpu_custom_call.1} parent=31 // pred_region
          %4361 = vsyncadd %s4353, 0
          %s4362 = smul.addr %s22, 8
          %s4363 = sadd.s32 %s21, %s4362
          %s4364 = smul.addr %s4363, 4
          %s4365 = scalar_lea.hbm %s3, %s4364
          %s4366 = sshll.u32 %s4356, 4
          %s4367 = int_to_ptr.vmem [resolvable:$true] %s4366
          %s4368 = sshll.u32 %s4365, 4
          %s4369 = int_to_ptr.hbm [resolvable:$true] %s4368
          %4374 = dma.vmem_to_hbm [thread:$0]  %s4367, 512, %s4369, %s4353, 64, 64, 4
        $region36: #{tpu_custom_call.1} parent=31 // pred_fallthru
          _
      $region32: #{tpu_custom_call.1} parent=5 // pred_fallthru
        _
      %p4375 = scmp.le.s32.totalorder 2, %s12
      // Predicated region
      $region37: #{tpu_custom_call.1} parent=5 // pred_check
        %p4376 = pneg %p4375
      $region38: #{tpu_custom_call.1} parent=5 // pred_check_branch
        %4378 = sbr.rel (%p4376) target = $region40
      $region39: #{tpu_custom_call.1} parent=5 // pred_region
        %s4379 = ssub.s32 %s12, 2
        // Predicated region
        $region41: #{tpu_custom_call.1} parent=39 // pred_check
          %p4380 = pneg %p133
        $region42: #{tpu_custom_call.1} parent=39 // pred_check_branch
          %4382 = sbr.rel (%p4380) target = $region44
        $region43: #{tpu_custom_call.1} parent=39 // pred_region
          %s4383 = sand.u32 %s118, 1
          %s4384 = scalar_lea.sflag [#allocation4], %s4383
          %s4385 = sand.u32 %s118, 1
          %s4386 = smul.addr %s4385, 32
          %s4387 = scalar_lea.vmem [#allocation3], %s4386
          %4389 = dma.done %s4384, 512
        $region44: #{tpu_custom_call.1} parent=39 // pred_fallthru
          _
      $region40: #{tpu_custom_call.1} parent=5 // pred_fallthru
        _
    $region6: #{tpu_custom_call.1} parent=1 // loop_footer
      %s16 = sadd.s32 1, %s12
    $region7: #{tpu_custom_call.1} parent=1 // loop_footer_branch
      %11 = sbr.rel target = $region3
    $region8: #{tpu_custom_call.1} parent=1 // loop_exit
      _
    %4390 = vsyncpa [#allocation4], 1
    %s4391 = scalar_lea.sflag [#allocation4], 1
    %4392 = vsyncpa %s4391, 1

</llo_original>
